<compile_context>
chip_gen: v6e
topology: v6e:2x2x1
jax: 0.10.0
libtpu: 0.0.40
codegen_flags: <defaults>
</compile_context>

<pallas_src>
import functools

import jax
import jax.numpy as jnp
from jax.experimental import pallas as pl
from jax.experimental.pallas import tpu as pltpu


_NEG_INF = -1e30


def _meta_block_kernel(xs_ref, xq_ref, meta_ref, w_ref, b_ref, out_ref, *,
                       inner_lr, update_step, n_way, tb, s_sz, q_sz, cp):
    """One grid step == one block of `tb` tasks, fused into batched matmuls."""
    TS, TQ, TC = tb * s_sz, tb * q_sz, tb * cp

    xs = xs_ref[0]                                    # [TS, D]  bf16
    xq = xq_ref[0]                                    # [TQ, D]  bf16
    rows = meta_ref[0]                                # [2*(TS+TQ), 1] int32
    ys_g = rows[0:TS]                                 # global class id / support row
    yq_g = rows[TS:TS + TQ]                           # global class id / query row
    blk_s = rows[TS + TQ:2 * TS + TQ]                 # task_in_block * CP / support row
    blk_q = rows[2 * TS + TQ:2 * (TS + TQ)]           # task_in_block * CP / query row

    # Block-diagonal validity masks + one-hot targets, built once from iota
    # (pure VPU compares, no integer division; hoisted out of the inner loop).
    col_s = jax.lax.broadcasted_iota(jnp.int32, (TS, TC), 1)
    col_q = jax.lax.broadcasted_iota(jnp.int32, (TQ, TC), 1)
    valid_s = (col_s >= blk_s) & (col_s < blk_s + n_way)
    valid_q = (col_q >= blk_q) & (col_q < blk_q + n_way)
    onehot_s = (col_s == ys_g).astype(jnp.float32)    # [TS, TC]

    # Stack TB copies of the meta weights -> per-task fast weights [TC, D].
    w0 = w_ref[...]                                   # [CP, D] f32 (padded rows = 0)
    w_all = jnp.concatenate([w0] * tb, axis=0) if tb > 1 else w0
    b_all = b_ref[...]                                # [1, TC] f32 (pre-tiled)

    dn_xwT = (((1,), (1,)), ((), ()))   # [M,D]  x [TC,D] -> [M,TC]  (contract D)
    dn_gw = (((0,), (0,)), ((), ()))    # [TS,TC] x [TS,D] -> [TC,D] (contract rows)

    # ---- inner-loop SGD on the support set, all tasks of the block at once --
    for _ in range(update_step):
        logits = jax.lax.dot_general(
            xs, w_all.astype(jnp.bfloat16), dn_xwT,
            preferred_element_type=jnp.float32) + b_all            # [TS, TC]
        logits = jnp.where(valid_s, logits, _NEG_INF)
        m = jnp.max(logits, axis=-1, keepdims=True)
        e = jnp.exp(logits - m)                                     # exact 0 off-block
        p = e / jnp.sum(e, axis=-1, keepdims=True)
        dlogits = (p - onehot_s) * (1.0 / s_sz)                     # block-diagonal f32
        gW = jax.lax.dot_general(                                   # no XLU transpose
            dlogits.astype(jnp.bfloat16), xs, dn_gw,
            preferred_element_type=jnp.float32)                     # [TC, D]
        gb = jnp.sum(dlogits, axis=0, keepdims=True)                # [1, TC]
        w_all = w_all - inner_lr * gW                               # f32 updates
        b_all = b_all - inner_lr * gb

    # ---- query evaluation with the adapted weights ---------------------------
    logits_q = jax.lax.dot_general(
        xq, w_all.astype(jnp.bfloat16), dn_xwT,
        preferred_element_type=jnp.float32) + b_all                 # [TQ, TC]
    logits_q = jnp.where(valid_q, logits_q, _NEG_INF)
    mq = jnp.max(logits_q, axis=-1, keepdims=True)
    lse = mq + jnp.log(jnp.sum(jnp.exp(logits_q - mq), axis=-1, keepdims=True))
    true_logit = jnp.sum(jnp.where(col_q == yq_g, logits_q, 0.0),
                         axis=-1, keepdims=True)                    # [TQ, 1]
    loss_sum = jnp.sum(lse - true_logit) * (1.0 / q_sz)

    # First-max argmax (min global col index among maxima) == jnp.argmax.
    pred = jnp.min(jnp.where(logits_q == mq, col_q, TC),
                   axis=-1, keepdims=True)                          # [TQ, 1] int32
    corr_sum = jnp.sum((pred == yq_g).astype(jnp.float32))

    # Lane-dense packed partial: lane 0 = loss sum, lane 1 = correct count.
    lane = jax.lax.broadcasted_iota(jnp.int32, (1, 1, 128), 2)
    out_ref[...] = jnp.where(lane == 0, loss_sum,
                             jnp.where(lane == 1, corr_sum, 0.0))


def _vmem_bytes(tb, S, Q, CP, D):
    """Rough per-block VMEM working-set estimate (double-buffered inputs)."""
    inputs = 2 * (tb * (S + Q) * D * 2 + 2 * tb * (S + Q) * 4)
    weights = CP * D * 4 + 3 * tb * CP * D * 4          # meta W + fast W + gW + bf16 cast
    work = 6 * tb * (S + Q) * tb * CP * 4               # logits / softmax / masks
    return inputs + weights + work


def _pick_tasks_per_block(T, S, Q, CP, D, vmem_budget=16 * 1024 * 1024):
    """Fill the MXU (rows/cols <= 128) under a v7x-safe VMEM budget, but keep
    >= 2 grid blocks whenever the batch allows (DMA pipelining + v7x cores)."""
    cap = max(1, min(128 // max(S, 1), 128 // max(Q, 1), 128 // CP))
    cand = [d for d in range(1, T + 1)
            if T % d == 0 and d <= cap and _vmem_bytes(d, S, Q, CP, D) <= vmem_budget]
    if not cand:
        cand = [1]
    tb = max(cand)
    if T // tb < 2:
        smaller = [d for d in cand if T // d >= 2]
        if smaller and 2 * max(smaller) >= tb:   # at most halve the MXU fill
            tb = max(smaller)
    return tb


def meta_forward(x_support, y_support, x_query, y_query, W, b,
                 *, inner_lr, update_step, tasks_per_block=None):
    """Pallas implementation of Meta.forward's returned values (acc, loss_q)."""
    T, S, c, h, w = x_support.shape
    Q = x_query.shape[1]
    C = W.shape[0]
    D = c * h * w
    CP = max(8, ((C + 7) // 8) * 8)     # class dim padded to a sublane multiple

    TB = (_pick_tasks_per_block(T, S, Q, CP, D) if tasks_per_block is None
          else int(tasks_per_block))
    assert T % TB == 0, "tasks_per_block must divide the number of tasks"
    NB = T // TB
    TS, TQ, TC = TB * S, TB * Q, TB * CP

    xs = x_support.reshape(NB, TS, D).astype(jnp.bfloat16)
    xq = x_query.reshape(NB, TQ, D).astype(jnp.bfloat16)

    # Per-row metadata packed into ONE lane-1 int32 tensor:
    #   [0, TS)            : support global class id  (= y + task_in_block*CP)
    #   [TS, TS+TQ)        : query   global class id
    #   [TS+TQ, 2TS+TQ)    : support block-start column (= task_in_block*CP)
    #   [2TS+TQ, 2(TS+TQ)) : query   block-start column
    task_off = (jnp.arange(T, dtype=jnp.int32) % TB) * CP            # [T]
    ys_g = (y_support.astype(jnp.int32) + task_off[:, None]).reshape(NB, TS, 1)
    yq_g = (y_query.astype(jnp.int32) + task_off[:, None]).reshape(NB, TQ, 1)
    blk_s = jnp.broadcast_to(task_off[:, None], (T, S)).reshape(NB, TS, 1)
    blk_q = jnp.broadcast_to(task_off[:, None], (T, Q)).reshape(NB, TQ, 1)
    meta_rows = jnp.concatenate([ys_g, yq_g, blk_s, blk_q], axis=1)  # (NB, 2(TS+TQ), 1)

    Wp = jnp.zeros((CP, D), jnp.float32).at[:C, :].set(W.astype(jnp.float32))
    b_tile = jnp.tile(
        jnp.zeros((1, CP), jnp.float32).at[0, :C].set(b.reshape(C).astype(jnp.float32)),
        (1, TB))                                                     # (1, TC)

    kernel = functools.partial(
        _meta_block_kernel, inner_lr=float(inner_lr),
        update_step=int(update_step), n_way=C, tb=TB, s_sz=S, q_sz=Q, cp=CP)

    # Advisory cost for XLA's scheduler around this custom call.
    flops = NB * 2 * D * TC * (2 * update_step * TS + TQ)
    transc = NB * TC * (update_step * TS + TQ)
    bytes_acc = ((xs.size + xq.size) * 2 + meta_rows.size * 4
                 + NB * (Wp.size + b_tile.size + 128) * 4)
    cost = pl.CostEstimate(flops=int(flops), transcendentals=int(transc),
                           bytes_accessed=int(bytes_acc))

    partials = pl.pallas_call(
        kernel,
        out_shape=jax.ShapeDtypeStruct((NB, 1, 128), jnp.float32),
        grid_spec=pltpu.PrefetchScalarGridSpec(
            num_scalar_prefetch=0,
            grid=(NB,),
            in_specs=[
                pl.BlockSpec((1, TS, D), lambda nb: (nb, 0, 0)),
                pl.BlockSpec((1, TQ, D), lambda nb: (nb, 0, 0)),
                pl.BlockSpec((1, 2 * (TS + TQ), 1), lambda nb: (nb, 0, 0)),
                pl.BlockSpec((CP, D), lambda nb: (0, 0)),
                pl.BlockSpec((1, TC), lambda nb: (0, 0)),
            ],
            out_specs=pl.BlockSpec((1, 1, 128), lambda nb: (nb, 0, 0)),
        ),
        compiler_params=pltpu.CompilerParams(
            # Each block writes only its own output row -> the block axis is
            # independent (on v7x, pltpu.CORE_PARALLEL here shards blocks
            # across both TensorCores; "parallel" is safe on all chips).
            dimension_semantics=("parallel",)),
        cost_estimate=cost,
    )(xs, xq, meta_rows, Wp, b_tile)

    loss_q = jnp.sum(partials[:, 0, 0]) / T
    acc = jnp.sum(partials[:, 0, 1]) / (Q * T)
    return acc, loss_q


def meta_forward_ref(x_support, y_support, x_query, y_query, W, b,
                     *, inner_lr, update_step):
    """Pure-JAX reference (same bf16-matmul / f32-update math, per-task)."""
    T, S, c, h, w = x_support.shape
    Q = x_query.shape[1]
    C = W.shape[0]
    D = c * h * w
    xs_all = x_support.reshape(T, S, D).astype(jnp.bfloat16)
    xq_all = x_query.reshape(T, Q, D).astype(jnp.bfloat16)
    dn_xwT = (((1,), (1,)), ((), ()))

    loss_sum = 0.0
    corr_sum = 0.0
    for t in range(T):
        xs, xq = xs_all[t], xq_all[t]
        ys, yq = y_support[t], y_query[t]
        ys_onehot = jax.nn.one_hot(ys, C, dtype=jnp.float32)
        fw = W.astype(jnp.float32)
        fb = b.reshape(1, C).astype(jnp.float32)
        for _ in range(update_step):
            logits = jax.lax.dot_general(
                xs, fw.astype(jnp.bfloat16), dn_xwT,
                preferred_element_type=jnp.float32) + fb
            p = jax.nn.softmax(logits, axis=-1)
            dlogits = (p - ys_onehot) / S
            gW = jnp.dot(dlogits.T.astype(jnp.bfloat16), xs,
                         preferred_element_type=jnp.float32)
            fw = fw - inner_lr * gW
            fb = fb - inner_lr * jnp.sum(dlogits, axis=0, keepdims=True)
        logits_q = jax.lax.dot_general(
            xq, fw.astype(jnp.bfloat16), dn_xwT,
            preferred_element_type=jnp.float32) + fb
        lse = jax.nn.logsumexp(logits_q, axis=-1)
        loss_q = jnp.mean(lse - logits_q[jnp.arange(Q), yq])
        pred = jnp.argmax(logits_q, axis=-1)
        corr_sum = corr_sum + jnp.sum((pred == yq).astype(jnp.float32))
        loss_sum = loss_sum + loss_q
    return corr_sum / (Q * T), loss_sum / T


if __name__ == "__main__":
    # Hyperparameters consistent with Meta.__init__
    outer_lr = 1e-3          # unused for the returned values (Adam step only)
    inner_lr = 0.1
    n_way = 4
    k_support = 8
    k_query = 8
    task_num = 4
    update_step = 5

    c, h, w = 4, 16, 16
    D = c * h * w

    key = jax.random.PRNGKey(0)
    k_xs, k_xq, k_ys, k_yq, k_w = jax.random.split(key, 5)
    x_support = jax.random.normal(k_xs, (task_num, k_support, c, h, w), jnp.float32)
    x_query = jax.random.normal(k_xq, (task_num, k_query, c, h, w), jnp.float32)
    y_support = jax.random.randint(k_ys, (task_num, k_support), 0, n_way, jnp.int32)
    y_query = jax.random.randint(k_yq, (task_num, k_query), 0, n_way, jnp.int32)

    # Deterministic Learner parameters (linear classifier head).
    W = 0.02 * jax.random.normal(k_w, (n_way, D), jnp.float32)
    b = jnp.zeros((n_way,), jnp.float32)

    acc, loss_q = meta_forward(
        x_support, y_support, x_query, y_query, W, b,
        inner_lr=inner_lr, update_step=update_step)
    acc = jax.block_until_ready(acc)
    loss_q = jax.block_until_ready(loss_q)

    acc_ref, loss_ref = meta_forward_ref(
        x_support, y_support, x_query, y_query, W, b,
        inner_lr=inner_lr, update_step=update_step)

    assert jnp.allclose(loss_q, loss_ref, rtol=2e-3, atol=2e-3), (loss_q, loss_ref)
    # Accuracy is correct_count / (Q*T); allow at most one prediction flip from
    # accumulation-order differences between the Mosaic and XLA matmuls.
    assert abs(float(acc) - float(acc_ref)) <= 1.0 / (k_query * task_num) + 1e-6, \
        (acc, acc_ref)

    print("KERNEL_OK")
</pallas_src>

<mosaic_0001>
module attributes {stable_mosaic.version = 11 : i64} {
  func.func @_meta_block_kernel(%arg0: i32, %arg1: memref<1x16x1024xbf16, #tpu.memory_space<vmem>>, %arg2: memref<1x16x1024xbf16, #tpu.memory_space<vmem>>, %arg3: memref<1x64x1xi32, #tpu.memory_space<vmem>>, %arg4: memref<8x1024xf32, #tpu.memory_space<vmem>>, %arg5: memref<1x16xf32, #tpu.memory_space<vmem>>, %arg6: memref<1x1x128xf32, #tpu.memory_space<vmem>>) attributes {dimension_semantics = [#tpu.dimension_semantics<parallel>], iteration_bounds = array<i64: 2>, scalar_prefetch = 0 : i64, scratch_operands = 0 : i64, tpu.core_type = #tpu.core_type<tc>, window_params = [{transform_indices = @transform_0, window_bounds = array<i64: 1, 16, 1024>}, {transform_indices = @transform_1, window_bounds = array<i64: 1, 16, 1024>}, {transform_indices = @transform_2, window_bounds = array<i64: 1, 64, 1>}, {pipeline_mode = #tpu.pipeline_mode<synchronous>, transform_indices = @transform_3, window_bounds = array<i64: 8, 1024>}, {pipeline_mode = #tpu.pipeline_mode<synchronous>, transform_indices = @transform_4, window_bounds = array<i64: 1, 16>}, {transform_indices = @transform_5, window_bounds = array<i64: 1, 1, 128>}]} {
    %c0 = arith.constant 0 : index
    %c0_0 = arith.constant 0 : index
    %c0_1 = arith.constant 0 : index
    %0 = vector.load %arg1[%c0, %c0_0, %c0_1] : memref<1x16x1024xbf16, #tpu.memory_space<vmem>>, vector<1x16x1024xbf16>
    %1 = vector.shape_cast %0 : vector<1x16x1024xbf16> to vector<16x1024xbf16>
    %c0_2 = arith.constant 0 : index
    %c0_3 = arith.constant 0 : index
    %c0_4 = arith.constant 0 : index
    %2 = vector.load %arg2[%c0_2, %c0_3, %c0_4] : memref<1x16x1024xbf16, #tpu.memory_space<vmem>>, vector<1x16x1024xbf16>
    %3 = vector.shape_cast %2 : vector<1x16x1024xbf16> to vector<16x1024xbf16>
    %c0_5 = arith.constant 0 : index
    %c0_6 = arith.constant 0 : index
    %c0_7 = arith.constant 0 : index
    %4 = vector.load %arg3[%c0_5, %c0_6, %c0_7] : memref<1x64x1xi32, #tpu.memory_space<vmem>>, vector<1x64x1xi32>
    %5 = vector.shape_cast %4 : vector<1x64x1xi32> to vector<64x1xi32>
    %6 = vector.extract_strided_slice %5 {offsets = [0, 0], sizes = [16, 1], strides = [1, 1]} : vector<64x1xi32> to vector<16x1xi32>
    %7 = vector.extract_strided_slice %5 {offsets = [16, 0], sizes = [16, 1], strides = [1, 1]} : vector<64x1xi32> to vector<16x1xi32>
    %8 = vector.extract_strided_slice %5 {offsets = [32, 0], sizes = [16, 1], strides = [1, 1]} : vector<64x1xi32> to vector<16x1xi32>
    %9 = vector.extract_strided_slice %5 {offsets = [48, 0], sizes = [16, 1], strides = [1, 1]} : vector<64x1xi32> to vector<16x1xi32>
    %10 = tpu.iota {dimensions = array<i32: 1>} : vector<16x16xi32>
    %11 = tpu.iota {dimensions = array<i32: 1>} : vector<16x16xi32>
    %12 = vector.broadcast %8 : vector<16x1xi32> to vector<16x16xi32>
    %13 = arith.cmpi sge, %10, %12 : vector<16x16xi32>
    %c4_i32 = arith.constant 4 : i32
    %14 = vector.broadcast %c4_i32 : i32 to vector<16x1xi32>
    %15 = arith.addi %8, %14 : vector<16x1xi32>
    %16 = vector.broadcast %15 : vector<16x1xi32> to vector<16x16xi32>
    %17 = arith.cmpi slt, %10, %16 : vector<16x16xi32>
    %18 = arith.andi %13, %17 : vector<16x16xi1>
    %19 = vector.broadcast %9 : vector<16x1xi32> to vector<16x16xi32>
    %20 = arith.cmpi sge, %11, %19 : vector<16x16xi32>
    %c4_i32_8 = arith.constant 4 : i32
    %21 = vector.broadcast %c4_i32_8 : i32 to vector<16x1xi32>
    %22 = arith.addi %9, %21 : vector<16x1xi32>
    %23 = vector.broadcast %22 : vector<16x1xi32> to vector<16x16xi32>
    %24 = arith.cmpi slt, %11, %23 : vector<16x16xi32>
    %25 = arith.andi %20, %24 : vector<16x16xi1>
    %26 = vector.broadcast %6 : vector<16x1xi32> to vector<16x16xi32>
    %27 = arith.cmpi eq, %10, %26 : vector<16x16xi32>
    %28 = arith.extui %27 : vector<16x16xi1> to vector<16x16xi32>
    %29 = arith.sitofp %28 : vector<16x16xi32> to vector<16x16xf32>
    %c0_9 = arith.constant 0 : index
    %c0_10 = arith.constant 0 : index
    %30 = vector.load %arg4[%c0_9, %c0_10] : memref<8x1024xf32, #tpu.memory_space<vmem>>, vector<8x1024xf32>
    %31 = tpu.concatenate %30, %30 in 0 : vector<8x1024xf32>, vector<8x1024xf32> -> vector<16x1024xf32>
    %c0_11 = arith.constant 0 : index
    %c0_12 = arith.constant 0 : index
    %32 = vector.load %arg5[%c0_11, %c0_12] : memref<1x16xf32, #tpu.memory_space<vmem>>, vector<1x16xf32>
    %33 = arith.truncf %31 : vector<16x1024xf32> to vector<16x1024xbf16>
    %cst = arith.constant dense<0.000000e+00> : vector<16x16xf32>
    %34 = tpu.matmul %1, %33, %cst {dimension_numbers = #tpu.dot_dimension_numbers<[1], [1], [0], [0], [0, 0, 1, 0], [], []>} : vector<16x1024xbf16>, vector<16x1024xbf16>, vector<16x16xf32> -> vector<16x16xf32>
    %35 = vector.broadcast %32 : vector<1x16xf32> to vector<16x16xf32>
    %36 = arith.addf %34, %35 : vector<16x16xf32>
    %cst_13 = arith.constant -1.000000e+30 : f32
    %37 = vector.broadcast %cst_13 : f32 to vector<16x16xf32>
    %38 = arith.select %18, %36, %37 : vector<16x16xi1>, vector<16x16xf32>
    %cst_14 = arith.constant dense<0xFF800000> : vector<16xf32>
    %39 = vector.multi_reduction <maximumf>, %38, %cst_14 [1] : vector<16x16xf32> to vector<16xf32>
    %40 = vector.shape_cast %39 : vector<16xf32> to vector<16x1xf32>
    %41 = vector.broadcast %40 : vector<16x1xf32> to vector<16x16xf32>
    %42 = arith.subf %38, %41 : vector<16x16xf32>
    %43 = math.exp %42 : vector<16x16xf32>
    %cst_15 = arith.constant dense<0.000000e+00> : vector<16xf32>
    %44 = vector.multi_reduction <add>, %43, %cst_15 [1] : vector<16x16xf32> to vector<16xf32>
    %45 = vector.shape_cast %44 : vector<16xf32> to vector<16x1xf32>
    %46 = vector.broadcast %45 : vector<16x1xf32> to vector<16x16xf32>
    %47 = arith.divf %43, %46 : vector<16x16xf32>
    %48 = arith.subf %47, %29 : vector<16x16xf32>
    %cst_16 = arith.constant 1.250000e-01 : f32
    %49 = vector.broadcast %cst_16 : f32 to vector<16x16xf32>
    %50 = arith.mulf %48, %49 : vector<16x16xf32>
    %51 = arith.truncf %50 : vector<16x16xf32> to vector<16x16xbf16>
    %cst_17 = arith.constant dense<0.000000e+00> : vector<16x1024xf32>
    %52 = tpu.matmul %51, %1, %cst_17 {dimension_numbers = #tpu.dot_dimension_numbers<[0], [0], [1], [1], [0, 1, 1, 1], [], []>} : vector<16x16xbf16>, vector<16x1024xbf16>, vector<16x1024xf32> -> vector<16x1024xf32>
    %cst_18 = arith.constant dense<0.000000e+00> : vector<16xf32>
    %53 = vector.multi_reduction <add>, %50, %cst_18 [0] : vector<16x16xf32> to vector<16xf32>
    %54 = vector.shape_cast %53 : vector<16xf32> to vector<1x16xf32>
    %cst_19 = arith.constant 1.000000e-01 : f32
    %55 = vector.broadcast %cst_19 : f32 to vector<16x1024xf32>
    %56 = arith.mulf %55, %52 : vector<16x1024xf32>
    %57 = arith.subf %31, %56 : vector<16x1024xf32>
    %cst_20 = arith.constant 1.000000e-01 : f32
    %58 = vector.broadcast %cst_20 : f32 to vector<1x16xf32>
    %59 = arith.mulf %58, %54 : vector<1x16xf32>
    %60 = arith.subf %32, %59 : vector<1x16xf32>
    %61 = arith.truncf %57 : vector<16x1024xf32> to vector<16x1024xbf16>
    %cst_21 = arith.constant dense<0.000000e+00> : vector<16x16xf32>
    %62 = tpu.matmul %1, %61, %cst_21 {dimension_numbers = #tpu.dot_dimension_numbers<[1], [1], [0], [0], [0, 0, 1, 0], [], []>} : vector<16x1024xbf16>, vector<16x1024xbf16>, vector<16x16xf32> -> vector<16x16xf32>
    %63 = vector.broadcast %60 : vector<1x16xf32> to vector<16x16xf32>
    %64 = arith.addf %62, %63 : vector<16x16xf32>
    %cst_22 = arith.constant -1.000000e+30 : f32
    %65 = vector.broadcast %cst_22 : f32 to vector<16x16xf32>
    %66 = arith.select %18, %64, %65 : vector<16x16xi1>, vector<16x16xf32>
    %cst_23 = arith.constant dense<0xFF800000> : vector<16xf32>
    %67 = vector.multi_reduction <maximumf>, %66, %cst_23 [1] : vector<16x16xf32> to vector<16xf32>
    %68 = vector.shape_cast %67 : vector<16xf32> to vector<16x1xf32>
    %69 = vector.broadcast %68 : vector<16x1xf32> to vector<16x16xf32>
    %70 = arith.subf %66, %69 : vector<16x16xf32>
    %71 = math.exp %70 : vector<16x16xf32>
    %cst_24 = arith.constant dense<0.000000e+00> : vector<16xf32>
    %72 = vector.multi_reduction <add>, %71, %cst_24 [1] : vector<16x16xf32> to vector<16xf32>
    %73 = vector.shape_cast %72 : vector<16xf32> to vector<16x1xf32>
    %74 = vector.broadcast %73 : vector<16x1xf32> to vector<16x16xf32>
    %75 = arith.divf %71, %74 : vector<16x16xf32>
    %76 = arith.subf %75, %29 : vector<16x16xf32>
    %cst_25 = arith.constant 1.250000e-01 : f32
    %77 = vector.broadcast %cst_25 : f32 to vector<16x16xf32>
    %78 = arith.mulf %76, %77 : vector<16x16xf32>
    %79 = arith.truncf %78 : vector<16x16xf32> to vector<16x16xbf16>
    %cst_26 = arith.constant dense<0.000000e+00> : vector<16x1024xf32>
    %80 = tpu.matmul %79, %1, %cst_26 {dimension_numbers = #tpu.dot_dimension_numbers<[0], [0], [1], [1], [0, 1, 1, 1], [], []>} : vector<16x16xbf16>, vector<16x1024xbf16>, vector<16x1024xf32> -> vector<16x1024xf32>
    %cst_27 = arith.constant dense<0.000000e+00> : vector<16xf32>
    %81 = vector.multi_reduction <add>, %78, %cst_27 [0] : vector<16x16xf32> to vector<16xf32>
    %82 = vector.shape_cast %81 : vector<16xf32> to vector<1x16xf32>
    %cst_28 = arith.constant 1.000000e-01 : f32
    %83 = vector.broadcast %cst_28 : f32 to vector<16x1024xf32>
    %84 = arith.mulf %83, %80 : vector<16x1024xf32>
    %85 = arith.subf %57, %84 : vector<16x1024xf32>
    %cst_29 = arith.constant 1.000000e-01 : f32
    %86 = vector.broadcast %cst_29 : f32 to vector<1x16xf32>
    %87 = arith.mulf %86, %82 : vector<1x16xf32>
    %88 = arith.subf %60, %87 : vector<1x16xf32>
    %89 = arith.truncf %85 : vector<16x1024xf32> to vector<16x1024xbf16>
    %cst_30 = arith.constant dense<0.000000e+00> : vector<16x16xf32>
    %90 = tpu.matmul %1, %89, %cst_30 {dimension_numbers = #tpu.dot_dimension_numbers<[1], [1], [0], [0], [0, 0, 1, 0], [], []>} : vector<16x1024xbf16>, vector<16x1024xbf16>, vector<16x16xf32> -> vector<16x16xf32>
    %91 = vector.broadcast %88 : vector<1x16xf32> to vector<16x16xf32>
    %92 = arith.addf %90, %91 : vector<16x16xf32>
    %cst_31 = arith.constant -1.000000e+30 : f32
    %93 = vector.broadcast %cst_31 : f32 to vector<16x16xf32>
    %94 = arith.select %18, %92, %93 : vector<16x16xi1>, vector<16x16xf32>
    %cst_32 = arith.constant dense<0xFF800000> : vector<16xf32>
    %95 = vector.multi_reduction <maximumf>, %94, %cst_32 [1] : vector<16x16xf32> to vector<16xf32>
    %96 = vector.shape_cast %95 : vector<16xf32> to vector<16x1xf32>
    %97 = vector.broadcast %96 : vector<16x1xf32> to vector<16x16xf32>
    %98 = arith.subf %94, %97 : vector<16x16xf32>
    %99 = math.exp %98 : vector<16x16xf32>
    %cst_33 = arith.constant dense<0.000000e+00> : vector<16xf32>
    %100 = vector.multi_reduction <add>, %99, %cst_33 [1] : vector<16x16xf32> to vector<16xf32>
    %101 = vector.shape_cast %100 : vector<16xf32> to vector<16x1xf32>
    %102 = vector.broadcast %101 : vector<16x1xf32> to vector<16x16xf32>
    %103 = arith.divf %99, %102 : vector<16x16xf32>
    %104 = arith.subf %103, %29 : vector<16x16xf32>
    %cst_34 = arith.constant 1.250000e-01 : f32
    %105 = vector.broadcast %cst_34 : f32 to vector<16x16xf32>
    %106 = arith.mulf %104, %105 : vector<16x16xf32>
    %107 = arith.truncf %106 : vector<16x16xf32> to vector<16x16xbf16>
    %cst_35 = arith.constant dense<0.000000e+00> : vector<16x1024xf32>
    %108 = tpu.matmul %107, %1, %cst_35 {dimension_numbers = #tpu.dot_dimension_numbers<[0], [0], [1], [1], [0, 1, 1, 1], [], []>} : vector<16x16xbf16>, vector<16x1024xbf16>, vector<16x1024xf32> -> vector<16x1024xf32>
    %cst_36 = arith.constant dense<0.000000e+00> : vector<16xf32>
    %109 = vector.multi_reduction <add>, %106, %cst_36 [0] : vector<16x16xf32> to vector<16xf32>
    %110 = vector.shape_cast %109 : vector<16xf32> to vector<1x16xf32>
    %cst_37 = arith.constant 1.000000e-01 : f32
    %111 = vector.broadcast %cst_37 : f32 to vector<16x1024xf32>
    %112 = arith.mulf %111, %108 : vector<16x1024xf32>
    %113 = arith.subf %85, %112 : vector<16x1024xf32>
    %cst_38 = arith.constant 1.000000e-01 : f32
    %114 = vector.broadcast %cst_38 : f32 to vector<1x16xf32>
    %115 = arith.mulf %114, %110 : vector<1x16xf32>
    %116 = arith.subf %88, %115 : vector<1x16xf32>
    %117 = arith.truncf %113 : vector<16x1024xf32> to vector<16x1024xbf16>
    %cst_39 = arith.constant dense<0.000000e+00> : vector<16x16xf32>
    %118 = tpu.matmul %1, %117, %cst_39 {dimension_numbers = #tpu.dot_dimension_numbers<[1], [1], [0], [0], [0, 0, 1, 0], [], []>} : vector<16x1024xbf16>, vector<16x1024xbf16>, vector<16x16xf32> -> vector<16x16xf32>
    %119 = vector.broadcast %116 : vector<1x16xf32> to vector<16x16xf32>
    %120 = arith.addf %118, %119 : vector<16x16xf32>
    %cst_40 = arith.constant -1.000000e+30 : f32
    %121 = vector.broadcast %cst_40 : f32 to vector<16x16xf32>
    %122 = arith.select %18, %120, %121 : vector<16x16xi1>, vector<16x16xf32>
    %cst_41 = arith.constant dense<0xFF800000> : vector<16xf32>
    %123 = vector.multi_reduction <maximumf>, %122, %cst_41 [1] : vector<16x16xf32> to vector<16xf32>
    %124 = vector.shape_cast %123 : vector<16xf32> to vector<16x1xf32>
    %125 = vector.broadcast %124 : vector<16x1xf32> to vector<16x16xf32>
    %126 = arith.subf %122, %125 : vector<16x16xf32>
    %127 = math.exp %126 : vector<16x16xf32>
    %cst_42 = arith.constant dense<0.000000e+00> : vector<16xf32>
    %128 = vector.multi_reduction <add>, %127, %cst_42 [1] : vector<16x16xf32> to vector<16xf32>
    %129 = vector.shape_cast %128 : vector<16xf32> to vector<16x1xf32>
    %130 = vector.broadcast %129 : vector<16x1xf32> to vector<16x16xf32>
    %131 = arith.divf %127, %130 : vector<16x16xf32>
    %132 = arith.subf %131, %29 : vector<16x16xf32>
    %cst_43 = arith.constant 1.250000e-01 : f32
    %133 = vector.broadcast %cst_43 : f32 to vector<16x16xf32>
    %134 = arith.mulf %132, %133 : vector<16x16xf32>
    %135 = arith.truncf %134 : vector<16x16xf32> to vector<16x16xbf16>
    %cst_44 = arith.constant dense<0.000000e+00> : vector<16x1024xf32>
    %136 = tpu.matmul %135, %1, %cst_44 {dimension_numbers = #tpu.dot_dimension_numbers<[0], [0], [1], [1], [0, 1, 1, 1], [], []>} : vector<16x16xbf16>, vector<16x1024xbf16>, vector<16x1024xf32> -> vector<16x1024xf32>
    %cst_45 = arith.constant dense<0.000000e+00> : vector<16xf32>
    %137 = vector.multi_reduction <add>, %134, %cst_45 [0] : vector<16x16xf32> to vector<16xf32>
    %138 = vector.shape_cast %137 : vector<16xf32> to vector<1x16xf32>
    %cst_46 = arith.constant 1.000000e-01 : f32
    %139 = vector.broadcast %cst_46 : f32 to vector<16x1024xf32>
    %140 = arith.mulf %139, %136 : vector<16x1024xf32>
    %141 = arith.subf %113, %140 : vector<16x1024xf32>
    %cst_47 = arith.constant 1.000000e-01 : f32
    %142 = vector.broadcast %cst_47 : f32 to vector<1x16xf32>
    %143 = arith.mulf %142, %138 : vector<1x16xf32>
    %144 = arith.subf %116, %143 : vector<1x16xf32>
    %145 = arith.truncf %141 : vector<16x1024xf32> to vector<16x1024xbf16>
    %cst_48 = arith.constant dense<0.000000e+00> : vector<16x16xf32>
    %146 = tpu.matmul %1, %145, %cst_48 {dimension_numbers = #tpu.dot_dimension_numbers<[1], [1], [0], [0], [0, 0, 1, 0], [], []>} : vector<16x1024xbf16>, vector<16x1024xbf16>, vector<16x16xf32> -> vector<16x16xf32>
    %147 = vector.broadcast %144 : vector<1x16xf32> to vector<16x16xf32>
    %148 = arith.addf %146, %147 : vector<16x16xf32>
    %cst_49 = arith.constant -1.000000e+30 : f32
    %149 = vector.broadcast %cst_49 : f32 to vector<16x16xf32>
    %150 = arith.select %18, %148, %149 : vector<16x16xi1>, vector<16x16xf32>
    %cst_50 = arith.constant dense<0xFF800000> : vector<16xf32>
    %151 = vector.multi_reduction <maximumf>, %150, %cst_50 [1] : vector<16x16xf32> to vector<16xf32>
    %152 = vector.shape_cast %151 : vector<16xf32> to vector<16x1xf32>
    %153 = vector.broadcast %152 : vector<16x1xf32> to vector<16x16xf32>
    %154 = arith.subf %150, %153 : vector<16x16xf32>
    %155 = math.exp %154 : vector<16x16xf32>
    %cst_51 = arith.constant dense<0.000000e+00> : vector<16xf32>
    %156 = vector.multi_reduction <add>, %155, %cst_51 [1] : vector<16x16xf32> to vector<16xf32>
    %157 = vector.shape_cast %156 : vector<16xf32> to vector<16x1xf32>
    %158 = vector.broadcast %157 : vector<16x1xf32> to vector<16x16xf32>
    %159 = arith.divf %155, %158 : vector<16x16xf32>
    %160 = arith.subf %159, %29 : vector<16x16xf32>
    %cst_52 = arith.constant 1.250000e-01 : f32
    %161 = vector.broadcast %cst_52 : f32 to vector<16x16xf32>
    %162 = arith.mulf %160, %161 : vector<16x16xf32>
    %163 = arith.truncf %162 : vector<16x16xf32> to vector<16x16xbf16>
    %cst_53 = arith.constant dense<0.000000e+00> : vector<16x1024xf32>
    %164 = tpu.matmul %163, %1, %cst_53 {dimension_numbers = #tpu.dot_dimension_numbers<[0], [0], [1], [1], [0, 1, 1, 1], [], []>} : vector<16x16xbf16>, vector<16x1024xbf16>, vector<16x1024xf32> -> vector<16x1024xf32>
    %cst_54 = arith.constant dense<0.000000e+00> : vector<16xf32>
    %165 = vector.multi_reduction <add>, %162, %cst_54 [0] : vector<16x16xf32> to vector<16xf32>
    %166 = vector.shape_cast %165 : vector<16xf32> to vector<1x16xf32>
    %cst_55 = arith.constant 1.000000e-01 : f32
    %167 = vector.broadcast %cst_55 : f32 to vector<16x1024xf32>
    %168 = arith.mulf %167, %164 : vector<16x1024xf32>
    %169 = arith.subf %141, %168 : vector<16x1024xf32>
    %cst_56 = arith.constant 1.000000e-01 : f32
    %170 = vector.broadcast %cst_56 : f32 to vector<1x16xf32>
    %171 = arith.mulf %170, %166 : vector<1x16xf32>
    %172 = arith.subf %144, %171 : vector<1x16xf32>
    %173 = arith.truncf %169 : vector<16x1024xf32> to vector<16x1024xbf16>
    %cst_57 = arith.constant dense<0.000000e+00> : vector<16x16xf32>
    %174 = tpu.matmul %3, %173, %cst_57 {dimension_numbers = #tpu.dot_dimension_numbers<[1], [1], [0], [0], [0, 0, 1, 0], [], []>} : vector<16x1024xbf16>, vector<16x1024xbf16>, vector<16x16xf32> -> vector<16x16xf32>
    %175 = vector.broadcast %172 : vector<1x16xf32> to vector<16x16xf32>
    %176 = arith.addf %174, %175 : vector<16x16xf32>
    %cst_58 = arith.constant -1.000000e+30 : f32
    %177 = vector.broadcast %cst_58 : f32 to vector<16x16xf32>
    %178 = arith.select %25, %176, %177 : vector<16x16xi1>, vector<16x16xf32>
    %cst_59 = arith.constant dense<0xFF800000> : vector<16xf32>
    %179 = vector.multi_reduction <maximumf>, %178, %cst_59 [1] : vector<16x16xf32> to vector<16xf32>
    %180 = vector.shape_cast %179 : vector<16xf32> to vector<16x1xf32>
    %181 = vector.broadcast %180 : vector<16x1xf32> to vector<16x16xf32>
    %182 = arith.subf %178, %181 : vector<16x16xf32>
    %183 = math.exp %182 : vector<16x16xf32>
    %cst_60 = arith.constant dense<0.000000e+00> : vector<16xf32>
    %184 = vector.multi_reduction <add>, %183, %cst_60 [1] : vector<16x16xf32> to vector<16xf32>
    %185 = vector.shape_cast %184 : vector<16xf32> to vector<16x1xf32>
    %186 = math.log %185 : vector<16x1xf32>
    %187 = arith.addf %180, %186 : vector<16x1xf32>
    %188 = vector.broadcast %7 : vector<16x1xi32> to vector<16x16xi32>
    %189 = arith.cmpi eq, %11, %188 : vector<16x16xi32>
    %cst_61 = arith.constant 0.000000e+00 : f32
    %190 = vector.broadcast %cst_61 : f32 to vector<16x16xf32>
    %191 = arith.select %189, %178, %190 : vector<16x16xi1>, vector<16x16xf32>
    %cst_62 = arith.constant dense<0.000000e+00> : vector<16xf32>
    %192 = vector.multi_reduction <add>, %191, %cst_62 [1] : vector<16x16xf32> to vector<16xf32>
    %193 = vector.shape_cast %192 : vector<16xf32> to vector<16x1xf32>
    %194 = arith.subf %187, %193 : vector<16x1xf32>
    %195 = vector.shape_cast %194 : vector<16x1xf32> to vector<1x16x1xf32>
    %cst_63 = arith.constant dense<0.000000e+00> : vector<1xf32>
    %196 = vector.multi_reduction <add>, %195, %cst_63 [1, 2] : vector<1x16x1xf32> to vector<1xf32>
    %197 = vector.shape_cast %196 : vector<1xf32> to vector<1x1x1xf32>
    %198 = vector.extract %197[0, 0, 0] : f32 from vector<1x1x1xf32>
    %cst_64 = arith.constant 1.250000e-01 : f32
    %199 = arith.mulf %198, %cst_64 : f32
    %200 = vector.broadcast %180 : vector<16x1xf32> to vector<16x16xf32>
    %201 = arith.cmpf oeq, %178, %200 : vector<16x16xf32>
    %c16_i32 = arith.constant 16 : i32
    %202 = vector.broadcast %c16_i32 : i32 to vector<16x16xi32>
    %203 = arith.select %201, %11, %202 : vector<16x16xi1>, vector<16x16xi32>
    %cst_65 = arith.constant dense<2147483647> : vector<16xi32>
    %204 = vector.multi_reduction <minsi>, %203, %cst_65 [1] : vector<16x16xi32> to vector<16xi32>
    %205 = vector.shape_cast %204 : vector<16xi32> to vector<16x1xi32>
    %206 = arith.cmpi eq, %205, %7 : vector<16x1xi32>
    %207 = arith.extui %206 : vector<16x1xi1> to vector<16x1xi32>
    %208 = arith.sitofp %207 : vector<16x1xi32> to vector<16x1xf32>
    %209 = vector.shape_cast %208 : vector<16x1xf32> to vector<1x16x1xf32>
    %cst_66 = arith.constant dense<0.000000e+00> : vector<1xf32>
    %210 = vector.multi_reduction <add>, %209, %cst_66 [1, 2] : vector<1x16x1xf32> to vector<1xf32>
    %211 = vector.shape_cast %210 : vector<1xf32> to vector<1x1x1xf32>
    %212 = vector.extract %211[0, 0, 0] : f32 from vector<1x1x1xf32>
    %213 = tpu.iota {dimensions = array<i32: 2>} : vector<1x1x128xi32>
    %c0_i32 = arith.constant 0 : i32
    %214 = vector.broadcast %c0_i32 : i32 to vector<1x1x128xi32>
    %215 = arith.cmpi eq, %213, %214 : vector<1x1x128xi32>
    %c1_i32 = arith.constant 1 : i32
    %216 = vector.broadcast %c1_i32 : i32 to vector<1x1x128xi32>
    %217 = arith.cmpi eq, %213, %216 : vector<1x1x128xi32>
    %cst_67 = arith.constant 0.000000e+00 : f32
    %218 = vector.broadcast %212 : f32 to vector<1x1x128xf32>
    %219 = vector.broadcast %cst_67 : f32 to vector<1x1x128xf32>
    %220 = arith.select %217, %218, %219 : vector<1x1x128xi1>, vector<1x1x128xf32>
    %221 = vector.broadcast %199 : f32 to vector<1x1x128xf32>
    %222 = arith.select %215, %221, %220 : vector<1x1x128xi1>, vector<1x1x128xf32>
    %c0_68 = arith.constant 0 : index
    %c0_69 = arith.constant 0 : index
    %c0_70 = arith.constant 0 : index
    %223 = vector.load %arg6[%c0_68, %c0_69, %c0_70] : memref<1x1x128xf32, #tpu.memory_space<vmem>>, vector<1x1x128xf32>
    tpu.vector_store %arg6[%c0_68, %c0_69, %c0_70], %222 {strides = array<i32>} : memref<1x1x128xf32, #tpu.memory_space<vmem>>, vector<1x1x128xf32>,
    return
  }
  func.func @transform_0(%arg0: i32) -> (i32, i32, i32) {
    %c0_i32 = arith.constant 0 : i32
    %c0_i32_0 = arith.constant 0 : i32
    %c0_i32_1 = arith.constant 0 : i32
    return %arg0, %c0_i32, %c0_i32_0 : i32, i32, i32
  }
  func.func @transform_1(%arg0: i32) -> (i32, i32, i32) {
    %c0_i32 = arith.constant 0 : i32
    %c0_i32_0 = arith.constant 0 : i32
    %c0_i32_1 = arith.constant 0 : i32
    return %arg0, %c0_i32, %c0_i32_0 : i32, i32, i32
  }
  func.func @transform_2(%arg0: i32) -> (i32, i32, i32) {
    %c0_i32 = arith.constant 0 : i32
    %c0_i32_0 = arith.constant 0 : i32
    %c0_i32_1 = arith.constant 0 : i32
    return %arg0, %c0_i32, %c0_i32_0 : i32, i32, i32
  }
  func.func @transform_3(%arg0: i32) -> (i32, i32) {
    %c0_i32 = arith.constant 0 : i32
    %c0_i32_0 = arith.constant 0 : i32
    %c0_i32_1 = arith.constant 0 : i32
    return %c0_i32, %c0_i32_0 : i32, i32
  }
  func.func @transform_4(%arg0: i32) -> (i32, i32) {
    %c0_i32 = arith.constant 0 : i32
    %c0_i32_0 = arith.constant 0 : i32
    %c0_i32_1 = arith.constant 0 : i32
    return %c0_i32, %c0_i32_0 : i32, i32
  }
  func.func @transform_5(%arg0: i32) -> (i32, i32, i32) {
    %c0_i32 = arith.constant 0 : i32
    %c0_i32_0 = arith.constant 0 : i32
    %c0_i32_1 = arith.constant 0 : i32
    return %arg0, %c0_i32, %c0_i32_0 : i32, i32, i32
  }
}

</mosaic_0001>

<llo_original>
// kernel: tpu_custom_call.1
$region0: #{tpu_custom_call.1}
  #allocation0 [shape = 'u32[]', space=smem, size = 0x4, offset = 0x4, fixed_abs, tag = 'smem constant byte address 0x4 - core index']
  #allocation1 [shape = 'u32[144,128]{1,0:T(1,128)}', space=vmem, size = 0x12000, scoped, tag = 'internal scratch']
  %s0 = inlined_call_operand.vmem [shape: bf16[2,16,1024], index: 0, kind: input, shape index: {}]
  %s1 = inlined_call_operand.hbm [shape: bf16[2,16,1024], index: 1, kind: input, shape index: {}]
  %s2 = inlined_call_operand.vmem [shape: s32[2,64,1], index: 2, kind: input, shape index: {}]
  %s3 = inlined_call_operand.hbm [shape: f32[8,1024], index: 3, kind: input, shape index: {}]
  %s4 = inlined_call_operand.vmem [shape: f32[1,16], index: 4, kind: input, shape index: {}]
  %s5 = inlined_call_operand.hbm [shape: f32[2,1,128], index: 5, kind: output, shape index: {}]
  %s6 = sld [smem:[#allocation0]]
  $region61: #{tpu_custom_call.1} parent=0
    _
  %s8 = ssub.s32 1, %s6
  %s9 = scalar_select 0, %s8, %s6
  $region1: #{tpu_custom_call.1} parent=0
    #allocation2 [shape = 'u8[65536]{0}', space=vmem, size = 0x10000, scoped, tag = 'input window, operand 1']
    #allocation3 [shape = 's32[2]{0}', space=sflag, size = 0x8, scoped, tag = 'scoped memory for tpu_custom_call.1']
    #allocation4 [shape = 's32[2]{0}', space=sflag, size = 0x8, scoped, tag = 'scoped memory for tpu_custom_call.1']
    #allocation5 [shape = 'u8[32768]{0}', space=vmem, size = 0x8000, scoped, tag = 'input window, operand 3, single buffered']
    #allocation6 [shape = 's32[1]{0}', space=sflag, size = 0x4, scoped, tag = 'scoped memory for tpu_custom_call.1']
    #allocation7 [shape = 'u8[1024]{0}', space=vmem, size = 0x400, scoped, tag = 'output window, operand 0']
    %10 = vsyncpa [#allocation3], 0
    %s11 = scalar_lea.sflag [#allocation3], 1
    %12 = vsyncpa %s11, 0
    %13 = vsyncpa [#allocation6], 0
    %14 = vsyncpa [#allocation4], 0
    %s15 = scalar_lea.sflag [#allocation4], 1
    %16 = vsyncpa %s15, 0
    loop: start=0, step=1, limit=4
    $region2: #{tpu_custom_call.1} parent=1 // loop_pre_header
      _
    $region3: #{tpu_custom_call.1} parent=1 // loop_header
      %s18 = sphi 0, %s22
      %p19 = scmp.ge.s32.totalorder %s18, 4
      %s28 = sphi 0, %s30
      %s31 = sphi 0, %s28
      %s32 = sphi 0, %s31
      %s48 = sphi 0, %s32
      %s54 = sphi 0, %s56
      %s57 = sphi 0, %s54
      %s58 = sphi 0, %s57
      %s74 = sphi 0, %s58
      %s80 = sphi 0, %s82
      %s83 = sphi 0, %s80
      %s84 = sphi 0, %s83
      %s100 = sphi 0, %s84
      %s104 = sphi 0, %s104
      %s106 = sphi 0, %s104
      %s107 = sphi 0, %s106
      %s121 = sphi 0, %s107
      %s125 = sphi 0, %s125
      %s127 = sphi 0, %s125
      %s128 = sphi 0, %s127
      %s142 = sphi 0, %s128
      %s148 = sphi 0, %s150
      %s151 = sphi 0, %s148
      %s152 = sphi 0, %s151
      %s168 = sphi 0, %s152
    $region4: #{tpu_custom_call.1} parent=1 // loop_header_branch
      %21 = sbr.rel (%p19) target = $region8
    $region5: #{tpu_custom_call.1} parent=1 // loop_body
      %s23 = ssub.s32 %s18, 1
      %s24 = ssub.s32 %s18, 2
      %s25 = sadd.s32 %s18, 1
      %s26 = ssub.s32 %s18, %s25
      %p27 = scmp.eq.s32.totalorder %s26, 0
      %s29 = sadd.s32 %s28, 1
      %s30 = scalar_select %p27, %s28, %s29
      %p33 = pneg %p27
      %p34 = scmp.eq.s32.totalorder %s18, 1
      %p35 = por %p33, %p34
      %p36 = scmp.ne.s32.totalorder %s28, %s31
      %p37 = scmp.eq.s32.totalorder %s18, 0
      %p38 = por %p36, %p37
      %p39 = scmp.ne.s32.totalorder %s28, %s31
      %p40 = scmp.eq.s32.totalorder %s23, 1
      %p41 = por %p39, %p40
      %p42 = scmp.ne.s32.totalorder %s31, %s32
      %p43 = scmp.eq.s32.totalorder %s23, 0
      %p44 = por %p42, %p43
      %p45 = scmp.ne.s32.totalorder %s31, %s32
      %p46 = scmp.eq.s32.totalorder %s24, 1
      %p47 = por %p45, %p46
      %p49 = scmp.ne.s32.totalorder %s32, %s48
      %p50 = scmp.eq.s32.totalorder %s24, 0
      %p51 = por %p49, %p50
      %s52 = ssub.s32 %s18, %s25
      %p53 = scmp.eq.s32.totalorder %s52, 0
      %s55 = sadd.s32 %s54, 1
      %s56 = scalar_select %p53, %s54, %s55
      %p59 = pneg %p53
      %p60 = scmp.eq.s32.totalorder %s18, 1
      %p61 = por %p59, %p60
      %p62 = scmp.ne.s32.totalorder %s54, %s57
      %p63 = scmp.eq.s32.totalorder %s18, 0
      %p64 = por %p62, %p63
      %p65 = scmp.ne.s32.totalorder %s54, %s57
      %p66 = scmp.eq.s32.totalorder %s23, 1
      %p67 = por %p65, %p66
      %p68 = scmp.ne.s32.totalorder %s57, %s58
      %p69 = scmp.eq.s32.totalorder %s23, 0
      %p70 = por %p68, %p69
      %p71 = scmp.ne.s32.totalorder %s57, %s58
      %p72 = scmp.eq.s32.totalorder %s24, 1
      %p73 = por %p71, %p72
      %p75 = scmp.ne.s32.totalorder %s58, %s74
      %p76 = scmp.eq.s32.totalorder %s24, 0
      %p77 = por %p75, %p76
      %s78 = ssub.s32 %s18, %s25
      %p79 = scmp.eq.s32.totalorder %s78, 0
      %s81 = sadd.s32 %s80, 1
      %s82 = scalar_select %p79, %s80, %s81
      %p85 = pneg %p79
      %p86 = scmp.eq.s32.totalorder %s18, 1
      %p87 = por %p85, %p86
      %p88 = scmp.ne.s32.totalorder %s80, %s83
      %p89 = scmp.eq.s32.totalorder %s18, 0
      %p90 = por %p88, %p89
      %p91 = scmp.ne.s32.totalorder %s80, %s83
      %p92 = scmp.eq.s32.totalorder %s23, 1
      %p93 = por %p91, %p92
      %p94 = scmp.ne.s32.totalorder %s83, %s84
      %p95 = scmp.eq.s32.totalorder %s23, 0
      %p96 = por %p94, %p95
      %p97 = scmp.ne.s32.totalorder %s83, %s84
      %p98 = scmp.eq.s32.totalorder %s24, 1
      %p99 = por %p97, %p98
      %p101 = scmp.ne.s32.totalorder %s84, %s100
      %p102 = scmp.eq.s32.totalorder %s24, 0
      %p103 = por %p101, %p102
      %s105 = sadd.s32 %s104, 1
      %p108 = scmp.eq.s32.totalorder %s18, 1
      %p109 = scmp.ne.s32.totalorder %s104, %s106
      %p110 = scmp.eq.s32.totalorder %s18, 0
      %p111 = por %p109, %p110
      %p112 = scmp.ne.s32.totalorder %s104, %s106
      %p113 = scmp.eq.s32.totalorder %s23, 1
      %p114 = por %p112, %p113
      %p115 = scmp.ne.s32.totalorder %s106, %s107
      %p116 = scmp.eq.s32.totalorder %s23, 0
      %p117 = por %p115, %p116
      %p118 = scmp.ne.s32.totalorder %s106, %s107
      %p119 = scmp.eq.s32.totalorder %s24, 1
      %p120 = por %p118, %p119
      %p122 = scmp.ne.s32.totalorder %s107, %s121
      %p123 = scmp.eq.s32.totalorder %s24, 0
      %p124 = por %p122, %p123
      %s126 = sadd.s32 %s125, 1
      %p129 = scmp.eq.s32.totalorder %s18, 1
      %p130 = scmp.ne.s32.totalorder %s125, %s127
      %p131 = scmp.eq.s32.totalorder %s18, 0
      %p132 = por %p130, %p131
      %p133 = scmp.ne.s32.totalorder %s125, %s127
      %p134 = scmp.eq.s32.totalorder %s23, 1
      %p135 = por %p133, %p134
      %p136 = scmp.ne.s32.totalorder %s127, %s128
      %p137 = scmp.eq.s32.totalorder %s23, 0
      %p138 = por %p136, %p137
      %p139 = scmp.ne.s32.totalorder %s127, %s128
      %p140 = scmp.eq.s32.totalorder %s24, 1
      %p141 = por %p139, %p140
      %p143 = scmp.ne.s32.totalorder %s128, %s142
      %p144 = scmp.eq.s32.totalorder %s24, 0
      %p145 = por %p143, %p144
      %s146 = ssub.s32 %s18, %s25
      %p147 = scmp.eq.s32.totalorder %s146, 0
      %s149 = sadd.s32 %s148, 1
      %s150 = scalar_select %p147, %s148, %s149
      %p153 = pneg %p147
      %p154 = scmp.eq.s32.totalorder %s18, 1
      %p155 = por %p153, %p154
      %p156 = scmp.ne.s32.totalorder %s148, %s151
      %p157 = scmp.eq.s32.totalorder %s18, 0
      %p158 = por %p156, %p157
      %p159 = scmp.ne.s32.totalorder %s148, %s151
      %p160 = scmp.eq.s32.totalorder %s23, 1
      %p161 = por %p159, %p160
      %p162 = scmp.ne.s32.totalorder %s151, %s152
      %p163 = scmp.eq.s32.totalorder %s23, 0
      %p164 = por %p162, %p163
      %p165 = scmp.ne.s32.totalorder %s151, %s152
      %p166 = scmp.eq.s32.totalorder %s24, 1
      %p167 = por %p165, %p166
      %p169 = scmp.ne.s32.totalorder %s152, %s168
      %p170 = scmp.eq.s32.totalorder %s24, 0
      %p171 = por %p169, %p170
      %p172 = scmp.le.s32.totalorder 1, %s18
      %p173 = scmp.lt.s32.totalorder %s18, 3
      %p174 = pnand %p172, %p173
      %p175 = pneg %p174
      // Predicated region
      $region9: #{tpu_custom_call.1} parent=5 // pred_check
        _
      $region10: #{tpu_custom_call.1} parent=5 // pred_check_branch
        %177 = sbr.rel (%p174) target = $region12
      $region11: #{tpu_custom_call.1} parent=5 // pred_region
        %s178 = ssub.s32 %s18, 1
        // Predicated region
        $region13: #{tpu_custom_call.1} parent=11 // pred_check
          %p179 = pneg %p117
        $region14: #{tpu_custom_call.1} parent=11 // pred_check_branch
          %181 = sbr.rel (%p179) target = $region16
        $region15: #{tpu_custom_call.1} parent=11 // pred_region
          %s183 = ssub.s32 1024, 1024
          %184 = vsyncadd [#allocation6], %s183
          %s186 = sshll.u32 [#allocation5], 4
          %s187 = int_to_ptr.vmem [resolvable:$true] %s186
          %189 = dma.hbm_to_vmem [thread:$0]  %s3, 1024, %s187, [#allocation6]
        $region16: #{tpu_custom_call.1} parent=11 // pred_fallthru
          _
        // Predicated region
        $region17: #{tpu_custom_call.1} parent=11 // pred_check
          %p190 = pneg %p138
        $region18: #{tpu_custom_call.1} parent=11 // pred_check_branch
          %192 = sbr.rel (%p190) target = $region20
        $region19: #{tpu_custom_call.1} parent=11 // pred_region
          _
        $region20: #{tpu_custom_call.1} parent=11 // pred_fallthru
          _
      $region12: #{tpu_custom_call.1} parent=5 // pred_fallthru
        _
      %p193 = scmp.lt.s32.totalorder %s18, 2
      // Predicated region
      $region21: #{tpu_custom_call.1} parent=5 // pred_check
        %p194 = pneg %p193
      $region22: #{tpu_custom_call.1} parent=5 // pred_check_branch
        %196 = sbr.rel (%p194) target = $region24
      $region23: #{tpu_custom_call.1} parent=5 // pred_region
        // Predicated region
        $region25: #{tpu_custom_call.1} parent=23 // pred_check
          %p197 = pneg %p38
        $region26: #{tpu_custom_call.1} parent=23 // pred_check_branch
          %199 = sbr.rel (%p197) target = $region28
        $region27: #{tpu_custom_call.1} parent=23 // pred_region
          %p200 = scmp.lt.s32.totalorder %s18, 1
          %s201 = scalar_select %p200, %s18, 1
          %s202 = smul.addr %s201, 16
          %s203 = smul.addr %s202, 4
          %s204 = scalar_lea.vmem %s0, %s203
        $region28: #{tpu_custom_call.1} parent=23 // pred_fallthru
          _
        // Predicated region
        $region29: #{tpu_custom_call.1} parent=23 // pred_check
          %p205 = pneg %p64
        $region30: #{tpu_custom_call.1} parent=23 // pred_check_branch
          %207 = sbr.rel (%p205) target = $region32
        $region31: #{tpu_custom_call.1} parent=23 // pred_region
          %s208 = sand.u32 %s54, 1
          %s209 = scalar_lea.sflag [#allocation3], %s208
          %s210 = sand.u32 %s54, 1
          %s211 = smul.addr %s210, 64
          %s212 = scalar_lea.vmem [#allocation2], %s211
          %s214 = ssub.s32 1024, 1024
          %215 = vsyncadd %s209, %s214
          %s216 = smul.addr %s18, 16
          %s217 = smul.addr %s216, 64
          %s218 = scalar_lea.hbm %s1, %s217
          %s219 = sshll.u32 %s212, 4
          %s220 = int_to_ptr.vmem [resolvable:$true] %s219
          %225 = dma.hbm_to_vmem [thread:$0]  %s218, 1024, %s220, %s209, 512, 512, 32
        $region32: #{tpu_custom_call.1} parent=23 // pred_fallthru
          _
        // Predicated region
        $region33: #{tpu_custom_call.1} parent=23 // pred_check
          %p226 = pneg %p90
        $region34: #{tpu_custom_call.1} parent=23 // pred_check_branch
          %228 = sbr.rel (%p226) target = $region36
        $region35: #{tpu_custom_call.1} parent=23 // pred_region
          %p229 = scmp.lt.s32.totalorder %s18, 1
          %s230 = scalar_select %p229, %s18, 1
          %s231 = smul.addr %s230, 8
          %s232 = smul.addr %s231, 8
          %s233 = scalar_lea.vmem %s2, %s232
        $region36: #{tpu_custom_call.1} parent=23 // pred_fallthru
          _
      $region24: #{tpu_custom_call.1} parent=5 // pred_fallthru
        _
      %p234 = scmp.le.s32.totalorder 1, %s18
      %p235 = scmp.lt.s32.totalorder %s18, 3
      %p236 = pnand %p234, %p235
      %p237 = pneg %p236
      // Predicated region
      $region37: #{tpu_custom_call.1} parent=5 // pred_check
        _
      $region38: #{tpu_custom_call.1} parent=5 // pred_check_branch
        %239 = sbr.rel (%p236) target = $region40
      $region39: #{tpu_custom_call.1} parent=5 // pred_region
        %s240 = ssub.s32 %s18, 1
        %s241 = sand.u32 %s57, 1
        %s242 = scalar_lea.sflag [#allocation3], %s241
        %s243 = sand.u32 %s57, 1
        %s244 = smul.addr %s243, 64
        %s245 = scalar_lea.vmem [#allocation2], %s244
        // Predicated region
        $region41: #{tpu_custom_call.1} parent=39 // pred_check
          %p246 = pneg %p70
        $region42: #{tpu_custom_call.1} parent=39 // pred_check_branch
          %248 = sbr.rel (%p246) target = $region44
        $region43: #{tpu_custom_call.1} parent=39 // pred_region
          %249 = dma.done %s242, 1024
        $region44: #{tpu_custom_call.1} parent=39 // pred_fallthru
          _
        // Predicated region
        $region45: #{tpu_custom_call.1} parent=39 // pred_check
          %p250 = pneg %p117
        $region46: #{tpu_custom_call.1} parent=39 // pred_check_branch
          %252 = sbr.rel (%p250) target = $region48
        $region47: #{tpu_custom_call.1} parent=39 // pred_region
          %253 = dma.done [#allocation6], 1024
        $region48: #{tpu_custom_call.1} parent=39 // pred_fallthru
          _
        %p254 = scmp.lt.s32.totalorder %s23, 1
        %s255 = scalar_select %p254, %s23, 1
        %s256 = smul.addr %s255, 16
        %s257 = smul.addr %s256, 4
        %s258 = scalar_lea.vmem %s0, %s257
        %p259 = pneg %p44
        %p260 = pneg %p41
        %s261 = sand.u32 %s57, 1
        %s262 = scalar_lea.sflag [#allocation3], %s261
        %s263 = sand.u32 %s57, 1
        %s264 = smul.addr %s263, 64
        %s265 = scalar_lea.vmem [#allocation2], %s264
        %p266 = pneg %p70
        %p267 = pneg %p67
        %p268 = scmp.lt.s32.totalorder %s23, 1
        %s269 = scalar_select %p268, %s23, 1
        %s270 = smul.addr %s269, 8
        %s271 = smul.addr %s270, 8
        %s272 = scalar_lea.vmem %s2, %s271
        %p273 = pneg %p96
        %p274 = pneg %p93
        %p275 = pneg %p117
        %p276 = pneg %p114
        %p277 = pneg %p138
        %p278 = pneg %p135
        %p279 = pneg %p164
        %p280 = pneg %p161
        %s281 = sand.u32 %s151, 1
        %s282 = scalar_lea.sflag [#allocation4], %s281
        %s283 = sand.u32 %s151, 1
        %s284 = scalar_lea.vmem [#allocation7], %s283
        %p285 = scmp.lt.s32.totalorder %s23, 1
        %s286 = scalar_select %p285, %s23, 1
        %s287 = smul.addr %s286, 16
        %s288 = smul.addr %s287, 4
        %s289 = scalar_lea.vmem %s0, %s288
        %p290 = scmp.lt.s32.totalorder %s23, 1
        %s291 = scalar_select %p290, %s23, 1
        %s292 = smul.addr %s291, 8
        %s293 = smul.addr %s292, 8
        %s294 = scalar_lea.vmem %s2, %s293
        %v296 = vld [vmem:[%s289] sm:$0xff]
        %v297 = vld [vmem:[%s289 + $0x8] sm:$0xff]
        %v298 = vld [vmem:[%s289 + $0x10] sm:$0xff]
        %v299 = vld [vmem:[%s289 + $0x18] sm:$0xff]
        %v300 = vld [vmem:[%s289 + $0x20] sm:$0xff]
        %v301 = vld [vmem:[%s289 + $0x28] sm:$0xff]
        %v302 = vld [vmem:[%s289 + $0x30] sm:$0xff]
        %v303 = vld [vmem:[%s289 + $0x38] sm:$0xff]
        %v304 = vld [vmem:[%s245] sm:$0xff]
        %v305 = vld [vmem:[%s245 + $0x8] sm:$0xff]
        %v306 = vld [vmem:[%s245 + $0x10] sm:$0xff]
        %v307 = vld [vmem:[%s245 + $0x18] sm:$0xff]
        %v308 = vld [vmem:[%s245 + $0x20] sm:$0xff]
        %v309 = vld [vmem:[%s245 + $0x28] sm:$0xff]
        %v310 = vld [vmem:[%s245 + $0x30] sm:$0xff]
        %v311 = vld [vmem:[%s245 + $0x38] sm:$0xff]
        %v312 = vld [vmem:[%s294] sm:$0xff]
        %v313 = vld [vmem:[%s294 + $0x8] sm:$0xff]
        %v314 = vld [vmem:[%s294 + $0x10] sm:$0xff]
        %v315 = vld [vmem:[%s294 + $0x18] sm:$0xff]
        %v316 = vld [vmem:[%s294 + $0x20] sm:$0xff]
        %v317 = vld [vmem:[%s294 + $0x28] sm:$0xff]
        %v318 = vld [vmem:[%s294 + $0x30] sm:$0xff]
        %v319 = vld [vmem:[%s294 + $0x38] sm:$0xff]
        %v320 = vlaneseq
        %v321 = vand.u32 %v320, 127
        %322 = vset.pattern.permute.xlu0 0
        %323 = vperm.xlu0 %322, %v316
        %v324 = vpop.permute.xlu0 %323
        %325 = vset.pattern.permute.xlu0 0
        %326 = vperm.xlu0 %325, %v317
        %v327 = vpop.permute.xlu0 %326
        %vm328 = vcmp.ge.s32.totalorder %v321, %v324
        %vm329 = vcmp.ge.s32.totalorder %v321, %v327
        %v330 = vadd.s32 %v316, 4
        %v331 = vadd.s32 %v317, 4
        %332 = vset.pattern.permute.xlu0 0
        %333 = vperm.xlu0 %332, %v330
        %v334 = vpop.permute.xlu0 %333
        %335 = vset.pattern.permute.xlu0 0
        %336 = vperm.xlu0 %335, %v331
        %v337 = vpop.permute.xlu0 %336
        %vm338 = vcmp.lt.s32.totalorder %v321, %v334
        %vm339 = vcmp.lt.s32.totalorder %v321, %v337
        %vm340 = vmand %vm328, %vm338
        %vm341 = vmand %vm329, %vm339
        %342 = vset.pattern.permute.xlu0 0
        %343 = vperm.xlu0 %342, %v318
        %v344 = vpop.permute.xlu0 %343
        %345 = vset.pattern.permute.xlu0 0
        %346 = vperm.xlu0 %345, %v319
        %v347 = vpop.permute.xlu0 %346
        %vm348 = vcmp.ge.s32.totalorder %v321, %v344
        %vm349 = vcmp.ge.s32.totalorder %v321, %v347
        %v350 = vadd.s32 %v318, 4
        %v351 = vadd.s32 %v319, 4
        %352 = vset.pattern.permute.xlu0 0
        %353 = vperm.xlu0 %352, %v350
        %v354 = vpop.permute.xlu0 %353
        %355 = vset.pattern.permute.xlu0 0
        %356 = vperm.xlu0 %355, %v351
        %v357 = vpop.permute.xlu0 %356
        %vm358 = vcmp.lt.s32.totalorder %v321, %v354
        %vm359 = vcmp.lt.s32.totalorder %v321, %v357
        %vm360 = vmand %vm348, %vm358
        %vm361 = vmand %vm349, %vm359
        %362 = vset.pattern.permute.xlu0 0
        %363 = vperm.xlu0 %362, %v312
        %v364 = vpop.permute.xlu0 %363
        %365 = vset.pattern.permute.xlu0 0
        %366 = vperm.xlu0 %365, %v313
        %v367 = vpop.permute.xlu0 %366
        %vm368 = vcmp.eq.s32.totalorder %v321, %v364
        %vm369 = vcmp.eq.s32.totalorder %v321, %v367
        %v370 = vsel %vm368, 1, 0
        %v371 = vsel %vm369, 1, 0
        %v372 = vcvt.s32.f32 %v370
        %v373 = vcvt.s32.f32 %v371
        %v374 = vld [vmem:[#allocation5] sm:$0xff]
        %v375 = vld [vmem:[#allocation5 + $0x8] sm:$0xff]
        %v376 = vld [vmem:[#allocation5 + $0x10] sm:$0xff]
        %v377 = vld [vmem:[#allocation5 + $0x18] sm:$0xff]
        %v378 = vld [vmem:[#allocation5 + $0x20] sm:$0xff]
        %v379 = vld [vmem:[#allocation5 + $0x28] sm:$0xff]
        %v380 = vld [vmem:[#allocation5 + $0x30] sm:$0xff]
        %v381 = vld [vmem:[#allocation5 + $0x38] sm:$0xff]
        %v382 = vld [vmem:[%s4] sm:$0x1]
        %v383 = vpack.c.bf16 %v374, %v374
        %v384 = vpack.c.bf16 %v375, %v375
        %v385 = vpack.c.bf16 %v376, %v376
        %v386 = vpack.c.bf16 %v377, %v377
        %v387 = vpack.c.bf16 %v378, %v378
        %v388 = vpack.c.bf16 %v379, %v379
        %v389 = vpack.c.bf16 %v380, %v380
        %v390 = vpack.c.bf16 %v381, %v381
        %v392 = vlaneseq
        %v393 = vshrl.u32 %v392, 7
        %v394 = vsub.s32 0, %v393
        %v395 = vrot.slane %v382, %v394
        %v405 = vunpack.c.l.b16 %v296
        %v406 = vunpack.c.h.b16 %v296
        %v407 = vunpack.c.l.b16 %v297
        %v408 = vunpack.c.h.b16 %v297
        %v409 = vunpack.c.l.b16 %v298
        %v410 = vunpack.c.h.b16 %v298
        %v411 = vunpack.c.l.b16 %v299
        %v412 = vunpack.c.h.b16 %v299
        %v413 = vunpack.c.l.b16 %v300
        %v414 = vunpack.c.h.b16 %v300
        %v415 = vunpack.c.l.b16 %v301
        %v416 = vunpack.c.h.b16 %v301
        %v417 = vunpack.c.l.b16 %v302
        %v418 = vunpack.c.h.b16 %v302
        %v419 = vunpack.c.l.b16 %v303
        %v420 = vunpack.c.h.b16 %v303
        %v421 = vpack.c.b16 %v413, %v405
        %v422 = vpack.c.b16 %v414, %v406
        %v423 = vpack.c.b16 %v415, %v407
        %v424 = vpack.c.b16 %v416, %v408
        %v425 = vpack.c.b16 %v417, %v409
        %v426 = vpack.c.b16 %v418, %v410
        %v427 = vpack.c.b16 %v419, %v411
        %v428 = vpack.c.b16 %v420, %v412
        %437 = vmatprep.subr.bf16.mxu0 0
        %438 = vmatpush1.bf16.xpose.msra.mxu0 0
        %439 = vmatprep.subr.bf16.mxu0 0
        %440 = vmatpush1.bf16.xpose.msra.mxu0 0
        %441 = vmatprep.subr.bf16.mxu0 0
        %442 = vmatpush1.bf16.xpose.msra.mxu0 0
        %443 = vmatprep.subr.bf16.mxu0 0
        %444 = vmatpush1.bf16.xpose.msra.mxu0 0
        %445 = vmatprep.subr.bf16.mxu0 0
        %446 = vmatpush1.bf16.xpose.msra.mxu0 0
        %447 = vmatprep.subr.bf16.mxu0 0
        %448 = vmatpush1.bf16.xpose.msra.mxu0 0
        %449 = vmatprep.subr.bf16.mxu0 0
        %450 = vmatpush1.bf16.xpose.msra.mxu0 0
        %451 = vmatprep.subr.bf16.mxu0 %v384
        %452 = vmatpush1.bf16.xpose.msra.mxu0 %v383
        %453 = vmatprep.subr.bf16.mxu0 0
        %454 = vmatpush2.bf16.xpose.msra.mxu0 0
        %455 = vmatprep.subr.bf16.mxu0 0
        %456 = vmatpush2.bf16.xpose.msra.mxu0 0
        %457 = vmatprep.subr.bf16.mxu0 0
        %458 = vmatpush2.bf16.xpose.msra.mxu0 0
        %459 = vmatprep.subr.bf16.mxu0 0
        %460 = vmatpush2.bf16.xpose.msra.mxu0 0
        %461 = vmatprep.subr.bf16.mxu0 0
        %462 = vmatpush2.bf16.xpose.msra.mxu0 0
        %463 = vmatprep.subr.bf16.mxu0 0
        %464 = vmatpush2.bf16.xpose.msra.mxu0 0
        %465 = vmatprep.subr.bf16.mxu0 0
        %466 = vmatpush2.bf16.xpose.msra.mxu0 0
        %467 = vmatprep.subr.bf16.mxu0 0
        %468 = vmatpush2.bf16.xpose.msra.mxu0 0
        %469 = vmatprep.mubr.bf16.mxu0 %v422
        %470 = vmatmul.mubr.bf16.gmra.mxu0 %v421
        %v471 = vpop.f32.mrf.mxu0
        %v472 = vadd.f32 %v395, %v471
        %v473 = vpop.f32.mrf.mxu0
        %v474 = vpop.f32.mrf.mxu0
        %v475 = vadd.f32 %v395, %v474
        %v476 = vpop.f32.mrf.mxu0
        %477 = vdwg.mxu0
        %478 = vmatprep.subr.bf16.mxu0 0
        %479 = vmatpush1.bf16.xpose.msra.mxu0 0
        %480 = vmatprep.subr.bf16.mxu0 0
        %481 = vmatpush1.bf16.xpose.msra.mxu0 0
        %482 = vmatprep.subr.bf16.mxu0 0
        %483 = vmatpush1.bf16.xpose.msra.mxu0 0
        %484 = vmatprep.subr.bf16.mxu0 0
        %485 = vmatpush1.bf16.xpose.msra.mxu0 0
        %486 = vmatprep.subr.bf16.mxu0 0
        %487 = vmatpush1.bf16.xpose.msra.mxu0 0
        %488 = vmatprep.subr.bf16.mxu0 0
        %489 = vmatpush1.bf16.xpose.msra.mxu0 0
        %490 = vmatprep.subr.bf16.mxu0 0
        %491 = vmatpush1.bf16.xpose.msra.mxu0 0
        %492 = vmatprep.subr.bf16.mxu0 %v386
        %493 = vmatpush1.bf16.xpose.msra.mxu0 %v385
        %494 = vmatprep.subr.bf16.mxu0 0
        %495 = vmatpush2.bf16.xpose.msra.mxu0 0
        %496 = vmatprep.subr.bf16.mxu0 0
        %497 = vmatpush2.bf16.xpose.msra.mxu0 0
        %498 = vmatprep.subr.bf16.mxu0 0
        %499 = vmatpush2.bf16.xpose.msra.mxu0 0
        %500 = vmatprep.subr.bf16.mxu0 0
        %501 = vmatpush2.bf16.xpose.msra.mxu0 0
        %502 = vmatprep.subr.bf16.mxu0 0
        %503 = vmatpush2.bf16.xpose.msra.mxu0 0
        %504 = vmatprep.subr.bf16.mxu0 0
        %505 = vmatpush2.bf16.xpose.msra.mxu0 0
        %506 = vmatprep.subr.bf16.mxu0 0
        %507 = vmatpush2.bf16.xpose.msra.mxu0 0
        %508 = vmatprep.subr.bf16.mxu0 0
        %509 = vmatpush2.bf16.xpose.msra.mxu0 0
        %510 = vmatprep.mubr.bf16.mxu0 %v424
        %511 = vmatmul.mubr.bf16.gmra.mxu0 %v423
        %v512 = vpop.f32.mrf.mxu0
        %v513 = vadd.f32 %v472, %v512
        %v514 = vpop.f32.mrf.mxu0
        %v515 = vpop.f32.mrf.mxu0
        %v516 = vadd.f32 %v475, %v515
        %v517 = vpop.f32.mrf.mxu0
        %518 = vdwg.mxu0
        %519 = vmatprep.subr.bf16.mxu0 0
        %520 = vmatpush1.bf16.xpose.msra.mxu0 0
        %521 = vmatprep.subr.bf16.mxu0 0
        %522 = vmatpush1.bf16.xpose.msra.mxu0 0
        %523 = vmatprep.subr.bf16.mxu0 0
        %524 = vmatpush1.bf16.xpose.msra.mxu0 0
        %525 = vmatprep.subr.bf16.mxu0 0
        %526 = vmatpush1.bf16.xpose.msra.mxu0 0
        %527 = vmatprep.subr.bf16.mxu0 0
        %528 = vmatpush1.bf16.xpose.msra.mxu0 0
        %529 = vmatprep.subr.bf16.mxu0 0
        %530 = vmatpush1.bf16.xpose.msra.mxu0 0
        %531 = vmatprep.subr.bf16.mxu0 0
        %532 = vmatpush1.bf16.xpose.msra.mxu0 0
        %533 = vmatprep.subr.bf16.mxu0 %v388
        %534 = vmatpush1.bf16.xpose.msra.mxu0 %v387
        %535 = vmatprep.subr.bf16.mxu0 0
        %536 = vmatpush2.bf16.xpose.msra.mxu0 0
        %537 = vmatprep.subr.bf16.mxu0 0
        %538 = vmatpush2.bf16.xpose.msra.mxu0 0
        %539 = vmatprep.subr.bf16.mxu0 0
        %540 = vmatpush2.bf16.xpose.msra.mxu0 0
        %541 = vmatprep.subr.bf16.mxu0 0
        %542 = vmatpush2.bf16.xpose.msra.mxu0 0
        %543 = vmatprep.subr.bf16.mxu0 0
        %544 = vmatpush2.bf16.xpose.msra.mxu0 0
        %545 = vmatprep.subr.bf16.mxu0 0
        %546 = vmatpush2.bf16.xpose.msra.mxu0 0
        %547 = vmatprep.subr.bf16.mxu0 0
        %548 = vmatpush2.bf16.xpose.msra.mxu0 0
        %549 = vmatprep.subr.bf16.mxu0 0
        %550 = vmatpush2.bf16.xpose.msra.mxu0 0
        %551 = vmatprep.mubr.bf16.mxu0 %v426
        %552 = vmatmul.mubr.bf16.gmra.mxu0 %v425
        %v553 = vpop.f32.mrf.mxu0
        %v554 = vadd.f32 %v513, %v553
        %v555 = vpop.f32.mrf.mxu0
        %v556 = vpop.f32.mrf.mxu0
        %v557 = vadd.f32 %v516, %v556
        %v558 = vpop.f32.mrf.mxu0
        %559 = vdwg.mxu0
        %560 = vmatprep.subr.bf16.mxu0 0
        %561 = vmatpush1.bf16.xpose.msra.mxu0 0
        %562 = vmatprep.subr.bf16.mxu0 0
        %563 = vmatpush1.bf16.xpose.msra.mxu0 0
        %564 = vmatprep.subr.bf16.mxu0 0
        %565 = vmatpush1.bf16.xpose.msra.mxu0 0
        %566 = vmatprep.subr.bf16.mxu0 0
        %567 = vmatpush1.bf16.xpose.msra.mxu0 0
        %568 = vmatprep.subr.bf16.mxu0 0
        %569 = vmatpush1.bf16.xpose.msra.mxu0 0
        %570 = vmatprep.subr.bf16.mxu0 0
        %571 = vmatpush1.bf16.xpose.msra.mxu0 0
        %572 = vmatprep.subr.bf16.mxu0 0
        %573 = vmatpush1.bf16.xpose.msra.mxu0 0
        %574 = vmatprep.subr.bf16.mxu0 %v390
        %575 = vmatpush1.bf16.xpose.msra.mxu0 %v389
        %576 = vmatprep.subr.bf16.mxu0 0
        %577 = vmatpush2.bf16.xpose.msra.mxu0 0
        %578 = vmatprep.subr.bf16.mxu0 0
        %579 = vmatpush2.bf16.xpose.msra.mxu0 0
        %580 = vmatprep.subr.bf16.mxu0 0
        %581 = vmatpush2.bf16.xpose.msra.mxu0 0
        %582 = vmatprep.subr.bf16.mxu0 0
        %583 = vmatpush2.bf16.xpose.msra.mxu0 0
        %584 = vmatprep.subr.bf16.mxu0 0
        %585 = vmatpush2.bf16.xpose.msra.mxu0 0
        %586 = vmatprep.subr.bf16.mxu0 0
        %587 = vmatpush2.bf16.xpose.msra.mxu0 0
        %588 = vmatprep.subr.bf16.mxu0 0
        %589 = vmatpush2.bf16.xpose.msra.mxu0 0
        %590 = vmatprep.subr.bf16.mxu0 0
        %591 = vmatpush2.bf16.xpose.msra.mxu0 0
        %592 = vmatprep.mubr.bf16.mxu0 %v428
        %593 = vmatmul.mubr.bf16.gmra.mxu0 %v427
        %v594 = vpop.f32.mrf.mxu0
        %v595 = vadd.f32 %v554, %v594
        %v596 = vpop.f32.mrf.mxu0
        %v597 = vpop.f32.mrf.mxu0
        %v598 = vadd.f32 %v557, %v597
        %v599 = vpop.f32.mrf.mxu0
        %600 = vdwg.mxu0
        %v601 = vsel %vm340, %v595, -1e+30
        %v602 = vsel %vm341, %v598, -1e+30
        %vm603 = vcmask 130048
        %v604 = vsel %vm603, %v601, -inf
        %605 = vmax.xlane.f32.xlu0 %v604
        %v606 = vpop.xlane.xlu0 %605
        %v607 = vsel %vm603, %v602, -inf
        %608 = vmax.xlane.f32.xlu0 %v607
        %v609 = vpop.xlane.xlu0 %608
        %v610 = vsub.f32 %v601, %v606
        %v611 = vsub.f32 %v602, %v609
        %v612 = vmul.f32 %v610, 1.442695
        %v613 = vpow.pop %v612
        %v614 = vmul.f32 %v611, 1.442695
        %v615 = vpow.pop %v614
        %v616 = vsel %vm603, %v613, 0.0
        %617 = vadd.xlane.f32.xlu0 %v616
        %v618 = vpop.xlane.xlu0 %617
        %v619 = vsel %vm603, %v615, 0.0
        %620 = vadd.xlane.f32.xlu0 %v619
        %v621 = vpop.xlane.xlu0 %620
        %v622 = vrcp.pop %v618
        %v623 = vmul.f32 %v613, %v622
        %v624 = vrcp.pop %v621
        %v625 = vmul.f32 %v615, %v624
        %v626 = vsub.f32 %v623, %v372
        %v627 = vsub.f32 %v625, %v373
        %v628 = vmul.f32 %v626, 0.125
        %v629 = vmul.f32 %v627, 0.125
        %v630 = vpack.c.bf16 %v629, %v628
        %631 = vxpose.xlu0.c.b16.start [1/8] %v630, 128
        %632 = vxpose.xlu0.c.b16.cont [2/8] 0, 128
        %633 = vxpose.xlu0.c.b16.cont [3/8] 0, 128
        %634 = vxpose.xlu0.c.b16.cont [4/8] 0, 128
        %635 = vxpose.xlu0.c.b16.cont [5/8] 0, 128
        %636 = vxpose.xlu0.c.b16.cont [6/8] 0, 128
        %637 = vxpose.xlu0.c.b16.cont [7/8] 0, 128
        %638 = vxpose.xlu0.c.b16.end [8/8] 0, 128
        %v639 = vpop.trf.xlu0
        %v640 = vpop.trf.xlu0
        %v641 = vpop.trf.xlu0
        %v642 = vpop.trf.xlu0
        %v643 = vpop.trf.xlu0
        %v644 = vpop.trf.xlu0
        %v645 = vpop.trf.xlu0
        %v646 = vpop.trf.xlu0
        %v648 = vsel %vm603, %v639, 0
        %650 = vmatprep.subr.bf16.mxu0 0
        %651 = vmatpush1.bf16.msra.mxu0 0
        %652 = vmatprep.subr.bf16.mxu0 0
        %653 = vmatpush1.bf16.msra.mxu0 0
        %654 = vmatprep.subr.bf16.mxu0 0
        %655 = vmatpush1.bf16.msra.mxu0 0
        %656 = vmatprep.subr.bf16.mxu0 0
        %657 = vmatpush1.bf16.msra.mxu0 0
        %658 = vmatprep.subr.bf16.mxu0 0
        %659 = vmatpush1.bf16.msra.mxu0 0
        %660 = vmatprep.subr.bf16.mxu0 0
        %661 = vmatpush1.bf16.msra.mxu0 0
        %662 = vmatprep.subr.bf16.mxu0 0
        %663 = vmatpush1.bf16.msra.mxu0 0
        %664 = vmatprep.subr.bf16.mxu0 %v422
        %665 = vmatpush1.bf16.msra.mxu0 %v421
        %666 = vmatprep.subr.bf16.mxu0 0
        %667 = vmatpush2.bf16.msra.mxu0 0
        %668 = vmatprep.subr.bf16.mxu0 0
        %669 = vmatpush2.bf16.msra.mxu0 0
        %670 = vmatprep.subr.bf16.mxu0 0
        %671 = vmatpush2.bf16.msra.mxu0 0
        %672 = vmatprep.subr.bf16.mxu0 0
        %673 = vmatpush2.bf16.msra.mxu0 0
        %674 = vmatprep.subr.bf16.mxu0 0
        %675 = vmatpush2.bf16.msra.mxu0 0
        %676 = vmatprep.subr.bf16.mxu0 0
        %677 = vmatpush2.bf16.msra.mxu0 0
        %678 = vmatprep.subr.bf16.mxu0 0
        %679 = vmatpush2.bf16.msra.mxu0 0
        %680 = vmatprep.subr.bf16.mxu0 0
        %681 = vmatpush2.bf16.msra.mxu0 0
        %682 = vmatprep.mubr.bf16.mxu0 0
        %683 = vmatmul.mubr.bf16.gmra.mxu0 %v648
        %v684 = vpop.f32.mrf.mxu0
        %v685 = vadd.f32 0.0, %v684
        %v686 = vpop.f32.mrf.mxu0
        %v687 = vadd.f32 0.0, %v686
        %v688 = vpop.f32.mrf.mxu0
        %v689 = vadd.f32 0.0, %v688
        %v690 = vpop.f32.mrf.mxu0
        %v691 = vadd.f32 0.0, %v690
        %692 = vdwg.mxu0
        %693 = vmatprep.subr.bf16.mxu0 0
        %694 = vmatpush1.bf16.msra.mxu0 0
        %695 = vmatprep.subr.bf16.mxu0 0
        %696 = vmatpush1.bf16.msra.mxu0 0
        %697 = vmatprep.subr.bf16.mxu0 0
        %698 = vmatpush1.bf16.msra.mxu0 0
        %699 = vmatprep.subr.bf16.mxu0 0
        %700 = vmatpush1.bf16.msra.mxu0 0
        %701 = vmatprep.subr.bf16.mxu0 0
        %702 = vmatpush1.bf16.msra.mxu0 0
        %703 = vmatprep.subr.bf16.mxu0 0
        %704 = vmatpush1.bf16.msra.mxu0 0
        %705 = vmatprep.subr.bf16.mxu0 0
        %706 = vmatpush1.bf16.msra.mxu0 0
        %707 = vmatprep.subr.bf16.mxu0 %v424
        %708 = vmatpush1.bf16.msra.mxu0 %v423
        %709 = vmatprep.subr.bf16.mxu0 0
        %710 = vmatpush2.bf16.msra.mxu0 0
        %711 = vmatprep.subr.bf16.mxu0 0
        %712 = vmatpush2.bf16.msra.mxu0 0
        %713 = vmatprep.subr.bf16.mxu0 0
        %714 = vmatpush2.bf16.msra.mxu0 0
        %715 = vmatprep.subr.bf16.mxu0 0
        %716 = vmatpush2.bf16.msra.mxu0 0
        %717 = vmatprep.subr.bf16.mxu0 0
        %718 = vmatpush2.bf16.msra.mxu0 0
        %719 = vmatprep.subr.bf16.mxu0 0
        %720 = vmatpush2.bf16.msra.mxu0 0
        %721 = vmatprep.subr.bf16.mxu0 0
        %722 = vmatpush2.bf16.msra.mxu0 0
        %723 = vmatprep.subr.bf16.mxu0 0
        %724 = vmatpush2.bf16.msra.mxu0 0
        %725 = vmatprep.mubr.bf16.mxu0 0
        %726 = vmatmul.mubr.bf16.gmra.mxu0 %v648
        %v727 = vpop.f32.mrf.mxu0
        %v728 = vadd.f32 0.0, %v727
        %v729 = vpop.f32.mrf.mxu0
        %v730 = vadd.f32 0.0, %v729
        %v731 = vpop.f32.mrf.mxu0
        %v732 = vadd.f32 0.0, %v731
        %v733 = vpop.f32.mrf.mxu0
        %v734 = vadd.f32 0.0, %v733
        %735 = vdwg.mxu0
        %736 = vmatprep.subr.bf16.mxu0 0
        %737 = vmatpush1.bf16.msra.mxu0 0
        %738 = vmatprep.subr.bf16.mxu0 0
        %739 = vmatpush1.bf16.msra.mxu0 0
        %740 = vmatprep.subr.bf16.mxu0 0
        %741 = vmatpush1.bf16.msra.mxu0 0
        %742 = vmatprep.subr.bf16.mxu0 0
        %743 = vmatpush1.bf16.msra.mxu0 0
        %744 = vmatprep.subr.bf16.mxu0 0
        %745 = vmatpush1.bf16.msra.mxu0 0
        %746 = vmatprep.subr.bf16.mxu0 0
        %747 = vmatpush1.bf16.msra.mxu0 0
        %748 = vmatprep.subr.bf16.mxu0 0
        %749 = vmatpush1.bf16.msra.mxu0 0
        %750 = vmatprep.subr.bf16.mxu0 %v426
        %751 = vmatpush1.bf16.msra.mxu0 %v425
        %752 = vmatprep.subr.bf16.mxu0 0
        %753 = vmatpush2.bf16.msra.mxu0 0
        %754 = vmatprep.subr.bf16.mxu0 0
        %755 = vmatpush2.bf16.msra.mxu0 0
        %756 = vmatprep.subr.bf16.mxu0 0
        %757 = vmatpush2.bf16.msra.mxu0 0
        %758 = vmatprep.subr.bf16.mxu0 0
        %759 = vmatpush2.bf16.msra.mxu0 0
        %760 = vmatprep.subr.bf16.mxu0 0
        %761 = vmatpush2.bf16.msra.mxu0 0
        %762 = vmatprep.subr.bf16.mxu0 0
        %763 = vmatpush2.bf16.msra.mxu0 0
        %764 = vmatprep.subr.bf16.mxu0 0
        %765 = vmatpush2.bf16.msra.mxu0 0
        %766 = vmatprep.subr.bf16.mxu0 0
        %767 = vmatpush2.bf16.msra.mxu0 0
        %768 = vmatprep.mubr.bf16.mxu0 0
        %769 = vmatmul.mubr.bf16.gmra.mxu0 %v648
        %v770 = vpop.f32.mrf.mxu0
        %v771 = vadd.f32 0.0, %v770
        %v772 = vpop.f32.mrf.mxu0
        %v773 = vadd.f32 0.0, %v772
        %v774 = vpop.f32.mrf.mxu0
        %v775 = vadd.f32 0.0, %v774
        %v776 = vpop.f32.mrf.mxu0
        %v777 = vadd.f32 0.0, %v776
        %778 = vdwg.mxu0
        %779 = vmatprep.subr.bf16.mxu0 0
        %780 = vmatpush1.bf16.msra.mxu0 0
        %781 = vmatprep.subr.bf16.mxu0 0
        %782 = vmatpush1.bf16.msra.mxu0 0
        %783 = vmatprep.subr.bf16.mxu0 0
        %784 = vmatpush1.bf16.msra.mxu0 0
        %785 = vmatprep.subr.bf16.mxu0 0
        %786 = vmatpush1.bf16.msra.mxu0 0
        %787 = vmatprep.subr.bf16.mxu0 0
        %788 = vmatpush1.bf16.msra.mxu0 0
        %789 = vmatprep.subr.bf16.mxu0 0
        %790 = vmatpush1.bf16.msra.mxu0 0
        %791 = vmatprep.subr.bf16.mxu0 0
        %792 = vmatpush1.bf16.msra.mxu0 0
        %793 = vmatprep.subr.bf16.mxu0 %v428
        %794 = vmatpush1.bf16.msra.mxu0 %v427
        %795 = vmatprep.subr.bf16.mxu0 0
        %796 = vmatpush2.bf16.msra.mxu0 0
        %797 = vmatprep.subr.bf16.mxu0 0
        %798 = vmatpush2.bf16.msra.mxu0 0
        %799 = vmatprep.subr.bf16.mxu0 0
        %800 = vmatpush2.bf16.msra.mxu0 0
        %801 = vmatprep.subr.bf16.mxu0 0
        %802 = vmatpush2.bf16.msra.mxu0 0
        %803 = vmatprep.subr.bf16.mxu0 0
        %804 = vmatpush2.bf16.msra.mxu0 0
        %805 = vmatprep.subr.bf16.mxu0 0
        %806 = vmatpush2.bf16.msra.mxu0 0
        %807 = vmatprep.subr.bf16.mxu0 0
        %808 = vmatpush2.bf16.msra.mxu0 0
        %809 = vmatprep.subr.bf16.mxu0 0
        %810 = vmatpush2.bf16.msra.mxu0 0
        %811 = vmatprep.mubr.bf16.mxu0 0
        %812 = vmatmul.mubr.bf16.gmra.mxu0 %v648
        %v813 = vpop.f32.mrf.mxu0
        %v814 = vadd.f32 0.0, %v813
        %v815 = vpop.f32.mrf.mxu0
        %v816 = vadd.f32 0.0, %v815
        %v817 = vpop.f32.mrf.mxu0
        %v818 = vadd.f32 0.0, %v817
        %v819 = vpop.f32.mrf.mxu0
        %v820 = vadd.f32 0.0, %v819
        %821 = vdwg.mxu0
        %v822 = vsel %vm603, %v628, 0.0
        %v823 = vsel %vm603, %v629, 0.0
        %v824 = vadd.f32 %v822, %v823
        %v825 = vrot.slane %v824, 4
        %v826 = vadd.f32 %v824, %v825
        %v827 = vrot.slane %v826, 2
        %v828 = vadd.f32 %v826, %v827
        %v829 = vrot.slane %v828, 1
        %v830 = vadd.f32 %v828, %v829
        %v831 = vmul.f32 %v685, 0.1
        %v832 = vmul.f32 %v687, 0.1
        %v833 = vmul.f32 %v728, 0.1
        %v834 = vmul.f32 %v730, 0.1
        %v835 = vmul.f32 %v771, 0.1
        %v836 = vmul.f32 %v773, 0.1
        %v837 = vmul.f32 %v814, 0.1
        %v838 = vmul.f32 %v816, 0.1
        %v839 = vmul.f32 %v689, 0.1
        %v840 = vmul.f32 %v691, 0.1
        %v841 = vmul.f32 %v732, 0.1
        %v842 = vmul.f32 %v734, 0.1
        %v843 = vmul.f32 %v775, 0.1
        %v844 = vmul.f32 %v777, 0.1
        %v845 = vmul.f32 %v818, 0.1
        %v846 = vmul.f32 %v820, 0.1
        %v847 = vsub.f32 %v374, %v831
        %v848 = vsub.f32 %v375, %v832
        %v849 = vsub.f32 %v376, %v833
        %v850 = vsub.f32 %v377, %v834
        %v851 = vsub.f32 %v378, %v835
        %v852 = vsub.f32 %v379, %v836
        %v853 = vsub.f32 %v380, %v837
        %v854 = vsub.f32 %v381, %v838
        %v855 = vsub.f32 %v374, %v839
        %v856 = vsub.f32 %v375, %v840
        %v857 = vsub.f32 %v376, %v841
        %v858 = vsub.f32 %v377, %v842
        %v859 = vsub.f32 %v378, %v843
        %v860 = vsub.f32 %v379, %v844
        %v861 = vsub.f32 %v380, %v845
        %v862 = vsub.f32 %v381, %v846
        %v863 = vmul.f32 %v830, 0.1
        %v864 = vsub.f32 %v382, %v863
        %v865 = vpack.c.bf16 %v855, %v847
        %v866 = vpack.c.bf16 %v856, %v848
        %v867 = vpack.c.bf16 %v857, %v849
        %v868 = vpack.c.bf16 %v858, %v850
        %v869 = vpack.c.bf16 %v859, %v851
        %v870 = vpack.c.bf16 %v860, %v852
        %v871 = vpack.c.bf16 %v861, %v853
        %v872 = vpack.c.bf16 %v862, %v854
        %v874 = vlaneseq
        %v875 = vshrl.u32 %v874, 7
        %v876 = vsub.s32 0, %v875
        %v877 = vrot.slane %v864, %v876
        %879 = vmatprep.subr.bf16.mxu0 0
        %880 = vmatpush1.bf16.xpose.msra.mxu0 0
        %881 = vmatprep.subr.bf16.mxu0 0
        %882 = vmatpush1.bf16.xpose.msra.mxu0 0
        %883 = vmatprep.subr.bf16.mxu0 0
        %884 = vmatpush1.bf16.xpose.msra.mxu0 0
        %885 = vmatprep.subr.bf16.mxu0 0
        %886 = vmatpush1.bf16.xpose.msra.mxu0 0
        %887 = vmatprep.subr.bf16.mxu0 0
        %888 = vmatpush1.bf16.xpose.msra.mxu0 0
        %889 = vmatprep.subr.bf16.mxu0 0
        %890 = vmatpush1.bf16.xpose.msra.mxu0 0
        %891 = vmatprep.subr.bf16.mxu0 0
        %892 = vmatpush1.bf16.xpose.msra.mxu0 0
        %893 = vmatprep.subr.bf16.mxu0 %v866
        %894 = vmatpush1.bf16.xpose.msra.mxu0 %v865
        %895 = vmatprep.subr.bf16.mxu0 0
        %896 = vmatpush2.bf16.xpose.msra.mxu0 0
        %897 = vmatprep.subr.bf16.mxu0 0
        %898 = vmatpush2.bf16.xpose.msra.mxu0 0
        %899 = vmatprep.subr.bf16.mxu0 0
        %900 = vmatpush2.bf16.xpose.msra.mxu0 0
        %901 = vmatprep.subr.bf16.mxu0 0
        %902 = vmatpush2.bf16.xpose.msra.mxu0 0
        %903 = vmatprep.subr.bf16.mxu0 0
        %904 = vmatpush2.bf16.xpose.msra.mxu0 0
        %905 = vmatprep.subr.bf16.mxu0 0
        %906 = vmatpush2.bf16.xpose.msra.mxu0 0
        %907 = vmatprep.subr.bf16.mxu0 0
        %908 = vmatpush2.bf16.xpose.msra.mxu0 0
        %909 = vmatprep.subr.bf16.mxu0 0
        %910 = vmatpush2.bf16.xpose.msra.mxu0 0
        %911 = vmatprep.mubr.bf16.mxu0 %v422
        %912 = vmatmul.mubr.bf16.gmra.mxu0 %v421
        %v913 = vpop.f32.mrf.mxu0
        %v914 = vadd.f32 %v877, %v913
        %v915 = vpop.f32.mrf.mxu0
        %v916 = vpop.f32.mrf.mxu0
        %v917 = vadd.f32 %v877, %v916
        %v918 = vpop.f32.mrf.mxu0
        %919 = vdwg.mxu0
        %920 = vmatprep.subr.bf16.mxu0 0
        %921 = vmatpush1.bf16.xpose.msra.mxu0 0
        %922 = vmatprep.subr.bf16.mxu0 0
        %923 = vmatpush1.bf16.xpose.msra.mxu0 0
        %924 = vmatprep.subr.bf16.mxu0 0
        %925 = vmatpush1.bf16.xpose.msra.mxu0 0
        %926 = vmatprep.subr.bf16.mxu0 0
        %927 = vmatpush1.bf16.xpose.msra.mxu0 0
        %928 = vmatprep.subr.bf16.mxu0 0
        %929 = vmatpush1.bf16.xpose.msra.mxu0 0
        %930 = vmatprep.subr.bf16.mxu0 0
        %931 = vmatpush1.bf16.xpose.msra.mxu0 0
        %932 = vmatprep.subr.bf16.mxu0 0
        %933 = vmatpush1.bf16.xpose.msra.mxu0 0
        %934 = vmatprep.subr.bf16.mxu0 %v868
        %935 = vmatpush1.bf16.xpose.msra.mxu0 %v867
        %936 = vmatprep.subr.bf16.mxu0 0
        %937 = vmatpush2.bf16.xpose.msra.mxu0 0
        %938 = vmatprep.subr.bf16.mxu0 0
        %939 = vmatpush2.bf16.xpose.msra.mxu0 0
        %940 = vmatprep.subr.bf16.mxu0 0
        %941 = vmatpush2.bf16.xpose.msra.mxu0 0
        %942 = vmatprep.subr.bf16.mxu0 0
        %943 = vmatpush2.bf16.xpose.msra.mxu0 0
        %944 = vmatprep.subr.bf16.mxu0 0
        %945 = vmatpush2.bf16.xpose.msra.mxu0 0
        %946 = vmatprep.subr.bf16.mxu0 0
        %947 = vmatpush2.bf16.xpose.msra.mxu0 0
        %948 = vmatprep.subr.bf16.mxu0 0
        %949 = vmatpush2.bf16.xpose.msra.mxu0 0
        %950 = vmatprep.subr.bf16.mxu0 0
        %951 = vmatpush2.bf16.xpose.msra.mxu0 0
        %952 = vmatprep.mubr.bf16.mxu0 %v424
        %953 = vmatmul.mubr.bf16.gmra.mxu0 %v423
        %v954 = vpop.f32.mrf.mxu0
        %v955 = vadd.f32 %v914, %v954
        %v956 = vpop.f32.mrf.mxu0
        %v957 = vpop.f32.mrf.mxu0
        %v958 = vadd.f32 %v917, %v957
        %v959 = vpop.f32.mrf.mxu0
        %960 = vdwg.mxu0
        %961 = vmatprep.subr.bf16.mxu0 0
        %962 = vmatpush1.bf16.xpose.msra.mxu0 0
        %963 = vmatprep.subr.bf16.mxu0 0
        %964 = vmatpush1.bf16.xpose.msra.mxu0 0
        %965 = vmatprep.subr.bf16.mxu0 0
        %966 = vmatpush1.bf16.xpose.msra.mxu0 0
        %967 = vmatprep.subr.bf16.mxu0 0
        %968 = vmatpush1.bf16.xpose.msra.mxu0 0
        %969 = vmatprep.subr.bf16.mxu0 0
        %970 = vmatpush1.bf16.xpose.msra.mxu0 0
        %971 = vmatprep.subr.bf16.mxu0 0
        %972 = vmatpush1.bf16.xpose.msra.mxu0 0
        %973 = vmatprep.subr.bf16.mxu0 0
        %974 = vmatpush1.bf16.xpose.msra.mxu0 0
        %975 = vmatprep.subr.bf16.mxu0 %v870
        %976 = vmatpush1.bf16.xpose.msra.mxu0 %v869
        %977 = vmatprep.subr.bf16.mxu0 0
        %978 = vmatpush2.bf16.xpose.msra.mxu0 0
        %979 = vmatprep.subr.bf16.mxu0 0
        %980 = vmatpush2.bf16.xpose.msra.mxu0 0
        %981 = vmatprep.subr.bf16.mxu0 0
        %982 = vmatpush2.bf16.xpose.msra.mxu0 0
        %983 = vmatprep.subr.bf16.mxu0 0
        %984 = vmatpush2.bf16.xpose.msra.mxu0 0
        %985 = vmatprep.subr.bf16.mxu0 0
        %986 = vmatpush2.bf16.xpose.msra.mxu0 0
        %987 = vmatprep.subr.bf16.mxu0 0
        %988 = vmatpush2.bf16.xpose.msra.mxu0 0
        %989 = vmatprep.subr.bf16.mxu0 0
        %990 = vmatpush2.bf16.xpose.msra.mxu0 0
        %991 = vmatprep.subr.bf16.mxu0 0
        %992 = vmatpush2.bf16.xpose.msra.mxu0 0
        %993 = vmatprep.mubr.bf16.mxu0 %v426
        %994 = vmatmul.mubr.bf16.gmra.mxu0 %v425
        %v995 = vpop.f32.mrf.mxu0
        %v996 = vadd.f32 %v955, %v995
        %v997 = vpop.f32.mrf.mxu0
        %v998 = vpop.f32.mrf.mxu0
        %v999 = vadd.f32 %v958, %v998
        %v1000 = vpop.f32.mrf.mxu0
        %1001 = vdwg.mxu0
        %1002 = vmatprep.subr.bf16.mxu0 0
        %1003 = vmatpush1.bf16.xpose.msra.mxu0 0
        %1004 = vmatprep.subr.bf16.mxu0 0
        %1005 = vmatpush1.bf16.xpose.msra.mxu0 0
        %1006 = vmatprep.subr.bf16.mxu0 0
        %1007 = vmatpush1.bf16.xpose.msra.mxu0 0
        %1008 = vmatprep.subr.bf16.mxu0 0
        %1009 = vmatpush1.bf16.xpose.msra.mxu0 0
        %1010 = vmatprep.subr.bf16.mxu0 0
        %1011 = vmatpush1.bf16.xpose.msra.mxu0 0
        %1012 = vmatprep.subr.bf16.mxu0 0
        %1013 = vmatpush1.bf16.xpose.msra.mxu0 0
        %1014 = vmatprep.subr.bf16.mxu0 0
        %1015 = vmatpush1.bf16.xpose.msra.mxu0 0
        %1016 = vmatprep.subr.bf16.mxu0 %v872
        %1017 = vmatpush1.bf16.xpose.msra.mxu0 %v871
        %1018 = vmatprep.subr.bf16.mxu0 0
        %1019 = vmatpush2.bf16.xpose.msra.mxu0 0
        %1020 = vmatprep.subr.bf16.mxu0 0
        %1021 = vmatpush2.bf16.xpose.msra.mxu0 0
        %1022 = vmatprep.subr.bf16.mxu0 0
        %1023 = vmatpush2.bf16.xpose.msra.mxu0 0
        %1024 = vmatprep.subr.bf16.mxu0 0
        %1025 = vmatpush2.bf16.xpose.msra.mxu0 0
        %1026 = vmatprep.subr.bf16.mxu0 0
        %1027 = vmatpush2.bf16.xpose.msra.mxu0 0
        %1028 = vmatprep.subr.bf16.mxu0 0
        %1029 = vmatpush2.bf16.xpose.msra.mxu0 0
        %1030 = vmatprep.subr.bf16.mxu0 0
        %1031 = vmatpush2.bf16.xpose.msra.mxu0 0
        %1032 = vmatprep.subr.bf16.mxu0 0
        %1033 = vmatpush2.bf16.xpose.msra.mxu0 0
        %1034 = vmatprep.mubr.bf16.mxu0 %v428
        %1035 = vmatmul.mubr.bf16.gmra.mxu0 %v427
        %v1036 = vpop.f32.mrf.mxu0
        %v1037 = vadd.f32 %v996, %v1036
        %v1038 = vpop.f32.mrf.mxu0
        %v1039 = vpop.f32.mrf.mxu0
        %v1040 = vadd.f32 %v999, %v1039
        %v1041 = vpop.f32.mrf.mxu0
        %1042 = vdwg.mxu0
        %v1043 = vsel %vm340, %v1037, -1e+30
        %v1044 = vsel %vm341, %v1040, -1e+30
        %v1045 = vsel %vm603, %v1043, -inf
        %1046 = vmax.xlane.f32.xlu0 %v1045
        %v1047 = vpop.xlane.xlu0 %1046
        %v1048 = vsel %vm603, %v1044, -inf
        %1049 = vmax.xlane.f32.xlu0 %v1048
        %v1050 = vpop.xlane.xlu0 %1049
        %v1051 = vsub.f32 %v1043, %v1047
        %v1052 = vsub.f32 %v1044, %v1050
        %v1053 = vmul.f32 %v1051, 1.442695
        %v1054 = vpow.pop %v1053
        %v1055 = vmul.f32 %v1052, 1.442695
        %v1056 = vpow.pop %v1055
        %v1057 = vsel %vm603, %v1054, 0.0
        %1058 = vadd.xlane.f32.xlu0 %v1057
        %v1059 = vpop.xlane.xlu0 %1058
        %v1060 = vsel %vm603, %v1056, 0.0
        %1061 = vadd.xlane.f32.xlu0 %v1060
        %v1062 = vpop.xlane.xlu0 %1061
        %v1063 = vrcp.pop %v1059
        %v1064 = vmul.f32 %v1054, %v1063
        %v1065 = vrcp.pop %v1062
        %v1066 = vmul.f32 %v1056, %v1065
        %v1067 = vsub.f32 %v1064, %v372
        %v1068 = vsub.f32 %v1066, %v373
        %v1069 = vmul.f32 %v1067, 0.125
        %v1070 = vmul.f32 %v1068, 0.125
        %v1071 = vpack.c.bf16 %v1070, %v1069
        %1072 = vxpose.xlu0.c.b16.start [1/8] %v1071, 128
        %1073 = vxpose.xlu0.c.b16.cont [2/8] 0, 128
        %1074 = vxpose.xlu0.c.b16.cont [3/8] 0, 128
        %1075 = vxpose.xlu0.c.b16.cont [4/8] 0, 128
        %1076 = vxpose.xlu0.c.b16.cont [5/8] 0, 128
        %1077 = vxpose.xlu0.c.b16.cont [6/8] 0, 128
        %1078 = vxpose.xlu0.c.b16.cont [7/8] 0, 128
        %1079 = vxpose.xlu0.c.b16.end [8/8] 0, 128
        %v1080 = vpop.trf.xlu0
        %v1081 = vpop.trf.xlu0
        %v1082 = vpop.trf.xlu0
        %v1083 = vpop.trf.xlu0
        %v1084 = vpop.trf.xlu0
        %v1085 = vpop.trf.xlu0
        %v1086 = vpop.trf.xlu0
        %v1087 = vpop.trf.xlu0
        %v1089 = vsel %vm603, %v1080, 0
        %1091 = vmatprep.subr.bf16.mxu0 0
        %1092 = vmatpush1.bf16.msra.mxu0 0
        %1093 = vmatprep.subr.bf16.mxu0 0
        %1094 = vmatpush1.bf16.msra.mxu0 0
        %1095 = vmatprep.subr.bf16.mxu0 0
        %1096 = vmatpush1.bf16.msra.mxu0 0
        %1097 = vmatprep.subr.bf16.mxu0 0
        %1098 = vmatpush1.bf16.msra.mxu0 0
        %1099 = vmatprep.subr.bf16.mxu0 0
        %1100 = vmatpush1.bf16.msra.mxu0 0
        %1101 = vmatprep.subr.bf16.mxu0 0
        %1102 = vmatpush1.bf16.msra.mxu0 0
        %1103 = vmatprep.subr.bf16.mxu0 0
        %1104 = vmatpush1.bf16.msra.mxu0 0
        %1105 = vmatprep.subr.bf16.mxu0 %v422
        %1106 = vmatpush1.bf16.msra.mxu0 %v421
        %1107 = vmatprep.subr.bf16.mxu0 0
        %1108 = vmatpush2.bf16.msra.mxu0 0
        %1109 = vmatprep.subr.bf16.mxu0 0
        %1110 = vmatpush2.bf16.msra.mxu0 0
        %1111 = vmatprep.subr.bf16.mxu0 0
        %1112 = vmatpush2.bf16.msra.mxu0 0
        %1113 = vmatprep.subr.bf16.mxu0 0
        %1114 = vmatpush2.bf16.msra.mxu0 0
        %1115 = vmatprep.subr.bf16.mxu0 0
        %1116 = vmatpush2.bf16.msra.mxu0 0
        %1117 = vmatprep.subr.bf16.mxu0 0
        %1118 = vmatpush2.bf16.msra.mxu0 0
        %1119 = vmatprep.subr.bf16.mxu0 0
        %1120 = vmatpush2.bf16.msra.mxu0 0
        %1121 = vmatprep.subr.bf16.mxu0 0
        %1122 = vmatpush2.bf16.msra.mxu0 0
        %1123 = vmatprep.mubr.bf16.mxu0 0
        %1124 = vmatmul.mubr.bf16.gmra.mxu0 %v1089
        %v1125 = vpop.f32.mrf.mxu0
        %v1126 = vadd.f32 0.0, %v1125
        %v1127 = vpop.f32.mrf.mxu0
        %v1128 = vadd.f32 0.0, %v1127
        %v1129 = vpop.f32.mrf.mxu0
        %v1130 = vadd.f32 0.0, %v1129
        %v1131 = vpop.f32.mrf.mxu0
        %v1132 = vadd.f32 0.0, %v1131
        %1133 = vdwg.mxu0
        %1134 = vmatprep.subr.bf16.mxu0 0
        %1135 = vmatpush1.bf16.msra.mxu0 0
        %1136 = vmatprep.subr.bf16.mxu0 0
        %1137 = vmatpush1.bf16.msra.mxu0 0
        %1138 = vmatprep.subr.bf16.mxu0 0
        %1139 = vmatpush1.bf16.msra.mxu0 0
        %1140 = vmatprep.subr.bf16.mxu0 0
        %1141 = vmatpush1.bf16.msra.mxu0 0
        %1142 = vmatprep.subr.bf16.mxu0 0
        %1143 = vmatpush1.bf16.msra.mxu0 0
        %1144 = vmatprep.subr.bf16.mxu0 0
        %1145 = vmatpush1.bf16.msra.mxu0 0
        %1146 = vmatprep.subr.bf16.mxu0 0
        %1147 = vmatpush1.bf16.msra.mxu0 0
        %1148 = vmatprep.subr.bf16.mxu0 %v424
        %1149 = vmatpush1.bf16.msra.mxu0 %v423
        %1150 = vmatprep.subr.bf16.mxu0 0
        %1151 = vmatpush2.bf16.msra.mxu0 0
        %1152 = vmatprep.subr.bf16.mxu0 0
        %1153 = vmatpush2.bf16.msra.mxu0 0
        %1154 = vmatprep.subr.bf16.mxu0 0
        %1155 = vmatpush2.bf16.msra.mxu0 0
        %1156 = vmatprep.subr.bf16.mxu0 0
        %1157 = vmatpush2.bf16.msra.mxu0 0
        %1158 = vmatprep.subr.bf16.mxu0 0
        %1159 = vmatpush2.bf16.msra.mxu0 0
        %1160 = vmatprep.subr.bf16.mxu0 0
        %1161 = vmatpush2.bf16.msra.mxu0 0
        %1162 = vmatprep.subr.bf16.mxu0 0
        %1163 = vmatpush2.bf16.msra.mxu0 0
        %1164 = vmatprep.subr.bf16.mxu0 0
        %1165 = vmatpush2.bf16.msra.mxu0 0
        %1166 = vmatprep.mubr.bf16.mxu0 0
        %1167 = vmatmul.mubr.bf16.gmra.mxu0 %v1089
        %v1168 = vpop.f32.mrf.mxu0
        %v1169 = vadd.f32 0.0, %v1168
        %v1170 = vpop.f32.mrf.mxu0
        %v1171 = vadd.f32 0.0, %v1170
        %v1172 = vpop.f32.mrf.mxu0
        %v1173 = vadd.f32 0.0, %v1172
        %v1174 = vpop.f32.mrf.mxu0
        %v1175 = vadd.f32 0.0, %v1174
        %1176 = vdwg.mxu0
        %1177 = vmatprep.subr.bf16.mxu0 0
        %1178 = vmatpush1.bf16.msra.mxu0 0
        %1179 = vmatprep.subr.bf16.mxu0 0
        %1180 = vmatpush1.bf16.msra.mxu0 0
        %1181 = vmatprep.subr.bf16.mxu0 0
        %1182 = vmatpush1.bf16.msra.mxu0 0
        %1183 = vmatprep.subr.bf16.mxu0 0
        %1184 = vmatpush1.bf16.msra.mxu0 0
        %1185 = vmatprep.subr.bf16.mxu0 0
        %1186 = vmatpush1.bf16.msra.mxu0 0
        %1187 = vmatprep.subr.bf16.mxu0 0
        %1188 = vmatpush1.bf16.msra.mxu0 0
        %1189 = vmatprep.subr.bf16.mxu0 0
        %1190 = vmatpush1.bf16.msra.mxu0 0
        %1191 = vmatprep.subr.bf16.mxu0 %v426
        %1192 = vmatpush1.bf16.msra.mxu0 %v425
        %1193 = vmatprep.subr.bf16.mxu0 0
        %1194 = vmatpush2.bf16.msra.mxu0 0
        %1195 = vmatprep.subr.bf16.mxu0 0
        %1196 = vmatpush2.bf16.msra.mxu0 0
        %1197 = vmatprep.subr.bf16.mxu0 0
        %1198 = vmatpush2.bf16.msra.mxu0 0
        %1199 = vmatprep.subr.bf16.mxu0 0
        %1200 = vmatpush2.bf16.msra.mxu0 0
        %1201 = vmatprep.subr.bf16.mxu0 0
        %1202 = vmatpush2.bf16.msra.mxu0 0
        %1203 = vmatprep.subr.bf16.mxu0 0
        %1204 = vmatpush2.bf16.msra.mxu0 0
        %1205 = vmatprep.subr.bf16.mxu0 0
        %1206 = vmatpush2.bf16.msra.mxu0 0
        %1207 = vmatprep.subr.bf16.mxu0 0
        %1208 = vmatpush2.bf16.msra.mxu0 0
        %1209 = vmatprep.mubr.bf16.mxu0 0
        %1210 = vmatmul.mubr.bf16.gmra.mxu0 %v1089
        %v1211 = vpop.f32.mrf.mxu0
        %v1212 = vadd.f32 0.0, %v1211
        %v1213 = vpop.f32.mrf.mxu0
        %v1214 = vadd.f32 0.0, %v1213
        %v1215 = vpop.f32.mrf.mxu0
        %v1216 = vadd.f32 0.0, %v1215
        %v1217 = vpop.f32.mrf.mxu0
        %v1218 = vadd.f32 0.0, %v1217
        %1219 = vdwg.mxu0
        %1220 = vmatprep.subr.bf16.mxu0 0
        %1221 = vmatpush1.bf16.msra.mxu0 0
        %1222 = vmatprep.subr.bf16.mxu0 0
        %1223 = vmatpush1.bf16.msra.mxu0 0
        %1224 = vmatprep.subr.bf16.mxu0 0
        %1225 = vmatpush1.bf16.msra.mxu0 0
        %1226 = vmatprep.subr.bf16.mxu0 0
        %1227 = vmatpush1.bf16.msra.mxu0 0
        %1228 = vmatprep.subr.bf16.mxu0 0
        %1229 = vmatpush1.bf16.msra.mxu0 0
        %1230 = vmatprep.subr.bf16.mxu0 0
        %1231 = vmatpush1.bf16.msra.mxu0 0
        %1232 = vmatprep.subr.bf16.mxu0 0
        %1233 = vmatpush1.bf16.msra.mxu0 0
        %1234 = vmatprep.subr.bf16.mxu0 %v428
        %1235 = vmatpush1.bf16.msra.mxu0 %v427
        %1236 = vmatprep.subr.bf16.mxu0 0
        %1237 = vmatpush2.bf16.msra.mxu0 0
        %1238 = vmatprep.subr.bf16.mxu0 0
        %1239 = vmatpush2.bf16.msra.mxu0 0
        %1240 = vmatprep.subr.bf16.mxu0 0
        %1241 = vmatpush2.bf16.msra.mxu0 0
        %1242 = vmatprep.subr.bf16.mxu0 0
        %1243 = vmatpush2.bf16.msra.mxu0 0
        %1244 = vmatprep.subr.bf16.mxu0 0
        %1245 = vmatpush2.bf16.msra.mxu0 0
        %1246 = vmatprep.subr.bf16.mxu0 0
        %1247 = vmatpush2.bf16.msra.mxu0 0
        %1248 = vmatprep.subr.bf16.mxu0 0
        %1249 = vmatpush2.bf16.msra.mxu0 0
        %1250 = vmatprep.subr.bf16.mxu0 0
        %1251 = vmatpush2.bf16.msra.mxu0 0
        %1252 = vmatprep.mubr.bf16.mxu0 0
        %1253 = vmatmul.mubr.bf16.gmra.mxu0 %v1089
        %v1254 = vpop.f32.mrf.mxu0
        %v1255 = vadd.f32 0.0, %v1254
        %v1256 = vpop.f32.mrf.mxu0
        %v1257 = vadd.f32 0.0, %v1256
        %v1258 = vpop.f32.mrf.mxu0
        %v1259 = vadd.f32 0.0, %v1258
        %v1260 = vpop.f32.mrf.mxu0
        %v1261 = vadd.f32 0.0, %v1260
        %1262 = vdwg.mxu0
        %v1263 = vsel %vm603, %v1069, 0.0
        %v1264 = vsel %vm603, %v1070, 0.0
        %v1265 = vadd.f32 %v1263, %v1264
        %v1266 = vrot.slane %v1265, 4
        %v1267 = vadd.f32 %v1265, %v1266
        %v1268 = vrot.slane %v1267, 2
        %v1269 = vadd.f32 %v1267, %v1268
        %v1270 = vrot.slane %v1269, 1
        %v1271 = vadd.f32 %v1269, %v1270
        %v1272 = vmul.f32 %v1126, 0.1
        %v1273 = vmul.f32 %v1128, 0.1
        %v1274 = vmul.f32 %v1169, 0.1
        %v1275 = vmul.f32 %v1171, 0.1
        %v1276 = vmul.f32 %v1212, 0.1
        %v1277 = vmul.f32 %v1214, 0.1
        %v1278 = vmul.f32 %v1255, 0.1
        %v1279 = vmul.f32 %v1257, 0.1
        %v1280 = vmul.f32 %v1130, 0.1
        %v1281 = vmul.f32 %v1132, 0.1
        %v1282 = vmul.f32 %v1173, 0.1
        %v1283 = vmul.f32 %v1175, 0.1
        %v1284 = vmul.f32 %v1216, 0.1
        %v1285 = vmul.f32 %v1218, 0.1
        %v1286 = vmul.f32 %v1259, 0.1
        %v1287 = vmul.f32 %v1261, 0.1
        %v1288 = vsub.f32 %v847, %v1272
        %v1289 = vsub.f32 %v848, %v1273
        %v1290 = vsub.f32 %v849, %v1274
        %v1291 = vsub.f32 %v850, %v1275
        %v1292 = vsub.f32 %v851, %v1276
        %v1293 = vsub.f32 %v852, %v1277
        %v1294 = vsub.f32 %v853, %v1278
        %v1295 = vsub.f32 %v854, %v1279
        %v1296 = vsub.f32 %v855, %v1280
        %v1297 = vsub.f32 %v856, %v1281
        %v1298 = vsub.f32 %v857, %v1282
        %v1299 = vsub.f32 %v858, %v1283
        %v1300 = vsub.f32 %v859, %v1284
        %v1301 = vsub.f32 %v860, %v1285
        %v1302 = vsub.f32 %v861, %v1286
        %v1303 = vsub.f32 %v862, %v1287
        %v1304 = vmul.f32 %v1271, 0.1
        %v1305 = vsub.f32 %v864, %v1304
        %v1306 = vpack.c.bf16 %v1296, %v1288
        %v1307 = vpack.c.bf16 %v1297, %v1289
        %v1308 = vpack.c.bf16 %v1298, %v1290
        %v1309 = vpack.c.bf16 %v1299, %v1291
        %v1310 = vpack.c.bf16 %v1300, %v1292
        %v1311 = vpack.c.bf16 %v1301, %v1293
        %v1312 = vpack.c.bf16 %v1302, %v1294
        %v1313 = vpack.c.bf16 %v1303, %v1295
        %v1315 = vlaneseq
        %v1316 = vshrl.u32 %v1315, 7
        %v1317 = vsub.s32 0, %v1316
        %v1318 = vrot.slane %v1305, %v1317
        %1320 = vmatprep.subr.bf16.mxu0 0
        %1321 = vmatpush1.bf16.xpose.msra.mxu0 0
        %1322 = vmatprep.subr.bf16.mxu0 0
        %1323 = vmatpush1.bf16.xpose.msra.mxu0 0
        %1324 = vmatprep.subr.bf16.mxu0 0
        %1325 = vmatpush1.bf16.xpose.msra.mxu0 0
        %1326 = vmatprep.subr.bf16.mxu0 0
        %1327 = vmatpush1.bf16.xpose.msra.mxu0 0
        %1328 = vmatprep.subr.bf16.mxu0 0
        %1329 = vmatpush1.bf16.xpose.msra.mxu0 0
        %1330 = vmatprep.subr.bf16.mxu0 0
        %1331 = vmatpush1.bf16.xpose.msra.mxu0 0
        %1332 = vmatprep.subr.bf16.mxu0 0
        %1333 = vmatpush1.bf16.xpose.msra.mxu0 0
        %1334 = vmatprep.subr.bf16.mxu0 %v1307
        %1335 = vmatpush1.bf16.xpose.msra.mxu0 %v1306
        %1336 = vmatprep.subr.bf16.mxu0 0
        %1337 = vmatpush2.bf16.xpose.msra.mxu0 0
        %1338 = vmatprep.subr.bf16.mxu0 0
        %1339 = vmatpush2.bf16.xpose.msra.mxu0 0
        %1340 = vmatprep.subr.bf16.mxu0 0
        %1341 = vmatpush2.bf16.xpose.msra.mxu0 0
        %1342 = vmatprep.subr.bf16.mxu0 0
        %1343 = vmatpush2.bf16.xpose.msra.mxu0 0
        %1344 = vmatprep.subr.bf16.mxu0 0
        %1345 = vmatpush2.bf16.xpose.msra.mxu0 0
        %1346 = vmatprep.subr.bf16.mxu0 0
        %1347 = vmatpush2.bf16.xpose.msra.mxu0 0
        %1348 = vmatprep.subr.bf16.mxu0 0
        %1349 = vmatpush2.bf16.xpose.msra.mxu0 0
        %1350 = vmatprep.subr.bf16.mxu0 0
        %1351 = vmatpush2.bf16.xpose.msra.mxu0 0
        %1352 = vmatprep.mubr.bf16.mxu0 %v422
        %1353 = vmatmul.mubr.bf16.gmra.mxu0 %v421
        %v1354 = vpop.f32.mrf.mxu0
        %v1355 = vadd.f32 %v1318, %v1354
        %v1356 = vpop.f32.mrf.mxu0
        %v1357 = vpop.f32.mrf.mxu0
        %v1358 = vadd.f32 %v1318, %v1357
        %v1359 = vpop.f32.mrf.mxu0
        %1360 = vdwg.mxu0
        %1361 = vmatprep.subr.bf16.mxu0 0
        %1362 = vmatpush1.bf16.xpose.msra.mxu0 0
        %1363 = vmatprep.subr.bf16.mxu0 0
        %1364 = vmatpush1.bf16.xpose.msra.mxu0 0
        %1365 = vmatprep.subr.bf16.mxu0 0
        %1366 = vmatpush1.bf16.xpose.msra.mxu0 0
        %1367 = vmatprep.subr.bf16.mxu0 0
        %1368 = vmatpush1.bf16.xpose.msra.mxu0 0
        %1369 = vmatprep.subr.bf16.mxu0 0
        %1370 = vmatpush1.bf16.xpose.msra.mxu0 0
        %1371 = vmatprep.subr.bf16.mxu0 0
        %1372 = vmatpush1.bf16.xpose.msra.mxu0 0
        %1373 = vmatprep.subr.bf16.mxu0 0
        %1374 = vmatpush1.bf16.xpose.msra.mxu0 0
        %1375 = vmatprep.subr.bf16.mxu0 %v1309
        %1376 = vmatpush1.bf16.xpose.msra.mxu0 %v1308
        %1377 = vmatprep.subr.bf16.mxu0 0
        %1378 = vmatpush2.bf16.xpose.msra.mxu0 0
        %1379 = vmatprep.subr.bf16.mxu0 0
        %1380 = vmatpush2.bf16.xpose.msra.mxu0 0
        %1381 = vmatprep.subr.bf16.mxu0 0
        %1382 = vmatpush2.bf16.xpose.msra.mxu0 0
        %1383 = vmatprep.subr.bf16.mxu0 0
        %1384 = vmatpush2.bf16.xpose.msra.mxu0 0
        %1385 = vmatprep.subr.bf16.mxu0 0
        %1386 = vmatpush2.bf16.xpose.msra.mxu0 0
        %1387 = vmatprep.subr.bf16.mxu0 0
        %1388 = vmatpush2.bf16.xpose.msra.mxu0 0
        %1389 = vmatprep.subr.bf16.mxu0 0
        %1390 = vmatpush2.bf16.xpose.msra.mxu0 0
        %1391 = vmatprep.subr.bf16.mxu0 0
        %1392 = vmatpush2.bf16.xpose.msra.mxu0 0
        %1393 = vmatprep.mubr.bf16.mxu0 %v424
        %1394 = vmatmul.mubr.bf16.gmra.mxu0 %v423
        %v1395 = vpop.f32.mrf.mxu0
        %v1396 = vadd.f32 %v1355, %v1395
        %v1397 = vpop.f32.mrf.mxu0
        %v1398 = vpop.f32.mrf.mxu0
        %v1399 = vadd.f32 %v1358, %v1398
        %v1400 = vpop.f32.mrf.mxu0
        %1401 = vdwg.mxu0
        %1402 = vmatprep.subr.bf16.mxu0 0
        %1403 = vmatpush1.bf16.xpose.msra.mxu0 0
        %1404 = vmatprep.subr.bf16.mxu0 0
        %1405 = vmatpush1.bf16.xpose.msra.mxu0 0
        %1406 = vmatprep.subr.bf16.mxu0 0
        %1407 = vmatpush1.bf16.xpose.msra.mxu0 0
        %1408 = vmatprep.subr.bf16.mxu0 0
        %1409 = vmatpush1.bf16.xpose.msra.mxu0 0
        %1410 = vmatprep.subr.bf16.mxu0 0
        %1411 = vmatpush1.bf16.xpose.msra.mxu0 0
        %1412 = vmatprep.subr.bf16.mxu0 0
        %1413 = vmatpush1.bf16.xpose.msra.mxu0 0
        %1414 = vmatprep.subr.bf16.mxu0 0
        %1415 = vmatpush1.bf16.xpose.msra.mxu0 0
        %1416 = vmatprep.subr.bf16.mxu0 %v1311
        %1417 = vmatpush1.bf16.xpose.msra.mxu0 %v1310
        %1418 = vmatprep.subr.bf16.mxu0 0
        %1419 = vmatpush2.bf16.xpose.msra.mxu0 0
        %1420 = vmatprep.subr.bf16.mxu0 0
        %1421 = vmatpush2.bf16.xpose.msra.mxu0 0
        %1422 = vmatprep.subr.bf16.mxu0 0
        %1423 = vmatpush2.bf16.xpose.msra.mxu0 0
        %1424 = vmatprep.subr.bf16.mxu0 0
        %1425 = vmatpush2.bf16.xpose.msra.mxu0 0
        %1426 = vmatprep.subr.bf16.mxu0 0
        %1427 = vmatpush2.bf16.xpose.msra.mxu0 0
        %1428 = vmatprep.subr.bf16.mxu0 0
        %1429 = vmatpush2.bf16.xpose.msra.mxu0 0
        %1430 = vmatprep.subr.bf16.mxu0 0
        %1431 = vmatpush2.bf16.xpose.msra.mxu0 0
        %1432 = vmatprep.subr.bf16.mxu0 0
        %1433 = vmatpush2.bf16.xpose.msra.mxu0 0
        %1434 = vmatprep.mubr.bf16.mxu0 %v426
        %1435 = vmatmul.mubr.bf16.gmra.mxu0 %v425
        %v1436 = vpop.f32.mrf.mxu0
        %v1437 = vadd.f32 %v1396, %v1436
        %v1438 = vpop.f32.mrf.mxu0
        %v1439 = vpop.f32.mrf.mxu0
        %v1440 = vadd.f32 %v1399, %v1439
        %v1441 = vpop.f32.mrf.mxu0
        %1442 = vdwg.mxu0
        %1443 = vmatprep.subr.bf16.mxu0 0
        %1444 = vmatpush1.bf16.xpose.msra.mxu0 0
        %1445 = vmatprep.subr.bf16.mxu0 0
        %1446 = vmatpush1.bf16.xpose.msra.mxu0 0
        %1447 = vmatprep.subr.bf16.mxu0 0
        %1448 = vmatpush1.bf16.xpose.msra.mxu0 0
        %1449 = vmatprep.subr.bf16.mxu0 0
        %1450 = vmatpush1.bf16.xpose.msra.mxu0 0
        %1451 = vmatprep.subr.bf16.mxu0 0
        %1452 = vmatpush1.bf16.xpose.msra.mxu0 0
        %1453 = vmatprep.subr.bf16.mxu0 0
        %1454 = vmatpush1.bf16.xpose.msra.mxu0 0
        %1455 = vmatprep.subr.bf16.mxu0 0
        %1456 = vmatpush1.bf16.xpose.msra.mxu0 0
        %1457 = vmatprep.subr.bf16.mxu0 %v1313
        %1458 = vmatpush1.bf16.xpose.msra.mxu0 %v1312
        %1459 = vmatprep.subr.bf16.mxu0 0
        %1460 = vmatpush2.bf16.xpose.msra.mxu0 0
        %1461 = vmatprep.subr.bf16.mxu0 0
        %1462 = vmatpush2.bf16.xpose.msra.mxu0 0
        %1463 = vmatprep.subr.bf16.mxu0 0
        %1464 = vmatpush2.bf16.xpose.msra.mxu0 0
        %1465 = vmatprep.subr.bf16.mxu0 0
        %1466 = vmatpush2.bf16.xpose.msra.mxu0 0
        %1467 = vmatprep.subr.bf16.mxu0 0
        %1468 = vmatpush2.bf16.xpose.msra.mxu0 0
        %1469 = vmatprep.subr.bf16.mxu0 0
        %1470 = vmatpush2.bf16.xpose.msra.mxu0 0
        %1471 = vmatprep.subr.bf16.mxu0 0
        %1472 = vmatpush2.bf16.xpose.msra.mxu0 0
        %1473 = vmatprep.subr.bf16.mxu0 0
        %1474 = vmatpush2.bf16.xpose.msra.mxu0 0
        %1475 = vmatprep.mubr.bf16.mxu0 %v428
        %1476 = vmatmul.mubr.bf16.gmra.mxu0 %v427
        %v1477 = vpop.f32.mrf.mxu0
        %v1478 = vadd.f32 %v1437, %v1477
        %v1479 = vpop.f32.mrf.mxu0
        %v1480 = vpop.f32.mrf.mxu0
        %v1481 = vadd.f32 %v1440, %v1480
        %v1482 = vpop.f32.mrf.mxu0
        %1483 = vdwg.mxu0
        %v1484 = vsel %vm340, %v1478, -1e+30
        %v1485 = vsel %vm341, %v1481, -1e+30
        %v1486 = vsel %vm603, %v1484, -inf
        %1487 = vmax.xlane.f32.xlu0 %v1486
        %v1488 = vpop.xlane.xlu0 %1487
        %v1489 = vsel %vm603, %v1485, -inf
        %1490 = vmax.xlane.f32.xlu0 %v1489
        %v1491 = vpop.xlane.xlu0 %1490
        %v1492 = vsub.f32 %v1484, %v1488
        %v1493 = vsub.f32 %v1485, %v1491
        %v1494 = vmul.f32 %v1492, 1.442695
        %v1495 = vpow.pop %v1494
        %v1496 = vmul.f32 %v1493, 1.442695
        %v1497 = vpow.pop %v1496
        %v1498 = vsel %vm603, %v1495, 0.0
        %1499 = vadd.xlane.f32.xlu0 %v1498
        %v1500 = vpop.xlane.xlu0 %1499
        %v1501 = vsel %vm603, %v1497, 0.0
        %1502 = vadd.xlane.f32.xlu0 %v1501
        %v1503 = vpop.xlane.xlu0 %1502
        %v1504 = vrcp.pop %v1500
        %v1505 = vmul.f32 %v1495, %v1504
        %v1506 = vrcp.pop %v1503
        %v1507 = vmul.f32 %v1497, %v1506
        %v1508 = vsub.f32 %v1505, %v372
        %v1509 = vsub.f32 %v1507, %v373
        %v1510 = vmul.f32 %v1508, 0.125
        %v1511 = vmul.f32 %v1509, 0.125
        %v1512 = vpack.c.bf16 %v1511, %v1510
        %1513 = vxpose.xlu0.c.b16.start [1/8] %v1512, 128
        %1514 = vxpose.xlu0.c.b16.cont [2/8] 0, 128
        %1515 = vxpose.xlu0.c.b16.cont [3/8] 0, 128
        %1516 = vxpose.xlu0.c.b16.cont [4/8] 0, 128
        %1517 = vxpose.xlu0.c.b16.cont [5/8] 0, 128
        %1518 = vxpose.xlu0.c.b16.cont [6/8] 0, 128
        %1519 = vxpose.xlu0.c.b16.cont [7/8] 0, 128
        %1520 = vxpose.xlu0.c.b16.end [8/8] 0, 128
        %v1521 = vpop.trf.xlu0
        %v1522 = vpop.trf.xlu0
        %v1523 = vpop.trf.xlu0
        %v1524 = vpop.trf.xlu0
        %v1525 = vpop.trf.xlu0
        %v1526 = vpop.trf.xlu0
        %v1527 = vpop.trf.xlu0
        %v1528 = vpop.trf.xlu0
        %v1530 = vsel %vm603, %v1521, 0
        %1532 = vmatprep.subr.bf16.mxu0 0
        %1533 = vmatpush1.bf16.msra.mxu0 0
        %1534 = vmatprep.subr.bf16.mxu0 0
        %1535 = vmatpush1.bf16.msra.mxu0 0
        %1536 = vmatprep.subr.bf16.mxu0 0
        %1537 = vmatpush1.bf16.msra.mxu0 0
        %1538 = vmatprep.subr.bf16.mxu0 0
        %1539 = vmatpush1.bf16.msra.mxu0 0
        %1540 = vmatprep.subr.bf16.mxu0 0
        %1541 = vmatpush1.bf16.msra.mxu0 0
        %1542 = vmatprep.subr.bf16.mxu0 0
        %1543 = vmatpush1.bf16.msra.mxu0 0
        %1544 = vmatprep.subr.bf16.mxu0 0
        %1545 = vmatpush1.bf16.msra.mxu0 0
        %1546 = vmatprep.subr.bf16.mxu0 %v422
        %1547 = vmatpush1.bf16.msra.mxu0 %v421
        %1548 = vmatprep.subr.bf16.mxu0 0
        %1549 = vmatpush2.bf16.msra.mxu0 0
        %1550 = vmatprep.subr.bf16.mxu0 0
        %1551 = vmatpush2.bf16.msra.mxu0 0
        %1552 = vmatprep.subr.bf16.mxu0 0
        %1553 = vmatpush2.bf16.msra.mxu0 0
        %1554 = vmatprep.subr.bf16.mxu0 0
        %1555 = vmatpush2.bf16.msra.mxu0 0
        %1556 = vmatprep.subr.bf16.mxu0 0
        %1557 = vmatpush2.bf16.msra.mxu0 0
        %1558 = vmatprep.subr.bf16.mxu0 0
        %1559 = vmatpush2.bf16.msra.mxu0 0
        %1560 = vmatprep.subr.bf16.mxu0 0
        %1561 = vmatpush2.bf16.msra.mxu0 0
        %1562 = vmatprep.subr.bf16.mxu0 0
        %1563 = vmatpush2.bf16.msra.mxu0 0
        %1564 = vmatprep.mubr.bf16.mxu0 0
        %1565 = vmatmul.mubr.bf16.gmra.mxu0 %v1530
        %v1566 = vpop.f32.mrf.mxu0
        %v1567 = vadd.f32 0.0, %v1566
        %v1568 = vpop.f32.mrf.mxu0
        %v1569 = vadd.f32 0.0, %v1568
        %v1570 = vpop.f32.mrf.mxu0
        %v1571 = vadd.f32 0.0, %v1570
        %v1572 = vpop.f32.mrf.mxu0
        %v1573 = vadd.f32 0.0, %v1572
        %1574 = vdwg.mxu0
        %1575 = vmatprep.subr.bf16.mxu0 0
        %1576 = vmatpush1.bf16.msra.mxu0 0
        %1577 = vmatprep.subr.bf16.mxu0 0
        %1578 = vmatpush1.bf16.msra.mxu0 0
        %1579 = vmatprep.subr.bf16.mxu0 0
        %1580 = vmatpush1.bf16.msra.mxu0 0
        %1581 = vmatprep.subr.bf16.mxu0 0
        %1582 = vmatpush1.bf16.msra.mxu0 0
        %1583 = vmatprep.subr.bf16.mxu0 0
        %1584 = vmatpush1.bf16.msra.mxu0 0
        %1585 = vmatprep.subr.bf16.mxu0 0
        %1586 = vmatpush1.bf16.msra.mxu0 0
        %1587 = vmatprep.subr.bf16.mxu0 0
        %1588 = vmatpush1.bf16.msra.mxu0 0
        %1589 = vmatprep.subr.bf16.mxu0 %v424
        %1590 = vmatpush1.bf16.msra.mxu0 %v423
        %1591 = vmatprep.subr.bf16.mxu0 0
        %1592 = vmatpush2.bf16.msra.mxu0 0
        %1593 = vmatprep.subr.bf16.mxu0 0
        %1594 = vmatpush2.bf16.msra.mxu0 0
        %1595 = vmatprep.subr.bf16.mxu0 0
        %1596 = vmatpush2.bf16.msra.mxu0 0
        %1597 = vmatprep.subr.bf16.mxu0 0
        %1598 = vmatpush2.bf16.msra.mxu0 0
        %1599 = vmatprep.subr.bf16.mxu0 0
        %1600 = vmatpush2.bf16.msra.mxu0 0
        %1601 = vmatprep.subr.bf16.mxu0 0
        %1602 = vmatpush2.bf16.msra.mxu0 0
        %1603 = vmatprep.subr.bf16.mxu0 0
        %1604 = vmatpush2.bf16.msra.mxu0 0
        %1605 = vmatprep.subr.bf16.mxu0 0
        %1606 = vmatpush2.bf16.msra.mxu0 0
        %1607 = vmatprep.mubr.bf16.mxu0 0
        %1608 = vmatmul.mubr.bf16.gmra.mxu0 %v1530
        %v1609 = vpop.f32.mrf.mxu0
        %v1610 = vadd.f32 0.0, %v1609
        %v1611 = vpop.f32.mrf.mxu0
        %v1612 = vadd.f32 0.0, %v1611
        %v1613 = vpop.f32.mrf.mxu0
        %v1614 = vadd.f32 0.0, %v1613
        %v1615 = vpop.f32.mrf.mxu0
        %v1616 = vadd.f32 0.0, %v1615
        %1617 = vdwg.mxu0
        %1618 = vmatprep.subr.bf16.mxu0 0
        %1619 = vmatpush1.bf16.msra.mxu0 0
        %1620 = vmatprep.subr.bf16.mxu0 0
        %1621 = vmatpush1.bf16.msra.mxu0 0
        %1622 = vmatprep.subr.bf16.mxu0 0
        %1623 = vmatpush1.bf16.msra.mxu0 0
        %1624 = vmatprep.subr.bf16.mxu0 0
        %1625 = vmatpush1.bf16.msra.mxu0 0
        %1626 = vmatprep.subr.bf16.mxu0 0
        %1627 = vmatpush1.bf16.msra.mxu0 0
        %1628 = vmatprep.subr.bf16.mxu0 0
        %1629 = vmatpush1.bf16.msra.mxu0 0
        %1630 = vmatprep.subr.bf16.mxu0 0
        %1631 = vmatpush1.bf16.msra.mxu0 0
        %1632 = vmatprep.subr.bf16.mxu0 %v426
        %1633 = vmatpush1.bf16.msra.mxu0 %v425
        %1634 = vmatprep.subr.bf16.mxu0 0
        %1635 = vmatpush2.bf16.msra.mxu0 0
        %1636 = vmatprep.subr.bf16.mxu0 0
        %1637 = vmatpush2.bf16.msra.mxu0 0
        %1638 = vmatprep.subr.bf16.mxu0 0
        %1639 = vmatpush2.bf16.msra.mxu0 0
        %1640 = vmatprep.subr.bf16.mxu0 0
        %1641 = vmatpush2.bf16.msra.mxu0 0
        %1642 = vmatprep.subr.bf16.mxu0 0
        %1643 = vmatpush2.bf16.msra.mxu0 0
        %1644 = vmatprep.subr.bf16.mxu0 0
        %1645 = vmatpush2.bf16.msra.mxu0 0
        %1646 = vmatprep.subr.bf16.mxu0 0
        %1647 = vmatpush2.bf16.msra.mxu0 0
        %1648 = vmatprep.subr.bf16.mxu0 0
        %1649 = vmatpush2.bf16.msra.mxu0 0
        %1650 = vmatprep.mubr.bf16.mxu0 0
        %1651 = vmatmul.mubr.bf16.gmra.mxu0 %v1530
        %v1652 = vpop.f32.mrf.mxu0
        %v1653 = vadd.f32 0.0, %v1652
        %v1654 = vpop.f32.mrf.mxu0
        %v1655 = vadd.f32 0.0, %v1654
        %v1656 = vpop.f32.mrf.mxu0
        %v1657 = vadd.f32 0.0, %v1656
        %v1658 = vpop.f32.mrf.mxu0
        %v1659 = vadd.f32 0.0, %v1658
        %1660 = vdwg.mxu0
        %1661 = vmatprep.subr.bf16.mxu0 0
        %1662 = vmatpush1.bf16.msra.mxu0 0
        %1663 = vmatprep.subr.bf16.mxu0 0
        %1664 = vmatpush1.bf16.msra.mxu0 0
        %1665 = vmatprep.subr.bf16.mxu0 0
        %1666 = vmatpush1.bf16.msra.mxu0 0
        %1667 = vmatprep.subr.bf16.mxu0 0
        %1668 = vmatpush1.bf16.msra.mxu0 0
        %1669 = vmatprep.subr.bf16.mxu0 0
        %1670 = vmatpush1.bf16.msra.mxu0 0
        %1671 = vmatprep.subr.bf16.mxu0 0
        %1672 = vmatpush1.bf16.msra.mxu0 0
        %1673 = vmatprep.subr.bf16.mxu0 0
        %1674 = vmatpush1.bf16.msra.mxu0 0
        %1675 = vmatprep.subr.bf16.mxu0 %v428
        %1676 = vmatpush1.bf16.msra.mxu0 %v427
        %1677 = vmatprep.subr.bf16.mxu0 0
        %1678 = vmatpush2.bf16.msra.mxu0 0
        %1679 = vmatprep.subr.bf16.mxu0 0
        %1680 = vmatpush2.bf16.msra.mxu0 0
        %1681 = vmatprep.subr.bf16.mxu0 0
        %1682 = vmatpush2.bf16.msra.mxu0 0
        %1683 = vmatprep.subr.bf16.mxu0 0
        %1684 = vmatpush2.bf16.msra.mxu0 0
        %1685 = vmatprep.subr.bf16.mxu0 0
        %1686 = vmatpush2.bf16.msra.mxu0 0
        %1687 = vmatprep.subr.bf16.mxu0 0
        %1688 = vmatpush2.bf16.msra.mxu0 0
        %1689 = vmatprep.subr.bf16.mxu0 0
        %1690 = vmatpush2.bf16.msra.mxu0 0
        %1691 = vmatprep.subr.bf16.mxu0 0
        %1692 = vmatpush2.bf16.msra.mxu0 0
        %1693 = vmatprep.mubr.bf16.mxu0 0
        %1694 = vmatmul.mubr.bf16.gmra.mxu0 %v1530
        %v1695 = vpop.f32.mrf.mxu0
        %v1696 = vadd.f32 0.0, %v1695
        %v1697 = vpop.f32.mrf.mxu0
        %v1698 = vadd.f32 0.0, %v1697
        %v1699 = vpop.f32.mrf.mxu0
        %v1700 = vadd.f32 0.0, %v1699
        %v1701 = vpop.f32.mrf.mxu0
        %v1702 = vadd.f32 0.0, %v1701
        %1703 = vdwg.mxu0
        %v1704 = vsel %vm603, %v1510, 0.0
        %v1705 = vsel %vm603, %v1511, 0.0
        %v1706 = vadd.f32 %v1704, %v1705
        %v1707 = vrot.slane %v1706, 4
        %v1708 = vadd.f32 %v1706, %v1707
        %v1709 = vrot.slane %v1708, 2
        %v1710 = vadd.f32 %v1708, %v1709
        %v1711 = vrot.slane %v1710, 1
        %v1712 = vadd.f32 %v1710, %v1711
        %v1713 = vmul.f32 %v1567, 0.1
        %v1714 = vmul.f32 %v1569, 0.1
        %v1715 = vmul.f32 %v1610, 0.1
        %v1716 = vmul.f32 %v1612, 0.1
        %v1717 = vmul.f32 %v1653, 0.1
        %v1718 = vmul.f32 %v1655, 0.1
        %v1719 = vmul.f32 %v1696, 0.1
        %v1720 = vmul.f32 %v1698, 0.1
        %v1721 = vmul.f32 %v1571, 0.1
        %v1722 = vmul.f32 %v1573, 0.1
        %v1723 = vmul.f32 %v1614, 0.1
        %v1724 = vmul.f32 %v1616, 0.1
        %v1725 = vmul.f32 %v1657, 0.1
        %v1726 = vmul.f32 %v1659, 0.1
        %v1727 = vmul.f32 %v1700, 0.1
        %v1728 = vmul.f32 %v1702, 0.1
        %v1729 = vsub.f32 %v1288, %v1713
        %v1730 = vsub.f32 %v1289, %v1714
        %v1731 = vsub.f32 %v1290, %v1715
        %v1732 = vsub.f32 %v1291, %v1716
        %v1733 = vsub.f32 %v1292, %v1717
        %v1734 = vsub.f32 %v1293, %v1718
        %v1735 = vsub.f32 %v1294, %v1719
        %v1736 = vsub.f32 %v1295, %v1720
        %v1737 = vsub.f32 %v1296, %v1721
        %v1738 = vsub.f32 %v1297, %v1722
        %v1739 = vsub.f32 %v1298, %v1723
        %v1740 = vsub.f32 %v1299, %v1724
        %v1741 = vsub.f32 %v1300, %v1725
        %v1742 = vsub.f32 %v1301, %v1726
        %v1743 = vsub.f32 %v1302, %v1727
        %v1744 = vsub.f32 %v1303, %v1728
        %v1745 = vmul.f32 %v1712, 0.1
        %v1746 = vsub.f32 %v1305, %v1745
        %v1747 = vpack.c.bf16 %v1737, %v1729
        %v1748 = vpack.c.bf16 %v1738, %v1730
        %v1749 = vpack.c.bf16 %v1739, %v1731
        %v1750 = vpack.c.bf16 %v1740, %v1732
        %v1751 = vpack.c.bf16 %v1741, %v1733
        %v1752 = vpack.c.bf16 %v1742, %v1734
        %v1753 = vpack.c.bf16 %v1743, %v1735
        %v1754 = vpack.c.bf16 %v1744, %v1736
        %v1756 = vlaneseq
        %v1757 = vshrl.u32 %v1756, 7
        %v1758 = vsub.s32 0, %v1757
        %v1759 = vrot.slane %v1746, %v1758
        %1761 = vmatprep.subr.bf16.mxu0 0
        %1762 = vmatpush1.bf16.xpose.msra.mxu0 0
        %1763 = vmatprep.subr.bf16.mxu0 0
        %1764 = vmatpush1.bf16.xpose.msra.mxu0 0
        %1765 = vmatprep.subr.bf16.mxu0 0
        %1766 = vmatpush1.bf16.xpose.msra.mxu0 0
        %1767 = vmatprep.subr.bf16.mxu0 0
        %1768 = vmatpush1.bf16.xpose.msra.mxu0 0
        %1769 = vmatprep.subr.bf16.mxu0 0
        %1770 = vmatpush1.bf16.xpose.msra.mxu0 0
        %1771 = vmatprep.subr.bf16.mxu0 0
        %1772 = vmatpush1.bf16.xpose.msra.mxu0 0
        %1773 = vmatprep.subr.bf16.mxu0 0
        %1774 = vmatpush1.bf16.xpose.msra.mxu0 0
        %1775 = vmatprep.subr.bf16.mxu0 %v1748
        %1776 = vmatpush1.bf16.xpose.msra.mxu0 %v1747
        %1777 = vmatprep.subr.bf16.mxu0 0
        %1778 = vmatpush2.bf16.xpose.msra.mxu0 0
        %1779 = vmatprep.subr.bf16.mxu0 0
        %1780 = vmatpush2.bf16.xpose.msra.mxu0 0
        %1781 = vmatprep.subr.bf16.mxu0 0
        %1782 = vmatpush2.bf16.xpose.msra.mxu0 0
        %1783 = vmatprep.subr.bf16.mxu0 0
        %1784 = vmatpush2.bf16.xpose.msra.mxu0 0
        %1785 = vmatprep.subr.bf16.mxu0 0
        %1786 = vmatpush2.bf16.xpose.msra.mxu0 0
        %1787 = vmatprep.subr.bf16.mxu0 0
        %1788 = vmatpush2.bf16.xpose.msra.mxu0 0
        %1789 = vmatprep.subr.bf16.mxu0 0
        %1790 = vmatpush2.bf16.xpose.msra.mxu0 0
        %1791 = vmatprep.subr.bf16.mxu0 0
        %1792 = vmatpush2.bf16.xpose.msra.mxu0 0
        %1793 = vmatprep.mubr.bf16.mxu0 %v422
        %1794 = vmatmul.mubr.bf16.gmra.mxu0 %v421
        %v1795 = vpop.f32.mrf.mxu0
        %v1796 = vadd.f32 %v1759, %v1795
        %v1797 = vpop.f32.mrf.mxu0
        %v1798 = vpop.f32.mrf.mxu0
        %v1799 = vadd.f32 %v1759, %v1798
        %v1800 = vpop.f32.mrf.mxu0
        %1801 = vdwg.mxu0
        %1802 = vmatprep.subr.bf16.mxu0 0
        %1803 = vmatpush1.bf16.xpose.msra.mxu0 0
        %1804 = vmatprep.subr.bf16.mxu0 0
        %1805 = vmatpush1.bf16.xpose.msra.mxu0 0
        %1806 = vmatprep.subr.bf16.mxu0 0
        %1807 = vmatpush1.bf16.xpose.msra.mxu0 0
        %1808 = vmatprep.subr.bf16.mxu0 0
        %1809 = vmatpush1.bf16.xpose.msra.mxu0 0
        %1810 = vmatprep.subr.bf16.mxu0 0
        %1811 = vmatpush1.bf16.xpose.msra.mxu0 0
        %1812 = vmatprep.subr.bf16.mxu0 0
        %1813 = vmatpush1.bf16.xpose.msra.mxu0 0
        %1814 = vmatprep.subr.bf16.mxu0 0
        %1815 = vmatpush1.bf16.xpose.msra.mxu0 0
        %1816 = vmatprep.subr.bf16.mxu0 %v1750
        %1817 = vmatpush1.bf16.xpose.msra.mxu0 %v1749
        %1818 = vmatprep.subr.bf16.mxu0 0
        %1819 = vmatpush2.bf16.xpose.msra.mxu0 0
        %1820 = vmatprep.subr.bf16.mxu0 0
        %1821 = vmatpush2.bf16.xpose.msra.mxu0 0
        %1822 = vmatprep.subr.bf16.mxu0 0
        %1823 = vmatpush2.bf16.xpose.msra.mxu0 0
        %1824 = vmatprep.subr.bf16.mxu0 0
        %1825 = vmatpush2.bf16.xpose.msra.mxu0 0
        %1826 = vmatprep.subr.bf16.mxu0 0
        %1827 = vmatpush2.bf16.xpose.msra.mxu0 0
        %1828 = vmatprep.subr.bf16.mxu0 0
        %1829 = vmatpush2.bf16.xpose.msra.mxu0 0
        %1830 = vmatprep.subr.bf16.mxu0 0
        %1831 = vmatpush2.bf16.xpose.msra.mxu0 0
        %1832 = vmatprep.subr.bf16.mxu0 0
        %1833 = vmatpush2.bf16.xpose.msra.mxu0 0
        %1834 = vmatprep.mubr.bf16.mxu0 %v424
        %1835 = vmatmul.mubr.bf16.gmra.mxu0 %v423
        %v1836 = vpop.f32.mrf.mxu0
        %v1837 = vadd.f32 %v1796, %v1836
        %v1838 = vpop.f32.mrf.mxu0
        %v1839 = vpop.f32.mrf.mxu0
        %v1840 = vadd.f32 %v1799, %v1839
        %v1841 = vpop.f32.mrf.mxu0
        %1842 = vdwg.mxu0
        %1843 = vmatprep.subr.bf16.mxu0 0
        %1844 = vmatpush1.bf16.xpose.msra.mxu0 0
        %1845 = vmatprep.subr.bf16.mxu0 0
        %1846 = vmatpush1.bf16.xpose.msra.mxu0 0
        %1847 = vmatprep.subr.bf16.mxu0 0
        %1848 = vmatpush1.bf16.xpose.msra.mxu0 0
        %1849 = vmatprep.subr.bf16.mxu0 0
        %1850 = vmatpush1.bf16.xpose.msra.mxu0 0
        %1851 = vmatprep.subr.bf16.mxu0 0
        %1852 = vmatpush1.bf16.xpose.msra.mxu0 0
        %1853 = vmatprep.subr.bf16.mxu0 0
        %1854 = vmatpush1.bf16.xpose.msra.mxu0 0
        %1855 = vmatprep.subr.bf16.mxu0 0
        %1856 = vmatpush1.bf16.xpose.msra.mxu0 0
        %1857 = vmatprep.subr.bf16.mxu0 %v1752
        %1858 = vmatpush1.bf16.xpose.msra.mxu0 %v1751
        %1859 = vmatprep.subr.bf16.mxu0 0
        %1860 = vmatpush2.bf16.xpose.msra.mxu0 0
        %1861 = vmatprep.subr.bf16.mxu0 0
        %1862 = vmatpush2.bf16.xpose.msra.mxu0 0
        %1863 = vmatprep.subr.bf16.mxu0 0
        %1864 = vmatpush2.bf16.xpose.msra.mxu0 0
        %1865 = vmatprep.subr.bf16.mxu0 0
        %1866 = vmatpush2.bf16.xpose.msra.mxu0 0
        %1867 = vmatprep.subr.bf16.mxu0 0
        %1868 = vmatpush2.bf16.xpose.msra.mxu0 0
        %1869 = vmatprep.subr.bf16.mxu0 0
        %1870 = vmatpush2.bf16.xpose.msra.mxu0 0
        %1871 = vmatprep.subr.bf16.mxu0 0
        %1872 = vmatpush2.bf16.xpose.msra.mxu0 0
        %1873 = vmatprep.subr.bf16.mxu0 0
        %1874 = vmatpush2.bf16.xpose.msra.mxu0 0
        %1875 = vmatprep.mubr.bf16.mxu0 %v426
        %1876 = vmatmul.mubr.bf16.gmra.mxu0 %v425
        %v1877 = vpop.f32.mrf.mxu0
        %v1878 = vadd.f32 %v1837, %v1877
        %v1879 = vpop.f32.mrf.mxu0
        %v1880 = vpop.f32.mrf.mxu0
        %v1881 = vadd.f32 %v1840, %v1880
        %v1882 = vpop.f32.mrf.mxu0
        %1883 = vdwg.mxu0
        %1884 = vmatprep.subr.bf16.mxu0 0
        %1885 = vmatpush1.bf16.xpose.msra.mxu0 0
        %1886 = vmatprep.subr.bf16.mxu0 0
        %1887 = vmatpush1.bf16.xpose.msra.mxu0 0
        %1888 = vmatprep.subr.bf16.mxu0 0
        %1889 = vmatpush1.bf16.xpose.msra.mxu0 0
        %1890 = vmatprep.subr.bf16.mxu0 0
        %1891 = vmatpush1.bf16.xpose.msra.mxu0 0
        %1892 = vmatprep.subr.bf16.mxu0 0
        %1893 = vmatpush1.bf16.xpose.msra.mxu0 0
        %1894 = vmatprep.subr.bf16.mxu0 0
        %1895 = vmatpush1.bf16.xpose.msra.mxu0 0
        %1896 = vmatprep.subr.bf16.mxu0 0
        %1897 = vmatpush1.bf16.xpose.msra.mxu0 0
        %1898 = vmatprep.subr.bf16.mxu0 %v1754
        %1899 = vmatpush1.bf16.xpose.msra.mxu0 %v1753
        %1900 = vmatprep.subr.bf16.mxu0 0
        %1901 = vmatpush2.bf16.xpose.msra.mxu0 0
        %1902 = vmatprep.subr.bf16.mxu0 0
        %1903 = vmatpush2.bf16.xpose.msra.mxu0 0
        %1904 = vmatprep.subr.bf16.mxu0 0
        %1905 = vmatpush2.bf16.xpose.msra.mxu0 0
        %1906 = vmatprep.subr.bf16.mxu0 0
        %1907 = vmatpush2.bf16.xpose.msra.mxu0 0
        %1908 = vmatprep.subr.bf16.mxu0 0
        %1909 = vmatpush2.bf16.xpose.msra.mxu0 0
        %1910 = vmatprep.subr.bf16.mxu0 0
        %1911 = vmatpush2.bf16.xpose.msra.mxu0 0
        %1912 = vmatprep.subr.bf16.mxu0 0
        %1913 = vmatpush2.bf16.xpose.msra.mxu0 0
        %1914 = vmatprep.subr.bf16.mxu0 0
        %1915 = vmatpush2.bf16.xpose.msra.mxu0 0
        %1916 = vmatprep.mubr.bf16.mxu0 %v428
        %1917 = vmatmul.mubr.bf16.gmra.mxu0 %v427
        %v1918 = vpop.f32.mrf.mxu0
        %v1919 = vadd.f32 %v1878, %v1918
        %v1920 = vpop.f32.mrf.mxu0
        %v1921 = vpop.f32.mrf.mxu0
        %v1922 = vadd.f32 %v1881, %v1921
        %v1923 = vpop.f32.mrf.mxu0
        %1924 = vdwg.mxu0
        %v1925 = vsel %vm340, %v1919, -1e+30
        %v1926 = vsel %vm341, %v1922, -1e+30
        %v1927 = vsel %vm603, %v1925, -inf
        %1928 = vmax.xlane.f32.xlu0 %v1927
        %v1929 = vpop.xlane.xlu0 %1928
        %v1930 = vsel %vm603, %v1926, -inf
        %1931 = vmax.xlane.f32.xlu0 %v1930
        %v1932 = vpop.xlane.xlu0 %1931
        %v1933 = vsub.f32 %v1925, %v1929
        %v1934 = vsub.f32 %v1926, %v1932
        %v1935 = vmul.f32 %v1933, 1.442695
        %v1936 = vpow.pop %v1935
        %v1937 = vmul.f32 %v1934, 1.442695
        %v1938 = vpow.pop %v1937
        %v1939 = vsel %vm603, %v1936, 0.0
        %1940 = vadd.xlane.f32.xlu0 %v1939
        %v1941 = vpop.xlane.xlu0 %1940
        %v1942 = vsel %vm603, %v1938, 0.0
        %1943 = vadd.xlane.f32.xlu0 %v1942
        %v1944 = vpop.xlane.xlu0 %1943
        %v1945 = vrcp.pop %v1941
        %v1946 = vmul.f32 %v1936, %v1945
        %v1947 = vrcp.pop %v1944
        %v1948 = vmul.f32 %v1938, %v1947
        %v1949 = vsub.f32 %v1946, %v372
        %v1950 = vsub.f32 %v1948, %v373
        %v1951 = vmul.f32 %v1949, 0.125
        %v1952 = vmul.f32 %v1950, 0.125
        %v1953 = vpack.c.bf16 %v1952, %v1951
        %1954 = vxpose.xlu0.c.b16.start [1/8] %v1953, 128
        %1955 = vxpose.xlu0.c.b16.cont [2/8] 0, 128
        %1956 = vxpose.xlu0.c.b16.cont [3/8] 0, 128
        %1957 = vxpose.xlu0.c.b16.cont [4/8] 0, 128
        %1958 = vxpose.xlu0.c.b16.cont [5/8] 0, 128
        %1959 = vxpose.xlu0.c.b16.cont [6/8] 0, 128
        %1960 = vxpose.xlu0.c.b16.cont [7/8] 0, 128
        %1961 = vxpose.xlu0.c.b16.end [8/8] 0, 128
        %v1962 = vpop.trf.xlu0
        %v1963 = vpop.trf.xlu0
        %v1964 = vpop.trf.xlu0
        %v1965 = vpop.trf.xlu0
        %v1966 = vpop.trf.xlu0
        %v1967 = vpop.trf.xlu0
        %v1968 = vpop.trf.xlu0
        %v1969 = vpop.trf.xlu0
        %v1971 = vsel %vm603, %v1962, 0
        %1973 = vmatprep.subr.bf16.mxu0 0
        %1974 = vmatpush1.bf16.msra.mxu0 0
        %1975 = vmatprep.subr.bf16.mxu0 0
        %1976 = vmatpush1.bf16.msra.mxu0 0
        %1977 = vmatprep.subr.bf16.mxu0 0
        %1978 = vmatpush1.bf16.msra.mxu0 0
        %1979 = vmatprep.subr.bf16.mxu0 0
        %1980 = vmatpush1.bf16.msra.mxu0 0
        %1981 = vmatprep.subr.bf16.mxu0 0
        %1982 = vmatpush1.bf16.msra.mxu0 0
        %1983 = vmatprep.subr.bf16.mxu0 0
        %1984 = vmatpush1.bf16.msra.mxu0 0
        %1985 = vmatprep.subr.bf16.mxu0 0
        %1986 = vmatpush1.bf16.msra.mxu0 0
        %1987 = vmatprep.subr.bf16.mxu0 %v422
        %1988 = vmatpush1.bf16.msra.mxu0 %v421
        %1989 = vmatprep.subr.bf16.mxu0 0
        %1990 = vmatpush2.bf16.msra.mxu0 0
        %1991 = vmatprep.subr.bf16.mxu0 0
        %1992 = vmatpush2.bf16.msra.mxu0 0
        %1993 = vmatprep.subr.bf16.mxu0 0
        %1994 = vmatpush2.bf16.msra.mxu0 0
        %1995 = vmatprep.subr.bf16.mxu0 0
        %1996 = vmatpush2.bf16.msra.mxu0 0
        %1997 = vmatprep.subr.bf16.mxu0 0
        %1998 = vmatpush2.bf16.msra.mxu0 0
        %1999 = vmatprep.subr.bf16.mxu0 0
        %2000 = vmatpush2.bf16.msra.mxu0 0
        %2001 = vmatprep.subr.bf16.mxu0 0
        %2002 = vmatpush2.bf16.msra.mxu0 0
        %2003 = vmatprep.subr.bf16.mxu0 0
        %2004 = vmatpush2.bf16.msra.mxu0 0
        %2005 = vmatprep.mubr.bf16.mxu0 0
        %2006 = vmatmul.mubr.bf16.gmra.mxu0 %v1971
        %v2007 = vpop.f32.mrf.mxu0
        %v2008 = vadd.f32 0.0, %v2007
        %v2009 = vpop.f32.mrf.mxu0
        %v2010 = vadd.f32 0.0, %v2009
        %v2011 = vpop.f32.mrf.mxu0
        %v2012 = vadd.f32 0.0, %v2011
        %v2013 = vpop.f32.mrf.mxu0
        %v2014 = vadd.f32 0.0, %v2013
        %2015 = vdwg.mxu0
        %2016 = vmatprep.subr.bf16.mxu0 0
        %2017 = vmatpush1.bf16.msra.mxu0 0
        %2018 = vmatprep.subr.bf16.mxu0 0
        %2019 = vmatpush1.bf16.msra.mxu0 0
        %2020 = vmatprep.subr.bf16.mxu0 0
        %2021 = vmatpush1.bf16.msra.mxu0 0
        %2022 = vmatprep.subr.bf16.mxu0 0
        %2023 = vmatpush1.bf16.msra.mxu0 0
        %2024 = vmatprep.subr.bf16.mxu0 0
        %2025 = vmatpush1.bf16.msra.mxu0 0
        %2026 = vmatprep.subr.bf16.mxu0 0
        %2027 = vmatpush1.bf16.msra.mxu0 0
        %2028 = vmatprep.subr.bf16.mxu0 0
        %2029 = vmatpush1.bf16.msra.mxu0 0
        %2030 = vmatprep.subr.bf16.mxu0 %v424
        %2031 = vmatpush1.bf16.msra.mxu0 %v423
        %2032 = vmatprep.subr.bf16.mxu0 0
        %2033 = vmatpush2.bf16.msra.mxu0 0
        %2034 = vmatprep.subr.bf16.mxu0 0
        %2035 = vmatpush2.bf16.msra.mxu0 0
        %2036 = vmatprep.subr.bf16.mxu0 0
        %2037 = vmatpush2.bf16.msra.mxu0 0
        %2038 = vmatprep.subr.bf16.mxu0 0
        %2039 = vmatpush2.bf16.msra.mxu0 0
        %2040 = vmatprep.subr.bf16.mxu0 0
        %2041 = vmatpush2.bf16.msra.mxu0 0
        %2042 = vmatprep.subr.bf16.mxu0 0
        %2043 = vmatpush2.bf16.msra.mxu0 0
        %2044 = vmatprep.subr.bf16.mxu0 0
        %2045 = vmatpush2.bf16.msra.mxu0 0
        %2046 = vmatprep.subr.bf16.mxu0 0
        %2047 = vmatpush2.bf16.msra.mxu0 0
        %2048 = vmatprep.mubr.bf16.mxu0 0
        %2049 = vmatmul.mubr.bf16.gmra.mxu0 %v1971
        %v2050 = vpop.f32.mrf.mxu0
        %v2051 = vadd.f32 0.0, %v2050
        %v2052 = vpop.f32.mrf.mxu0
        %v2053 = vadd.f32 0.0, %v2052
        %v2054 = vpop.f32.mrf.mxu0
        %v2055 = vadd.f32 0.0, %v2054
        %v2056 = vpop.f32.mrf.mxu0
        %v2057 = vadd.f32 0.0, %v2056
        %2058 = vdwg.mxu0
        %2059 = vmatprep.subr.bf16.mxu0 0
        %2060 = vmatpush1.bf16.msra.mxu0 0
        %2061 = vmatprep.subr.bf16.mxu0 0
        %2062 = vmatpush1.bf16.msra.mxu0 0
        %2063 = vmatprep.subr.bf16.mxu0 0
        %2064 = vmatpush1.bf16.msra.mxu0 0
        %2065 = vmatprep.subr.bf16.mxu0 0
        %2066 = vmatpush1.bf16.msra.mxu0 0
        %2067 = vmatprep.subr.bf16.mxu0 0
        %2068 = vmatpush1.bf16.msra.mxu0 0
        %2069 = vmatprep.subr.bf16.mxu0 0
        %2070 = vmatpush1.bf16.msra.mxu0 0
        %2071 = vmatprep.subr.bf16.mxu0 0
        %2072 = vmatpush1.bf16.msra.mxu0 0
        %2073 = vmatprep.subr.bf16.mxu0 %v426
        %2074 = vmatpush1.bf16.msra.mxu0 %v425
        %2075 = vmatprep.subr.bf16.mxu0 0
        %2076 = vmatpush2.bf16.msra.mxu0 0
        %2077 = vmatprep.subr.bf16.mxu0 0
        %2078 = vmatpush2.bf16.msra.mxu0 0
        %2079 = vmatprep.subr.bf16.mxu0 0
        %2080 = vmatpush2.bf16.msra.mxu0 0
        %2081 = vmatprep.subr.bf16.mxu0 0
        %2082 = vmatpush2.bf16.msra.mxu0 0
        %2083 = vmatprep.subr.bf16.mxu0 0
        %2084 = vmatpush2.bf16.msra.mxu0 0
        %2085 = vmatprep.subr.bf16.mxu0 0
        %2086 = vmatpush2.bf16.msra.mxu0 0
        %2087 = vmatprep.subr.bf16.mxu0 0
        %2088 = vmatpush2.bf16.msra.mxu0 0
        %2089 = vmatprep.subr.bf16.mxu0 0
        %2090 = vmatpush2.bf16.msra.mxu0 0
        %2091 = vmatprep.mubr.bf16.mxu0 0
        %2092 = vmatmul.mubr.bf16.gmra.mxu0 %v1971
        %v2093 = vpop.f32.mrf.mxu0
        %v2094 = vadd.f32 0.0, %v2093
        %v2095 = vpop.f32.mrf.mxu0
        %v2096 = vadd.f32 0.0, %v2095
        %v2097 = vpop.f32.mrf.mxu0
        %v2098 = vadd.f32 0.0, %v2097
        %v2099 = vpop.f32.mrf.mxu0
        %v2100 = vadd.f32 0.0, %v2099
        %2101 = vdwg.mxu0
        %2102 = vmatprep.subr.bf16.mxu0 0
        %2103 = vmatpush1.bf16.msra.mxu0 0
        %2104 = vmatprep.subr.bf16.mxu0 0
        %2105 = vmatpush1.bf16.msra.mxu0 0
        %2106 = vmatprep.subr.bf16.mxu0 0
        %2107 = vmatpush1.bf16.msra.mxu0 0
        %2108 = vmatprep.subr.bf16.mxu0 0
        %2109 = vmatpush1.bf16.msra.mxu0 0
        %2110 = vmatprep.subr.bf16.mxu0 0
        %2111 = vmatpush1.bf16.msra.mxu0 0
        %2112 = vmatprep.subr.bf16.mxu0 0
        %2113 = vmatpush1.bf16.msra.mxu0 0
        %2114 = vmatprep.subr.bf16.mxu0 0
        %2115 = vmatpush1.bf16.msra.mxu0 0
        %2116 = vmatprep.subr.bf16.mxu0 %v428
        %2117 = vmatpush1.bf16.msra.mxu0 %v427
        %2118 = vmatprep.subr.bf16.mxu0 0
        %2119 = vmatpush2.bf16.msra.mxu0 0
        %2120 = vmatprep.subr.bf16.mxu0 0
        %2121 = vmatpush2.bf16.msra.mxu0 0
        %2122 = vmatprep.subr.bf16.mxu0 0
        %2123 = vmatpush2.bf16.msra.mxu0 0
        %2124 = vmatprep.subr.bf16.mxu0 0
        %2125 = vmatpush2.bf16.msra.mxu0 0
        %2126 = vmatprep.subr.bf16.mxu0 0
        %2127 = vmatpush2.bf16.msra.mxu0 0
        %2128 = vmatprep.subr.bf16.mxu0 0
        %2129 = vmatpush2.bf16.msra.mxu0 0
        %2130 = vmatprep.subr.bf16.mxu0 0
        %2131 = vmatpush2.bf16.msra.mxu0 0
        %2132 = vmatprep.subr.bf16.mxu0 0
        %2133 = vmatpush2.bf16.msra.mxu0 0
        %2134 = vmatprep.mubr.bf16.mxu0 0
        %2135 = vmatmul.mubr.bf16.gmra.mxu0 %v1971
        %v2136 = vpop.f32.mrf.mxu0
        %v2137 = vadd.f32 0.0, %v2136
        %v2138 = vpop.f32.mrf.mxu0
        %v2139 = vadd.f32 0.0, %v2138
        %v2140 = vpop.f32.mrf.mxu0
        %v2141 = vadd.f32 0.0, %v2140
        %v2142 = vpop.f32.mrf.mxu0
        %v2143 = vadd.f32 0.0, %v2142
        %2144 = vdwg.mxu0
        %v2145 = vsel %vm603, %v1951, 0.0
        %v2146 = vsel %vm603, %v1952, 0.0
        %v2147 = vadd.f32 %v2145, %v2146
        %v2148 = vrot.slane %v2147, 4
        %v2149 = vadd.f32 %v2147, %v2148
        %v2150 = vrot.slane %v2149, 2
        %v2151 = vadd.f32 %v2149, %v2150
        %v2152 = vrot.slane %v2151, 1
        %v2153 = vadd.f32 %v2151, %v2152
        %v2154 = vmul.f32 %v2008, 0.1
        %v2155 = vmul.f32 %v2010, 0.1
        %v2156 = vmul.f32 %v2051, 0.1
        %v2157 = vmul.f32 %v2053, 0.1
        %v2158 = vmul.f32 %v2094, 0.1
        %v2159 = vmul.f32 %v2096, 0.1
        %v2160 = vmul.f32 %v2137, 0.1
        %v2161 = vmul.f32 %v2139, 0.1
        %v2162 = vmul.f32 %v2012, 0.1
        %v2163 = vmul.f32 %v2014, 0.1
        %v2164 = vmul.f32 %v2055, 0.1
        %v2165 = vmul.f32 %v2057, 0.1
        %v2166 = vmul.f32 %v2098, 0.1
        %v2167 = vmul.f32 %v2100, 0.1
        %v2168 = vmul.f32 %v2141, 0.1
        %v2169 = vmul.f32 %v2143, 0.1
        %v2170 = vsub.f32 %v1729, %v2154
        %v2171 = vsub.f32 %v1730, %v2155
        %v2172 = vsub.f32 %v1731, %v2156
        %v2173 = vsub.f32 %v1732, %v2157
        %v2174 = vsub.f32 %v1733, %v2158
        %v2175 = vsub.f32 %v1734, %v2159
        %v2176 = vsub.f32 %v1735, %v2160
        %v2177 = vsub.f32 %v1736, %v2161
        %v2178 = vsub.f32 %v1737, %v2162
        %v2179 = vsub.f32 %v1738, %v2163
        %v2180 = vsub.f32 %v1739, %v2164
        %v2181 = vsub.f32 %v1740, %v2165
        %v2182 = vsub.f32 %v1741, %v2166
        %v2183 = vsub.f32 %v1742, %v2167
        %v2184 = vsub.f32 %v1743, %v2168
        %v2185 = vsub.f32 %v1744, %v2169
        %v2186 = vmul.f32 %v2153, 0.1
        %v2187 = vsub.f32 %v1746, %v2186
        %v2188 = vpack.c.bf16 %v2178, %v2170
        %v2189 = vpack.c.bf16 %v2179, %v2171
        %v2190 = vpack.c.bf16 %v2180, %v2172
        %v2191 = vpack.c.bf16 %v2181, %v2173
        %v2192 = vpack.c.bf16 %v2182, %v2174
        %v2193 = vpack.c.bf16 %v2183, %v2175
        %v2194 = vpack.c.bf16 %v2184, %v2176
        %v2195 = vpack.c.bf16 %v2185, %v2177
        %v2197 = vlaneseq
        %v2198 = vshrl.u32 %v2197, 7
        %v2199 = vsub.s32 0, %v2198
        %v2200 = vrot.slane %v2187, %v2199
        %2202 = vmatprep.subr.bf16.mxu0 0
        %2203 = vmatpush1.bf16.xpose.msra.mxu0 0
        %2204 = vmatprep.subr.bf16.mxu0 0
        %2205 = vmatpush1.bf16.xpose.msra.mxu0 0
        %2206 = vmatprep.subr.bf16.mxu0 0
        %2207 = vmatpush1.bf16.xpose.msra.mxu0 0
        %2208 = vmatprep.subr.bf16.mxu0 0
        %2209 = vmatpush1.bf16.xpose.msra.mxu0 0
        %2210 = vmatprep.subr.bf16.mxu0 0
        %2211 = vmatpush1.bf16.xpose.msra.mxu0 0
        %2212 = vmatprep.subr.bf16.mxu0 0
        %2213 = vmatpush1.bf16.xpose.msra.mxu0 0
        %2214 = vmatprep.subr.bf16.mxu0 0
        %2215 = vmatpush1.bf16.xpose.msra.mxu0 0
        %2216 = vmatprep.subr.bf16.mxu0 %v2189
        %2217 = vmatpush1.bf16.xpose.msra.mxu0 %v2188
        %2218 = vmatprep.subr.bf16.mxu0 0
        %2219 = vmatpush2.bf16.xpose.msra.mxu0 0
        %2220 = vmatprep.subr.bf16.mxu0 0
        %2221 = vmatpush2.bf16.xpose.msra.mxu0 0
        %2222 = vmatprep.subr.bf16.mxu0 0
        %2223 = vmatpush2.bf16.xpose.msra.mxu0 0
        %2224 = vmatprep.subr.bf16.mxu0 0
        %2225 = vmatpush2.bf16.xpose.msra.mxu0 0
        %2226 = vmatprep.subr.bf16.mxu0 0
        %2227 = vmatpush2.bf16.xpose.msra.mxu0 0
        %2228 = vmatprep.subr.bf16.mxu0 0
        %2229 = vmatpush2.bf16.xpose.msra.mxu0 0
        %2230 = vmatprep.subr.bf16.mxu0 0
        %2231 = vmatpush2.bf16.xpose.msra.mxu0 0
        %2232 = vmatprep.subr.bf16.mxu0 0
        %2233 = vmatpush2.bf16.xpose.msra.mxu0 0
        %2234 = vmatprep.mubr.bf16.mxu0 %v422
        %2235 = vmatmul.mubr.bf16.gmra.mxu0 %v421
        %v2236 = vpop.f32.mrf.mxu0
        %v2237 = vadd.f32 %v2200, %v2236
        %v2238 = vpop.f32.mrf.mxu0
        %v2239 = vpop.f32.mrf.mxu0
        %v2240 = vadd.f32 %v2200, %v2239
        %v2241 = vpop.f32.mrf.mxu0
        %2242 = vdwg.mxu0
        %2243 = vmatprep.subr.bf16.mxu0 0
        %2244 = vmatpush1.bf16.xpose.msra.mxu0 0
        %2245 = vmatprep.subr.bf16.mxu0 0
        %2246 = vmatpush1.bf16.xpose.msra.mxu0 0
        %2247 = vmatprep.subr.bf16.mxu0 0
        %2248 = vmatpush1.bf16.xpose.msra.mxu0 0
        %2249 = vmatprep.subr.bf16.mxu0 0
        %2250 = vmatpush1.bf16.xpose.msra.mxu0 0
        %2251 = vmatprep.subr.bf16.mxu0 0
        %2252 = vmatpush1.bf16.xpose.msra.mxu0 0
        %2253 = vmatprep.subr.bf16.mxu0 0
        %2254 = vmatpush1.bf16.xpose.msra.mxu0 0
        %2255 = vmatprep.subr.bf16.mxu0 0
        %2256 = vmatpush1.bf16.xpose.msra.mxu0 0
        %2257 = vmatprep.subr.bf16.mxu0 %v2191
        %2258 = vmatpush1.bf16.xpose.msra.mxu0 %v2190
        %2259 = vmatprep.subr.bf16.mxu0 0
        %2260 = vmatpush2.bf16.xpose.msra.mxu0 0
        %2261 = vmatprep.subr.bf16.mxu0 0
        %2262 = vmatpush2.bf16.xpose.msra.mxu0 0
        %2263 = vmatprep.subr.bf16.mxu0 0
        %2264 = vmatpush2.bf16.xpose.msra.mxu0 0
        %2265 = vmatprep.subr.bf16.mxu0 0
        %2266 = vmatpush2.bf16.xpose.msra.mxu0 0
        %2267 = vmatprep.subr.bf16.mxu0 0
        %2268 = vmatpush2.bf16.xpose.msra.mxu0 0
        %2269 = vmatprep.subr.bf16.mxu0 0
        %2270 = vmatpush2.bf16.xpose.msra.mxu0 0
        %2271 = vmatprep.subr.bf16.mxu0 0
        %2272 = vmatpush2.bf16.xpose.msra.mxu0 0
        %2273 = vmatprep.subr.bf16.mxu0 0
        %2274 = vmatpush2.bf16.xpose.msra.mxu0 0
        %2275 = vmatprep.mubr.bf16.mxu0 %v424
        %2276 = vmatmul.mubr.bf16.gmra.mxu0 %v423
        %v2277 = vpop.f32.mrf.mxu0
        %v2278 = vadd.f32 %v2237, %v2277
        %v2279 = vpop.f32.mrf.mxu0
        %v2280 = vpop.f32.mrf.mxu0
        %v2281 = vadd.f32 %v2240, %v2280
        %v2282 = vpop.f32.mrf.mxu0
        %2283 = vdwg.mxu0
        %2284 = vmatprep.subr.bf16.mxu0 0
        %2285 = vmatpush1.bf16.xpose.msra.mxu0 0
        %2286 = vmatprep.subr.bf16.mxu0 0
        %2287 = vmatpush1.bf16.xpose.msra.mxu0 0
        %2288 = vmatprep.subr.bf16.mxu0 0
        %2289 = vmatpush1.bf16.xpose.msra.mxu0 0
        %2290 = vmatprep.subr.bf16.mxu0 0
        %2291 = vmatpush1.bf16.xpose.msra.mxu0 0
        %2292 = vmatprep.subr.bf16.mxu0 0
        %2293 = vmatpush1.bf16.xpose.msra.mxu0 0
        %2294 = vmatprep.subr.bf16.mxu0 0
        %2295 = vmatpush1.bf16.xpose.msra.mxu0 0
        %2296 = vmatprep.subr.bf16.mxu0 0
        %2297 = vmatpush1.bf16.xpose.msra.mxu0 0
        %2298 = vmatprep.subr.bf16.mxu0 %v2193
        %2299 = vmatpush1.bf16.xpose.msra.mxu0 %v2192
        %2300 = vmatprep.subr.bf16.mxu0 0
        %2301 = vmatpush2.bf16.xpose.msra.mxu0 0
        %2302 = vmatprep.subr.bf16.mxu0 0
        %2303 = vmatpush2.bf16.xpose.msra.mxu0 0
        %2304 = vmatprep.subr.bf16.mxu0 0
        %2305 = vmatpush2.bf16.xpose.msra.mxu0 0
        %2306 = vmatprep.subr.bf16.mxu0 0
        %2307 = vmatpush2.bf16.xpose.msra.mxu0 0
        %2308 = vmatprep.subr.bf16.mxu0 0
        %2309 = vmatpush2.bf16.xpose.msra.mxu0 0
        %2310 = vmatprep.subr.bf16.mxu0 0
        %2311 = vmatpush2.bf16.xpose.msra.mxu0 0
        %2312 = vmatprep.subr.bf16.mxu0 0
        %2313 = vmatpush2.bf16.xpose.msra.mxu0 0
        %2314 = vmatprep.subr.bf16.mxu0 0
        %2315 = vmatpush2.bf16.xpose.msra.mxu0 0
        %2316 = vmatprep.mubr.bf16.mxu0 %v426
        %2317 = vmatmul.mubr.bf16.gmra.mxu0 %v425
        %v2318 = vpop.f32.mrf.mxu0
        %v2319 = vadd.f32 %v2278, %v2318
        %v2320 = vpop.f32.mrf.mxu0
        %v2321 = vpop.f32.mrf.mxu0
        %v2322 = vadd.f32 %v2281, %v2321
        %v2323 = vpop.f32.mrf.mxu0
        %2324 = vdwg.mxu0
        %2325 = vmatprep.subr.bf16.mxu0 0
        %2326 = vmatpush1.bf16.xpose.msra.mxu0 0
        %2327 = vmatprep.subr.bf16.mxu0 0
        %2328 = vmatpush1.bf16.xpose.msra.mxu0 0
        %2329 = vmatprep.subr.bf16.mxu0 0
        %2330 = vmatpush1.bf16.xpose.msra.mxu0 0
        %2331 = vmatprep.subr.bf16.mxu0 0
        %2332 = vmatpush1.bf16.xpose.msra.mxu0 0
        %2333 = vmatprep.subr.bf16.mxu0 0
        %2334 = vmatpush1.bf16.xpose.msra.mxu0 0
        %2335 = vmatprep.subr.bf16.mxu0 0
        %2336 = vmatpush1.bf16.xpose.msra.mxu0 0
        %2337 = vmatprep.subr.bf16.mxu0 0
        %2338 = vmatpush1.bf16.xpose.msra.mxu0 0
        %2339 = vmatprep.subr.bf16.mxu0 %v2195
        %2340 = vmatpush1.bf16.xpose.msra.mxu0 %v2194
        %2341 = vmatprep.subr.bf16.mxu0 0
        %2342 = vmatpush2.bf16.xpose.msra.mxu0 0
        %2343 = vmatprep.subr.bf16.mxu0 0
        %2344 = vmatpush2.bf16.xpose.msra.mxu0 0
        %2345 = vmatprep.subr.bf16.mxu0 0
        %2346 = vmatpush2.bf16.xpose.msra.mxu0 0
        %2347 = vmatprep.subr.bf16.mxu0 0
        %2348 = vmatpush2.bf16.xpose.msra.mxu0 0
        %2349 = vmatprep.subr.bf16.mxu0 0
        %2350 = vmatpush2.bf16.xpose.msra.mxu0 0
        %2351 = vmatprep.subr.bf16.mxu0 0
        %2352 = vmatpush2.bf16.xpose.msra.mxu0 0
        %2353 = vmatprep.subr.bf16.mxu0 0
        %2354 = vmatpush2.bf16.xpose.msra.mxu0 0
        %2355 = vmatprep.subr.bf16.mxu0 0
        %2356 = vmatpush2.bf16.xpose.msra.mxu0 0
        %2357 = vmatprep.mubr.bf16.mxu0 %v428
        %2358 = vmatmul.mubr.bf16.gmra.mxu0 %v427
        %v2359 = vpop.f32.mrf.mxu0
        %v2360 = vadd.f32 %v2319, %v2359
        %v2361 = vpop.f32.mrf.mxu0
        %v2362 = vpop.f32.mrf.mxu0
        %v2363 = vadd.f32 %v2322, %v2362
        %v2364 = vpop.f32.mrf.mxu0
        %2365 = vdwg.mxu0
        %v2366 = vsel %vm340, %v2360, -1e+30
        %v2367 = vsel %vm341, %v2363, -1e+30
        %v2368 = vsel %vm603, %v2366, -inf
        %2369 = vmax.xlane.f32.xlu0 %v2368
        %v2370 = vpop.xlane.xlu0 %2369
        %v2371 = vsel %vm603, %v2367, -inf
        %2372 = vmax.xlane.f32.xlu0 %v2371
        %v2373 = vpop.xlane.xlu0 %2372
        %v2374 = vsub.f32 %v2366, %v2370
        %v2375 = vsub.f32 %v2367, %v2373
        %v2376 = vmul.f32 %v2374, 1.442695
        %v2377 = vpow.pop %v2376
        %v2378 = vmul.f32 %v2375, 1.442695
        %v2379 = vpow.pop %v2378
        %v2380 = vsel %vm603, %v2377, 0.0
        %2381 = vadd.xlane.f32.xlu0 %v2380
        %v2382 = vpop.xlane.xlu0 %2381
        %v2383 = vsel %vm603, %v2379, 0.0
        %2384 = vadd.xlane.f32.xlu0 %v2383
        %v2385 = vpop.xlane.xlu0 %2384
        %v2386 = vrcp.pop %v2382
        %v2387 = vmul.f32 %v2377, %v2386
        %v2388 = vrcp.pop %v2385
        %v2389 = vmul.f32 %v2379, %v2388
        %v2390 = vsub.f32 %v2387, %v372
        %v2391 = vsub.f32 %v2389, %v373
        %v2392 = vmul.f32 %v2390, 0.125
        %v2393 = vmul.f32 %v2391, 0.125
        %v2394 = vpack.c.bf16 %v2393, %v2392
        %2395 = vxpose.xlu0.c.b16.start [1/8] %v2394, 128
        %2396 = vxpose.xlu0.c.b16.cont [2/8] 0, 128
        %2397 = vxpose.xlu0.c.b16.cont [3/8] 0, 128
        %2398 = vxpose.xlu0.c.b16.cont [4/8] 0, 128
        %2399 = vxpose.xlu0.c.b16.cont [5/8] 0, 128
        %2400 = vxpose.xlu0.c.b16.cont [6/8] 0, 128
        %2401 = vxpose.xlu0.c.b16.cont [7/8] 0, 128
        %2402 = vxpose.xlu0.c.b16.end [8/8] 0, 128
        %v2403 = vpop.trf.xlu0
        %v2404 = vpop.trf.xlu0
        %v2405 = vpop.trf.xlu0
        %v2406 = vpop.trf.xlu0
        %v2407 = vpop.trf.xlu0
        %v2408 = vpop.trf.xlu0
        %v2409 = vpop.trf.xlu0
        %v2410 = vpop.trf.xlu0
        %v2412 = vsel %vm603, %v2403, 0
        %2414 = vmatprep.subr.bf16.mxu0 0
        %2415 = vmatpush1.bf16.msra.mxu0 0
        %2416 = vmatprep.subr.bf16.mxu0 0
        %2417 = vmatpush1.bf16.msra.mxu0 0
        %2418 = vmatprep.subr.bf16.mxu0 0
        %2419 = vmatpush1.bf16.msra.mxu0 0
        %2420 = vmatprep.subr.bf16.mxu0 0
        %2421 = vmatpush1.bf16.msra.mxu0 0
        %2422 = vmatprep.subr.bf16.mxu0 0
        %2423 = vmatpush1.bf16.msra.mxu0 0
        %2424 = vmatprep.subr.bf16.mxu0 0
        %2425 = vmatpush1.bf16.msra.mxu0 0
        %2426 = vmatprep.subr.bf16.mxu0 0
        %2427 = vmatpush1.bf16.msra.mxu0 0
        %2428 = vmatprep.subr.bf16.mxu0 %v422
        %2429 = vmatpush1.bf16.msra.mxu0 %v421
        %2430 = vmatprep.subr.bf16.mxu0 0
        %2431 = vmatpush2.bf16.msra.mxu0 0
        %2432 = vmatprep.subr.bf16.mxu0 0
        %2433 = vmatpush2.bf16.msra.mxu0 0
        %2434 = vmatprep.subr.bf16.mxu0 0
        %2435 = vmatpush2.bf16.msra.mxu0 0
        %2436 = vmatprep.subr.bf16.mxu0 0
        %2437 = vmatpush2.bf16.msra.mxu0 0
        %2438 = vmatprep.subr.bf16.mxu0 0
        %2439 = vmatpush2.bf16.msra.mxu0 0
        %2440 = vmatprep.subr.bf16.mxu0 0
        %2441 = vmatpush2.bf16.msra.mxu0 0
        %2442 = vmatprep.subr.bf16.mxu0 0
        %2443 = vmatpush2.bf16.msra.mxu0 0
        %2444 = vmatprep.subr.bf16.mxu0 0
        %2445 = vmatpush2.bf16.msra.mxu0 0
        %2446 = vmatprep.mubr.bf16.mxu0 0
        %2447 = vmatmul.mubr.bf16.gmra.mxu0 %v2412
        %v2448 = vpop.f32.mrf.mxu0
        %v2449 = vadd.f32 0.0, %v2448
        %v2450 = vpop.f32.mrf.mxu0
        %v2451 = vadd.f32 0.0, %v2450
        %v2452 = vpop.f32.mrf.mxu0
        %v2453 = vadd.f32 0.0, %v2452
        %v2454 = vpop.f32.mrf.mxu0
        %v2455 = vadd.f32 0.0, %v2454
        %2456 = vdwg.mxu0
        %2457 = vmatprep.subr.bf16.mxu0 0
        %2458 = vmatpush1.bf16.msra.mxu0 0
        %2459 = vmatprep.subr.bf16.mxu0 0
        %2460 = vmatpush1.bf16.msra.mxu0 0
        %2461 = vmatprep.subr.bf16.mxu0 0
        %2462 = vmatpush1.bf16.msra.mxu0 0
        %2463 = vmatprep.subr.bf16.mxu0 0
        %2464 = vmatpush1.bf16.msra.mxu0 0
        %2465 = vmatprep.subr.bf16.mxu0 0
        %2466 = vmatpush1.bf16.msra.mxu0 0
        %2467 = vmatprep.subr.bf16.mxu0 0
        %2468 = vmatpush1.bf16.msra.mxu0 0
        %2469 = vmatprep.subr.bf16.mxu0 0
        %2470 = vmatpush1.bf16.msra.mxu0 0
        %2471 = vmatprep.subr.bf16.mxu0 %v424
        %2472 = vmatpush1.bf16.msra.mxu0 %v423
        %2473 = vmatprep.subr.bf16.mxu0 0
        %2474 = vmatpush2.bf16.msra.mxu0 0
        %2475 = vmatprep.subr.bf16.mxu0 0
        %2476 = vmatpush2.bf16.msra.mxu0 0
        %2477 = vmatprep.subr.bf16.mxu0 0
        %2478 = vmatpush2.bf16.msra.mxu0 0
        %2479 = vmatprep.subr.bf16.mxu0 0
        %2480 = vmatpush2.bf16.msra.mxu0 0
        %2481 = vmatprep.subr.bf16.mxu0 0
        %2482 = vmatpush2.bf16.msra.mxu0 0
        %2483 = vmatprep.subr.bf16.mxu0 0
        %2484 = vmatpush2.bf16.msra.mxu0 0
        %2485 = vmatprep.subr.bf16.mxu0 0
        %2486 = vmatpush2.bf16.msra.mxu0 0
        %2487 = vmatprep.subr.bf16.mxu0 0
        %2488 = vmatpush2.bf16.msra.mxu0 0
        %2489 = vmatprep.mubr.bf16.mxu0 0
        %2490 = vmatmul.mubr.bf16.gmra.mxu0 %v2412
        %v2491 = vpop.f32.mrf.mxu0
        %v2492 = vadd.f32 0.0, %v2491
        %v2493 = vpop.f32.mrf.mxu0
        %v2494 = vadd.f32 0.0, %v2493
        %v2495 = vpop.f32.mrf.mxu0
        %v2496 = vadd.f32 0.0, %v2495
        %v2497 = vpop.f32.mrf.mxu0
        %v2498 = vadd.f32 0.0, %v2497
        %2499 = vdwg.mxu0
        %2500 = vmatprep.subr.bf16.mxu0 0
        %2501 = vmatpush1.bf16.msra.mxu0 0
        %2502 = vmatprep.subr.bf16.mxu0 0
        %2503 = vmatpush1.bf16.msra.mxu0 0
        %2504 = vmatprep.subr.bf16.mxu0 0
        %2505 = vmatpush1.bf16.msra.mxu0 0
        %2506 = vmatprep.subr.bf16.mxu0 0
        %2507 = vmatpush1.bf16.msra.mxu0 0
        %2508 = vmatprep.subr.bf16.mxu0 0
        %2509 = vmatpush1.bf16.msra.mxu0 0
        %2510 = vmatprep.subr.bf16.mxu0 0
        %2511 = vmatpush1.bf16.msra.mxu0 0
        %2512 = vmatprep.subr.bf16.mxu0 0
        %2513 = vmatpush1.bf16.msra.mxu0 0
        %2514 = vmatprep.subr.bf16.mxu0 %v426
        %2515 = vmatpush1.bf16.msra.mxu0 %v425
        %2516 = vmatprep.subr.bf16.mxu0 0
        %2517 = vmatpush2.bf16.msra.mxu0 0
        %2518 = vmatprep.subr.bf16.mxu0 0
        %2519 = vmatpush2.bf16.msra.mxu0 0
        %2520 = vmatprep.subr.bf16.mxu0 0
        %2521 = vmatpush2.bf16.msra.mxu0 0
        %2522 = vmatprep.subr.bf16.mxu0 0
        %2523 = vmatpush2.bf16.msra.mxu0 0
        %2524 = vmatprep.subr.bf16.mxu0 0
        %2525 = vmatpush2.bf16.msra.mxu0 0
        %2526 = vmatprep.subr.bf16.mxu0 0
        %2527 = vmatpush2.bf16.msra.mxu0 0
        %2528 = vmatprep.subr.bf16.mxu0 0
        %2529 = vmatpush2.bf16.msra.mxu0 0
        %2530 = vmatprep.subr.bf16.mxu0 0
        %2531 = vmatpush2.bf16.msra.mxu0 0
        %2532 = vmatprep.mubr.bf16.mxu0 0
        %2533 = vmatmul.mubr.bf16.gmra.mxu0 %v2412
        %v2534 = vpop.f32.mrf.mxu0
        %v2535 = vadd.f32 0.0, %v2534
        %v2536 = vpop.f32.mrf.mxu0
        %v2537 = vadd.f32 0.0, %v2536
        %v2538 = vpop.f32.mrf.mxu0
        %v2539 = vadd.f32 0.0, %v2538
        %v2540 = vpop.f32.mrf.mxu0
        %v2541 = vadd.f32 0.0, %v2540
        %2542 = vdwg.mxu0
        %2543 = vmatprep.subr.bf16.mxu0 0
        %2544 = vmatpush1.bf16.msra.mxu0 0
        %2545 = vmatprep.subr.bf16.mxu0 0
        %2546 = vmatpush1.bf16.msra.mxu0 0
        %2547 = vmatprep.subr.bf16.mxu0 0
        %2548 = vmatpush1.bf16.msra.mxu0 0
        %2549 = vmatprep.subr.bf16.mxu0 0
        %2550 = vmatpush1.bf16.msra.mxu0 0
        %2551 = vmatprep.subr.bf16.mxu0 0
        %2552 = vmatpush1.bf16.msra.mxu0 0
        %2553 = vmatprep.subr.bf16.mxu0 0
        %2554 = vmatpush1.bf16.msra.mxu0 0
        %2555 = vmatprep.subr.bf16.mxu0 0
        %2556 = vmatpush1.bf16.msra.mxu0 0
        %2557 = vmatprep.subr.bf16.mxu0 %v428
        %2558 = vmatpush1.bf16.msra.mxu0 %v427
        %2559 = vmatprep.subr.bf16.mxu0 0
        %2560 = vmatpush2.bf16.msra.mxu0 0
        %2561 = vmatprep.subr.bf16.mxu0 0
        %2562 = vmatpush2.bf16.msra.mxu0 0
        %2563 = vmatprep.subr.bf16.mxu0 0
        %2564 = vmatpush2.bf16.msra.mxu0 0
        %2565 = vmatprep.subr.bf16.mxu0 0
        %2566 = vmatpush2.bf16.msra.mxu0 0
        %2567 = vmatprep.subr.bf16.mxu0 0
        %2568 = vmatpush2.bf16.msra.mxu0 0
        %2569 = vmatprep.subr.bf16.mxu0 0
        %2570 = vmatpush2.bf16.msra.mxu0 0
        %2571 = vmatprep.subr.bf16.mxu0 0
        %2572 = vmatpush2.bf16.msra.mxu0 0
        %2573 = vmatprep.subr.bf16.mxu0 0
        %2574 = vmatpush2.bf16.msra.mxu0 0
        %2575 = vmatprep.mubr.bf16.mxu0 0
        %2576 = vmatmul.mubr.bf16.gmra.mxu0 %v2412
        %v2577 = vpop.f32.mrf.mxu0
        %v2578 = vadd.f32 0.0, %v2577
        %v2579 = vpop.f32.mrf.mxu0
        %v2580 = vadd.f32 0.0, %v2579
        %v2581 = vpop.f32.mrf.mxu0
        %v2582 = vadd.f32 0.0, %v2581
        %v2583 = vpop.f32.mrf.mxu0
        %v2584 = vadd.f32 0.0, %v2583
        %2585 = vdwg.mxu0
        %v2586 = vsel %vm603, %v2392, 0.0
        %v2587 = vsel %vm603, %v2393, 0.0
        %v2588 = vadd.f32 %v2586, %v2587
        %v2589 = vrot.slane %v2588, 4
        %v2590 = vadd.f32 %v2588, %v2589
        %v2591 = vrot.slane %v2590, 2
        %v2592 = vadd.f32 %v2590, %v2591
        %v2593 = vrot.slane %v2592, 1
        %v2594 = vadd.f32 %v2592, %v2593
        %v2595 = vmul.f32 %v2449, 0.1
        %v2596 = vmul.f32 %v2451, 0.1
        %v2597 = vmul.f32 %v2492, 0.1
        %v2598 = vmul.f32 %v2494, 0.1
        %v2599 = vmul.f32 %v2535, 0.1
        %v2600 = vmul.f32 %v2537, 0.1
        %v2601 = vmul.f32 %v2578, 0.1
        %v2602 = vmul.f32 %v2580, 0.1
        %v2603 = vmul.f32 %v2453, 0.1
        %v2604 = vmul.f32 %v2455, 0.1
        %v2605 = vmul.f32 %v2496, 0.1
        %v2606 = vmul.f32 %v2498, 0.1
        %v2607 = vmul.f32 %v2539, 0.1
        %v2608 = vmul.f32 %v2541, 0.1
        %v2609 = vmul.f32 %v2582, 0.1
        %v2610 = vmul.f32 %v2584, 0.1
        %v2611 = vsub.f32 %v2170, %v2595
        %v2612 = vsub.f32 %v2171, %v2596
        %v2613 = vsub.f32 %v2172, %v2597
        %v2614 = vsub.f32 %v2173, %v2598
        %v2615 = vsub.f32 %v2174, %v2599
        %v2616 = vsub.f32 %v2175, %v2600
        %v2617 = vsub.f32 %v2176, %v2601
        %v2618 = vsub.f32 %v2177, %v2602
        %v2619 = vsub.f32 %v2178, %v2603
        %v2620 = vsub.f32 %v2179, %v2604
        %v2621 = vsub.f32 %v2180, %v2605
        %v2622 = vsub.f32 %v2181, %v2606
        %v2623 = vsub.f32 %v2182, %v2607
        %v2624 = vsub.f32 %v2183, %v2608
        %v2625 = vsub.f32 %v2184, %v2609
        %v2626 = vsub.f32 %v2185, %v2610
        %v2627 = vmul.f32 %v2594, 0.1
        %v2628 = vsub.f32 %v2187, %v2627
        %v2629 = vpack.c.bf16 %v2619, %v2611
        %v2630 = vpack.c.bf16 %v2620, %v2612
        %v2631 = vpack.c.bf16 %v2621, %v2613
        %v2632 = vpack.c.bf16 %v2622, %v2614
        %v2633 = vpack.c.bf16 %v2623, %v2615
        %v2634 = vpack.c.bf16 %v2624, %v2616
        %v2635 = vpack.c.bf16 %v2625, %v2617
        %v2636 = vpack.c.bf16 %v2626, %v2618
        %v2638 = vlaneseq
        %v2639 = vshrl.u32 %v2638, 7
        %v2640 = vsub.s32 0, %v2639
        %v2641 = vrot.slane %v2628, %v2640
        %v2651 = vunpack.c.l.b16 %v304
        %v2652 = vunpack.c.h.b16 %v304
        %v2653 = vunpack.c.l.b16 %v305
        %v2654 = vunpack.c.h.b16 %v305
        %v2655 = vunpack.c.l.b16 %v306
        %v2656 = vunpack.c.h.b16 %v306
        %v2657 = vunpack.c.l.b16 %v307
        %v2658 = vunpack.c.h.b16 %v307
        %v2659 = vunpack.c.l.b16 %v308
        %v2660 = vunpack.c.h.b16 %v308
        %v2661 = vunpack.c.l.b16 %v309
        %v2662 = vunpack.c.h.b16 %v309
        %v2663 = vunpack.c.l.b16 %v310
        %v2664 = vunpack.c.h.b16 %v310
        %v2665 = vunpack.c.l.b16 %v311
        %v2666 = vunpack.c.h.b16 %v311
        %v2667 = vpack.c.b16 %v2659, %v2651
        %v2668 = vpack.c.b16 %v2660, %v2652
        %v2669 = vpack.c.b16 %v2661, %v2653
        %v2670 = vpack.c.b16 %v2662, %v2654
        %v2671 = vpack.c.b16 %v2663, %v2655
        %v2672 = vpack.c.b16 %v2664, %v2656
        %v2673 = vpack.c.b16 %v2665, %v2657
        %v2674 = vpack.c.b16 %v2666, %v2658
        %2683 = vmatprep.subr.bf16.mxu0 0
        %2684 = vmatpush1.bf16.xpose.msra.mxu0 0
        %2685 = vmatprep.subr.bf16.mxu0 0
        %2686 = vmatpush1.bf16.xpose.msra.mxu0 0
        %2687 = vmatprep.subr.bf16.mxu0 0
        %2688 = vmatpush1.bf16.xpose.msra.mxu0 0
        %2689 = vmatprep.subr.bf16.mxu0 0
        %2690 = vmatpush1.bf16.xpose.msra.mxu0 0
        %2691 = vmatprep.subr.bf16.mxu0 0
        %2692 = vmatpush1.bf16.xpose.msra.mxu0 0
        %2693 = vmatprep.subr.bf16.mxu0 0
        %2694 = vmatpush1.bf16.xpose.msra.mxu0 0
        %2695 = vmatprep.subr.bf16.mxu0 0
        %2696 = vmatpush1.bf16.xpose.msra.mxu0 0
        %2697 = vmatprep.subr.bf16.mxu0 %v2630
        %2698 = vmatpush1.bf16.xpose.msra.mxu0 %v2629
        %2699 = vmatprep.subr.bf16.mxu0 0
        %2700 = vmatpush2.bf16.xpose.msra.mxu0 0
        %2701 = vmatprep.subr.bf16.mxu0 0
        %2702 = vmatpush2.bf16.xpose.msra.mxu0 0
        %2703 = vmatprep.subr.bf16.mxu0 0
        %2704 = vmatpush2.bf16.xpose.msra.mxu0 0
        %2705 = vmatprep.subr.bf16.mxu0 0
        %2706 = vmatpush2.bf16.xpose.msra.mxu0 0
        %2707 = vmatprep.subr.bf16.mxu0 0
        %2708 = vmatpush2.bf16.xpose.msra.mxu0 0
        %2709 = vmatprep.subr.bf16.mxu0 0
        %2710 = vmatpush2.bf16.xpose.msra.mxu0 0
        %2711 = vmatprep.subr.bf16.mxu0 0
        %2712 = vmatpush2.bf16.xpose.msra.mxu0 0
        %2713 = vmatprep.subr.bf16.mxu0 0
        %2714 = vmatpush2.bf16.xpose.msra.mxu0 0
        %2715 = vmatprep.mubr.bf16.mxu0 %v2668
        %2716 = vmatmul.mubr.bf16.gmra.mxu0 %v2667
        %v2717 = vpop.f32.mrf.mxu0
        %v2718 = vadd.f32 %v2641, %v2717
        %v2719 = vpop.f32.mrf.mxu0
        %v2720 = vpop.f32.mrf.mxu0
        %v2721 = vadd.f32 %v2641, %v2720
        %v2722 = vpop.f32.mrf.mxu0
        %2723 = vdwg.mxu0
        %2724 = vmatprep.subr.bf16.mxu0 0
        %2725 = vmatpush1.bf16.xpose.msra.mxu0 0
        %2726 = vmatprep.subr.bf16.mxu0 0
        %2727 = vmatpush1.bf16.xpose.msra.mxu0 0
        %2728 = vmatprep.subr.bf16.mxu0 0
        %2729 = vmatpush1.bf16.xpose.msra.mxu0 0
        %2730 = vmatprep.subr.bf16.mxu0 0
        %2731 = vmatpush1.bf16.xpose.msra.mxu0 0
        %2732 = vmatprep.subr.bf16.mxu0 0
        %2733 = vmatpush1.bf16.xpose.msra.mxu0 0
        %2734 = vmatprep.subr.bf16.mxu0 0
        %2735 = vmatpush1.bf16.xpose.msra.mxu0 0
        %2736 = vmatprep.subr.bf16.mxu0 0
        %2737 = vmatpush1.bf16.xpose.msra.mxu0 0
        %2738 = vmatprep.subr.bf16.mxu0 %v2632
        %2739 = vmatpush1.bf16.xpose.msra.mxu0 %v2631
        %2740 = vmatprep.subr.bf16.mxu0 0
        %2741 = vmatpush2.bf16.xpose.msra.mxu0 0
        %2742 = vmatprep.subr.bf16.mxu0 0
        %2743 = vmatpush2.bf16.xpose.msra.mxu0 0
        %2744 = vmatprep.subr.bf16.mxu0 0
        %2745 = vmatpush2.bf16.xpose.msra.mxu0 0
        %2746 = vmatprep.subr.bf16.mxu0 0
        %2747 = vmatpush2.bf16.xpose.msra.mxu0 0
        %2748 = vmatprep.subr.bf16.mxu0 0
        %2749 = vmatpush2.bf16.xpose.msra.mxu0 0
        %2750 = vmatprep.subr.bf16.mxu0 0
        %2751 = vmatpush2.bf16.xpose.msra.mxu0 0
        %2752 = vmatprep.subr.bf16.mxu0 0
        %2753 = vmatpush2.bf16.xpose.msra.mxu0 0
        %2754 = vmatprep.subr.bf16.mxu0 0
        %2755 = vmatpush2.bf16.xpose.msra.mxu0 0
        %2756 = vmatprep.mubr.bf16.mxu0 %v2670
        %2757 = vmatmul.mubr.bf16.gmra.mxu0 %v2669
        %v2758 = vpop.f32.mrf.mxu0
        %v2759 = vadd.f32 %v2718, %v2758
        %v2760 = vpop.f32.mrf.mxu0
        %v2761 = vpop.f32.mrf.mxu0
        %v2762 = vadd.f32 %v2721, %v2761
        %v2763 = vpop.f32.mrf.mxu0
        %2764 = vdwg.mxu0
        %2765 = vmatprep.subr.bf16.mxu0 0
        %2766 = vmatpush1.bf16.xpose.msra.mxu0 0
        %2767 = vmatprep.subr.bf16.mxu0 0
        %2768 = vmatpush1.bf16.xpose.msra.mxu0 0
        %2769 = vmatprep.subr.bf16.mxu0 0
        %2770 = vmatpush1.bf16.xpose.msra.mxu0 0
        %2771 = vmatprep.subr.bf16.mxu0 0
        %2772 = vmatpush1.bf16.xpose.msra.mxu0 0
        %2773 = vmatprep.subr.bf16.mxu0 0
        %2774 = vmatpush1.bf16.xpose.msra.mxu0 0
        %2775 = vmatprep.subr.bf16.mxu0 0
        %2776 = vmatpush1.bf16.xpose.msra.mxu0 0
        %2777 = vmatprep.subr.bf16.mxu0 0
        %2778 = vmatpush1.bf16.xpose.msra.mxu0 0
        %2779 = vmatprep.subr.bf16.mxu0 %v2634
        %2780 = vmatpush1.bf16.xpose.msra.mxu0 %v2633
        %2781 = vmatprep.subr.bf16.mxu0 0
        %2782 = vmatpush2.bf16.xpose.msra.mxu0 0
        %2783 = vmatprep.subr.bf16.mxu0 0
        %2784 = vmatpush2.bf16.xpose.msra.mxu0 0
        %2785 = vmatprep.subr.bf16.mxu0 0
        %2786 = vmatpush2.bf16.xpose.msra.mxu0 0
        %2787 = vmatprep.subr.bf16.mxu0 0
        %2788 = vmatpush2.bf16.xpose.msra.mxu0 0
        %2789 = vmatprep.subr.bf16.mxu0 0
        %2790 = vmatpush2.bf16.xpose.msra.mxu0 0
        %2791 = vmatprep.subr.bf16.mxu0 0
        %2792 = vmatpush2.bf16.xpose.msra.mxu0 0
        %2793 = vmatprep.subr.bf16.mxu0 0
        %2794 = vmatpush2.bf16.xpose.msra.mxu0 0
        %2795 = vmatprep.subr.bf16.mxu0 0
        %2796 = vmatpush2.bf16.xpose.msra.mxu0 0
        %2797 = vmatprep.mubr.bf16.mxu0 %v2672
        %2798 = vmatmul.mubr.bf16.gmra.mxu0 %v2671
        %v2799 = vpop.f32.mrf.mxu0
        %v2800 = vadd.f32 %v2759, %v2799
        %v2801 = vpop.f32.mrf.mxu0
        %v2802 = vpop.f32.mrf.mxu0
        %v2803 = vadd.f32 %v2762, %v2802
        %v2804 = vpop.f32.mrf.mxu0
        %2805 = vdwg.mxu0
        %2806 = vmatprep.subr.bf16.mxu0 0
        %2807 = vmatpush1.bf16.xpose.msra.mxu0 0
        %2808 = vmatprep.subr.bf16.mxu0 0
        %2809 = vmatpush1.bf16.xpose.msra.mxu0 0
        %2810 = vmatprep.subr.bf16.mxu0 0
        %2811 = vmatpush1.bf16.xpose.msra.mxu0 0
        %2812 = vmatprep.subr.bf16.mxu0 0
        %2813 = vmatpush1.bf16.xpose.msra.mxu0 0
        %2814 = vmatprep.subr.bf16.mxu0 0
        %2815 = vmatpush1.bf16.xpose.msra.mxu0 0
        %2816 = vmatprep.subr.bf16.mxu0 0
        %2817 = vmatpush1.bf16.xpose.msra.mxu0 0
        %2818 = vmatprep.subr.bf16.mxu0 0
        %2819 = vmatpush1.bf16.xpose.msra.mxu0 0
        %2820 = vmatprep.subr.bf16.mxu0 %v2636
        %2821 = vmatpush1.bf16.xpose.msra.mxu0 %v2635
        %2822 = vmatprep.subr.bf16.mxu0 0
        %2823 = vmatpush2.bf16.xpose.msra.mxu0 0
        %2824 = vmatprep.subr.bf16.mxu0 0
        %2825 = vmatpush2.bf16.xpose.msra.mxu0 0
        %2826 = vmatprep.subr.bf16.mxu0 0
        %2827 = vmatpush2.bf16.xpose.msra.mxu0 0
        %2828 = vmatprep.subr.bf16.mxu0 0
        %2829 = vmatpush2.bf16.xpose.msra.mxu0 0
        %2830 = vmatprep.subr.bf16.mxu0 0
        %2831 = vmatpush2.bf16.xpose.msra.mxu0 0
        %2832 = vmatprep.subr.bf16.mxu0 0
        %2833 = vmatpush2.bf16.xpose.msra.mxu0 0
        %2834 = vmatprep.subr.bf16.mxu0 0
        %2835 = vmatpush2.bf16.xpose.msra.mxu0 0
        %2836 = vmatprep.subr.bf16.mxu0 0
        %2837 = vmatpush2.bf16.xpose.msra.mxu0 0
        %2838 = vmatprep.mubr.bf16.mxu0 %v2674
        %2839 = vmatmul.mubr.bf16.gmra.mxu0 %v2673
        %v2840 = vpop.f32.mrf.mxu0
        %v2841 = vadd.f32 %v2800, %v2840
        %v2842 = vpop.f32.mrf.mxu0
        %v2843 = vpop.f32.mrf.mxu0
        %v2844 = vadd.f32 %v2803, %v2843
        %v2845 = vpop.f32.mrf.mxu0
        %2846 = vdwg.mxu0
        %v2847 = vsel %vm360, %v2841, -1e+30
        %v2848 = vsel %vm361, %v2844, -1e+30
        %v2849 = vsel %vm603, %v2847, -inf
        %2850 = vmax.xlane.f32.xlu0 %v2849
        %v2851 = vpop.xlane.xlu0 %2850
        %v2852 = vsel %vm603, %v2848, -inf
        %2853 = vmax.xlane.f32.xlu0 %v2852
        %v2854 = vpop.xlane.xlu0 %2853
        %v2855 = vsub.f32 %v2847, %v2851
        %v2856 = vsub.f32 %v2848, %v2854
        %v2857 = vmul.f32 %v2855, 1.442695
        %v2858 = vpow.pop %v2857
        %v2859 = vmul.f32 %v2856, 1.442695
        %v2860 = vpow.pop %v2859
        %v2861 = vsel %vm603, %v2858, 0.0
        %2862 = vadd.xlane.f32.xlu0 %v2861
        %v2863 = vpop.xlane.xlu0 %2862
        %v2864 = vsel %vm603, %v2860, 0.0
        %2865 = vadd.xlane.f32.xlu0 %v2864
        %v2866 = vpop.xlane.xlu0 %2865
        %v2867 = vlog2.pop %v2863
        %v2868 = vmul.f32 %v2867, 0.6931472
        %v2869 = vlog2.pop %v2866
        %v2870 = vmul.f32 %v2869, 0.6931472
        %v2871 = vadd.f32 %v2851, %v2868
        %v2872 = vadd.f32 %v2854, %v2870
        %2873 = vset.pattern.permute.xlu0 0
        %2874 = vperm.xlu0 %2873, %v314
        %v2875 = vpop.permute.xlu0 %2874
        %2876 = vset.pattern.permute.xlu0 0
        %2877 = vperm.xlu0 %2876, %v315
        %v2878 = vpop.permute.xlu0 %2877
        %vm2879 = vcmp.eq.s32.totalorder %v321, %v2875
        %vm2880 = vcmp.eq.s32.totalorder %v321, %v2878
        %v2881 = vsel %vm2879, %v2847, 0.0
        %v2882 = vsel %vm2880, %v2848, 0.0
        %v2883 = vsel %vm603, %v2881, 0.0
        %2884 = vadd.xlane.f32.xlu0 %v2883
        %v2885 = vpop.xlane.xlu0 %2884
        %v2886 = vsel %vm603, %v2882, 0.0
        %2887 = vadd.xlane.f32.xlu0 %v2886
        %v2888 = vpop.xlane.xlu0 %2887
        %v2889 = vsub.f32 %v2871, %v2885
        %v2890 = vsub.f32 %v2872, %v2888
        %vm2891 = vcmask 7168
        %v2892 = vsel %vm2891, %v2889, 0.0
        %v2893 = vsel %vm2891, %v2890, 0.0
        %v2894 = vadd.f32 %v2892, %v2893
        %2895 = vadd.xlane.f32.xlu0 %v2894
        %v2896 = vpop.xlane.xlu0 %2895
        %v2897 = vrot.slane %v2896, 4
        %v2898 = vadd.f32 %v2896, %v2897
        %v2899 = vrot.slane %v2898, 2
        %v2900 = vadd.f32 %v2898, %v2899
        %v2901 = vrot.slane %v2900, 1
        %v2902 = vadd.f32 %v2900, %v2901
        %s2903 = vtos %v2902
        %s2904 = smul.f32 %s2903, 0.125
        %vm2905 = vcmp.eq.f32.partialorder %v2847, %v2851
        %vm2906 = vcmp.eq.f32.partialorder %v2848, %v2854
        %v2907 = vsel %vm2905, %v321, 16
        %v2908 = vsel %vm2906, %v321, 16
        %v2909 = vsel %vm603, %v2907, 2147483647
        %v2910 = vand.u32 %v2909, 65535
        %v2911 = vshra.s32 %v2909, 16
        %v2912 = vcvt.s32.f32 %v2910
        %v2913 = vcvt.s32.f32 %v2911
        %2914 = vmin.xlane.f32.xlu0 %v2913
        %v2915 = vpop.xlane.xlu0 %2914
        %vm2916 = vcmp.eq.f32.partialorder %v2913, %v2915
        %v2917 = vsel %vm2916, %v2912, inf
        %2918 = vmin.xlane.f32.xlu0 %v2917
        %v2919 = vpop.xlane.xlu0 %2918
        %v2920 = vcvt.f32.s32 %v2919
        %v2921 = vcvt.f32.s32 %v2915
        %v2922 = vshll.u32 %v2921, 16
        %v2923 = vadd.s32 %v2922, %v2920
        %v2924 = vsel %vm603, %v2908, 2147483647
        %v2925 = vand.u32 %v2924, 65535
        %v2926 = vshra.s32 %v2924, 16
        %v2927 = vcvt.s32.f32 %v2925
        %v2928 = vcvt.s32.f32 %v2926
        %2929 = vmin.xlane.f32.xlu0 %v2928
        %v2930 = vpop.xlane.xlu0 %2929
        %vm2931 = vcmp.eq.f32.partialorder %v2928, %v2930
        %v2932 = vsel %vm2931, %v2927, inf
        %2933 = vmin.xlane.f32.xlu0 %v2932
        %v2934 = vpop.xlane.xlu0 %2933
        %v2935 = vcvt.f32.s32 %v2934
        %v2936 = vcvt.f32.s32 %v2930
        %v2937 = vshll.u32 %v2936, 16
        %v2938 = vadd.s32 %v2937, %v2935
        %vm2939 = vcmp.eq.s32.totalorder %v2923, %v314
        %vm2940 = vcmp.eq.s32.totalorder %v2938, %v315
        %v2941 = vsel %vm2939, 1, 0
        %v2942 = vsel %vm2940, 1, 0
        %v2943 = vcvt.s32.f32 %v2941
        %v2944 = vcvt.s32.f32 %v2942
        %v2945 = vsel %vm2891, %v2943, 0.0
        %v2946 = vsel %vm2891, %v2944, 0.0
        %v2947 = vadd.f32 %v2945, %v2946
        %2948 = vadd.xlane.f32.xlu0 %v2947
        %v2949 = vpop.xlane.xlu0 %2948
        %v2950 = vrot.slane %v2949, 4
        %v2951 = vadd.f32 %v2949, %v2950
        %v2952 = vrot.slane %v2951, 2
        %v2953 = vadd.f32 %v2951, %v2952
        %v2954 = vrot.slane %v2953, 1
        %v2955 = vadd.f32 %v2953, %v2954
        %s2956 = vtos %v2955
        %vm2957 = vcmp.eq.s32.totalorder %v321, 0
        %vm2958 = vcmp.eq.s32.totalorder %v321, 1
        %v2959 = vstv %s2956
        %v2960 = vsel %vm2958, %v2959, 0.0
        %v2961 = vstv %s2904
        %v2962 = vsel %vm2957, %v2961, %v2960
        %2963 = vst [vmem:[%s284] sm:$0x1] %v2962
        %s2964 = sand.u32 %s151, 1
        %s2965 = scalar_lea.sflag [#allocation4], %s2964
        %s2966 = sand.u32 %s151, 1
        %s2967 = scalar_lea.vmem [#allocation7], %s2966
        // Predicated region
        $region49: #{tpu_custom_call.1} parent=39 // pred_check
          %p2968 = pneg %p161
        $region50: #{tpu_custom_call.1} parent=39 // pred_check_branch
          %2970 = sbr.rel (%p2968) target = $region52
        $region51: #{tpu_custom_call.1} parent=39 // pred_region
          %s2972 = ssub.s32 16, 16
          %2973 = vsyncadd %s2965, %s2972
          %s2974 = smul.addr %s23, 16
          %s2975 = scalar_lea.hbm %s5, %s2974
          %s2977 = sshll.u32 %s2967, 4
          %s2978 = int_to_ptr.vmem [resolvable:$true] %s2977
          %2980 = dma.vmem_to_hbm [thread:$0]  %s2978, 16, %s2975, %s2965
        $region52: #{tpu_custom_call.1} parent=39 // pred_fallthru
          _
      $region40: #{tpu_custom_call.1} parent=5 // pred_fallthru
        _
      %p2981 = scmp.le.s32.totalorder 2, %s18
      // Predicated region
      $region53: #{tpu_custom_call.1} parent=5 // pred_check
        %p2982 = pneg %p2981
      $region54: #{tpu_custom_call.1} parent=5 // pred_check_branch
        %2984 = sbr.rel (%p2982) target = $region56
      $region55: #{tpu_custom_call.1} parent=5 // pred_region
        %s2985 = ssub.s32 %s18, 2
        // Predicated region
        $region57: #{tpu_custom_call.1} parent=55 // pred_check
          %p2986 = pneg %p167
        $region58: #{tpu_custom_call.1} parent=55 // pred_check_branch
          %2988 = sbr.rel (%p2986) target = $region60
        $region59: #{tpu_custom_call.1} parent=55 // pred_region
          %s2989 = sand.u32 %s152, 1
          %s2990 = scalar_lea.sflag [#allocation4], %s2989
          %s2991 = sand.u32 %s152, 1
          %s2992 = scalar_lea.vmem [#allocation7], %s2991
          %2993 = dma.done %s2990, 16
        $region60: #{tpu_custom_call.1} parent=55 // pred_fallthru
          _
      $region56: #{tpu_custom_call.1} parent=5 // pred_fallthru
        _
    $region6: #{tpu_custom_call.1} parent=1 // loop_footer
      %s22 = sadd.s32 1, %s18
    $region7: #{tpu_custom_call.1} parent=1 // loop_footer_branch
      %17 = sbr.rel target = $region3
    $region8: #{tpu_custom_call.1} parent=1 // loop_exit
      _
    %2994 = vsyncpa [#allocation3], 1
    %s2995 = scalar_lea.sflag [#allocation3], 1
    %2996 = vsyncpa %s2995, 1
    %2997 = vsyncpa [#allocation6], 1
    %2998 = vsyncpa [#allocation4], 1
    %s2999 = scalar_lea.sflag [#allocation4], 1
    %3000 = vsyncpa %s2999, 1

</llo_original>
